<compile_context>
chip_gen: v7x
topology: tpu7x:2x2x1
jax: 0.10.0
libtpu: 0.0.40
codegen_flags: <defaults>
</compile_context>

<pallas_src>
import functools

import jax
import jax.numpy as jnp
from jax.experimental import pallas as pl
from jax.experimental.pallas import tpu as pltpu

_LANES = 128


def _choose_pool_kernel(wmax_ref, xpad_ref, vmask_ref, winv_ref, o_ref):
    # xpad_ref : (H+2, W+2, TBG, 128) f32, spatial border padded with f32.min
    # vmask_ref: (H+2, W+2, TBG, 128) f32, 1.0 interior / 0.0 on the pad ring
    # winv_ref : (H,   W,   TBG, 128) f32, = w_avg / (#valid taps at (i, j))
    # wmax_ref : (1,) f32 in SMEM,          = w_max
    xm = xpad_ref[...]                 # operand for the max-pool path
    xs = xm * vmask_ref[...]           # zero-padded operand for the avg path
    hp, wp = xm.shape[0], xm.shape[1]
    H, W = hp - 2, wp - 2

    # 3x3 window = 9 statically shifted views of the two leading (spatial)
    # dims; initialize accumulators from the (0,0) tap (saves two full passes).
    mx = xm[0:H, 0:W]
    sm = xs[0:H, 0:W]
    for dy in range(3):
        for dx in range(3):
            if dy == 0 and dx == 0:
                continue
            mx = jnp.maximum(mx, xm[dy:dy + H, dx:dx + W])
            sm = sm + xs[dy:dy + H, dx:dx + W]

    o_ref[...] = wmax_ref[0] * mx + sm * winv_ref[...]


@functools.partial(jax.jit, static_argnames=("stride",))
def choose_pool(x, weights, stride=1):
    """x: (N, C, H, W); weights: (2,) in PRIMITIVES_POOL order = [max, avg]."""
    assert weights.shape == (2,), "weights must follow PRIMITIVES_POOL order (max, avg)"
    N, C, H, W = x.shape
    NC = N * C
    G = -(-NC // _LANES)                 # channel groups of 128 lanes
    NCpad = G * _LANES

    # Channel groups per grid step: must be a multiple of 8 (sublane rule) or
    # equal G; sized to keep double-buffered blocks a few MB (VMEM friendly on
    # v7x's 64 MiB as well as v5e/v6e).
    if G <= 8:
        TBG = G
    else:
        per_group = (H + 2) * (W + 2) * _LANES * 4
        TBG = max(8, min(64, ((1_500_000 // per_group) // 8) * 8))
    GB = -(-G // TBG)

    # ---- glue: layout plumbing (channels-last, lane padding, halo pad) ----
    xf = x.astype(jnp.float32).reshape(NC, H, W)
    xcl = jnp.transpose(xf, (1, 2, 0))                       # (H, W, NC)
    if NCpad != NC:
        xcl = jnp.pad(xcl, ((0, 0), (0, 0), (0, NCpad - NC)))
    neg = jnp.finfo(jnp.float32).min
    xp = jnp.pad(xcl, ((1, 1), (1, 1), (0, 0)), constant_values=neg)
    xp = xp.reshape(H + 2, W + 2, G, _LANES)

    # grid-invariant constants (same block every step -> DMA'd once)
    vm2d = jnp.zeros((H + 2, W + 2), jnp.float32).at[1:H + 1, 1:W + 1].set(1.0)
    vmask = jnp.broadcast_to(vm2d[:, :, None, None], (H + 2, W + 2, TBG, _LANES))

    hi = jnp.arange(H)
    wi = jnp.arange(W)
    ch = 3.0 - (hi == 0).astype(jnp.float32) - (hi == H - 1).astype(jnp.float32)
    cw = 3.0 - (wi == 0).astype(jnp.float32) - (wi == W - 1).astype(jnp.float32)
    winv2d = weights[1].astype(jnp.float32) / (ch[:, None] * cw[None, :])   # (H, W)
    winv = jnp.broadcast_to(winv2d[:, :, None, None], (H, W, TBG, _LANES))

    wmax = weights[0:1].astype(jnp.float32)

    out4 = pl.pallas_call(
        _choose_pool_kernel,
        out_shape=jax.ShapeDtypeStruct((H, W, G, _LANES), jnp.float32),
        grid_spec=pltpu.PrefetchScalarGridSpec(
            num_scalar_prefetch=0,
            grid=(GB,),
            in_specs=[
                pl.BlockSpec(memory_space=pltpu.MemorySpace.SMEM),               # w_max
                pl.BlockSpec((H + 2, W + 2, TBG, _LANES), lambda g: (0, 0, g, 0)),  # x (padded)
                pl.BlockSpec((H + 2, W + 2, TBG, _LANES), lambda g: (0, 0, 0, 0)),  # border mask
                pl.BlockSpec((H, W, TBG, _LANES), lambda g: (0, 0, 0, 0)),          # w_avg/count
            ],
            out_specs=pl.BlockSpec((H, W, TBG, _LANES), lambda g: (0, 0, g, 0)),
        ),
        compiler_params=pltpu.CompilerParams(
            dimension_semantics=("parallel",),
            vmem_limit_bytes=32 * 1024 * 1024,
        ),
    )(wmax, xp, vmask, winv)

    out = out4.reshape(H, W, NCpad)[:, :, :NC]
    out = jnp.transpose(out, (2, 0, 1)).reshape(N, C, H, W).astype(x.dtype)
    if stride > 1:
        # 3x3/pad=1/stride=s pooling == stride-1 pooling subsampled at [::s].
        # TODO(synk): emit the strided output directly from the kernel to save
        # ~stride^2 of output HBM writes on the reduction-cell path.
        out = out[:, :, ::stride, ::stride]
    return out


def _reference(x, w, stride=1):
    """Pure-JAX reference matching nn.MaxPool2d / nn.AvgPool2d(count_include_pad=False)."""
    pad = [(0, 0), (0, 0), (1, 1), (1, 1)]
    neg = jnp.finfo(x.dtype).min
    mx = jax.lax.reduce_window(x, neg, jax.lax.max,
                               (1, 1, 3, 3), (1, 1, stride, stride), pad)
    sm = jax.lax.reduce_window(x, 0.0, jax.lax.add,
                               (1, 1, 3, 3), (1, 1, stride, stride), pad)
    cnt = jax.lax.reduce_window(jnp.ones_like(x), 0.0, jax.lax.add,
                                (1, 1, 3, 3), (1, 1, stride, stride), pad)
    return w[0] * mx + w[1] * (sm / cnt)


if __name__ == "__main__":
    key = jax.random.PRNGKey(0)
    x = jax.random.normal(key, (2, 4, 16, 16), dtype=jnp.float32)
    # Architecture weights (as produced by softmax over alphas in DARTS).
    weights = jax.nn.softmax(jnp.array([0.3, -0.1], dtype=jnp.float32))

    stride = 1
    out = choose_pool(x, weights, stride=stride)
    out = jax.block_until_ready(out)

    ref = _reference(x, weights, stride=stride)
    assert out.shape == ref.shape
    assert jnp.allclose(out, ref, atol=1e-5, rtol=1e-5), "mismatch vs reference"

    print("KERNEL_OK")
</pallas_src>

<mosaic_0001>
module attributes {stable_mosaic.version = 11 : i64} {
  func.func @_choose_pool_kernel(%arg0: i32, %arg1: memref<1xf32, #tpu.memory_space<smem>>, %arg2: memref<18x18x1x128xf32, #tpu.memory_space<vmem>>, %arg3: memref<18x18x1x128xf32, #tpu.memory_space<vmem>>, %arg4: memref<16x16x1x128xf32, #tpu.memory_space<vmem>>, %arg5: memref<16x16x1x128xf32, #tpu.memory_space<vmem>>) attributes {dimension_semantics = [#tpu.dimension_semantics<parallel>], iteration_bounds = array<i64: 1>, scalar_prefetch = 0 : i64, scratch_operands = 0 : i64, tpu.core_type = #tpu.core_type<tc>, window_params = [{transform_indices = @transform_0, window_bounds = array<i64: 1>}, {transform_indices = @transform_1, window_bounds = array<i64: 18, 18, 1, 128>}, {pipeline_mode = #tpu.pipeline_mode<synchronous>, transform_indices = @transform_2, window_bounds = array<i64: 18, 18, 1, 128>}, {pipeline_mode = #tpu.pipeline_mode<synchronous>, transform_indices = @transform_3, window_bounds = array<i64: 16, 16, 1, 128>}, {transform_indices = @transform_4, window_bounds = array<i64: 16, 16, 1, 128>}]} {
    %c0 = arith.constant 0 : index
    %c0_0 = arith.constant 0 : index
    %c0_1 = arith.constant 0 : index
    %c0_2 = arith.constant 0 : index
    %0 = vector.load %arg2[%c0, %c0_0, %c0_1, %c0_2] : memref<18x18x1x128xf32, #tpu.memory_space<vmem>>, vector<18x18x1x128xf32>
    %c0_3 = arith.constant 0 : index
    %c0_4 = arith.constant 0 : index
    %c0_5 = arith.constant 0 : index
    %c0_6 = arith.constant 0 : index
    %1 = vector.load %arg3[%c0_3, %c0_4, %c0_5, %c0_6] : memref<18x18x1x128xf32, #tpu.memory_space<vmem>>, vector<18x18x1x128xf32>
    %2 = arith.mulf %0, %1 : vector<18x18x1x128xf32>
    %3 = vector.extract_strided_slice %0 {offsets = [0, 0, 0, 0], sizes = [16, 16, 1, 128], strides = [1, 1, 1, 1]} : vector<18x18x1x128xf32> to vector<16x16x1x128xf32>
    %4 = vector.extract_strided_slice %2 {offsets = [0, 0, 0, 0], sizes = [16, 16, 1, 128], strides = [1, 1, 1, 1]} : vector<18x18x1x128xf32> to vector<16x16x1x128xf32>
    %5 = vector.extract_strided_slice %0 {offsets = [0, 1, 0, 0], sizes = [16, 16, 1, 128], strides = [1, 1, 1, 1]} : vector<18x18x1x128xf32> to vector<16x16x1x128xf32>
    %6 = arith.maximumf %3, %5 : vector<16x16x1x128xf32>
    %7 = vector.extract_strided_slice %2 {offsets = [0, 1, 0, 0], sizes = [16, 16, 1, 128], strides = [1, 1, 1, 1]} : vector<18x18x1x128xf32> to vector<16x16x1x128xf32>
    %8 = arith.addf %4, %7 : vector<16x16x1x128xf32>
    %9 = vector.extract_strided_slice %0 {offsets = [0, 2, 0, 0], sizes = [16, 16, 1, 128], strides = [1, 1, 1, 1]} : vector<18x18x1x128xf32> to vector<16x16x1x128xf32>
    %10 = arith.maximumf %6, %9 : vector<16x16x1x128xf32>
    %11 = vector.extract_strided_slice %2 {offsets = [0, 2, 0, 0], sizes = [16, 16, 1, 128], strides = [1, 1, 1, 1]} : vector<18x18x1x128xf32> to vector<16x16x1x128xf32>
    %12 = arith.addf %8, %11 : vector<16x16x1x128xf32>
    %13 = vector.extract_strided_slice %0 {offsets = [1, 0, 0, 0], sizes = [16, 16, 1, 128], strides = [1, 1, 1, 1]} : vector<18x18x1x128xf32> to vector<16x16x1x128xf32>
    %14 = arith.maximumf %10, %13 : vector<16x16x1x128xf32>
    %15 = vector.extract_strided_slice %2 {offsets = [1, 0, 0, 0], sizes = [16, 16, 1, 128], strides = [1, 1, 1, 1]} : vector<18x18x1x128xf32> to vector<16x16x1x128xf32>
    %16 = arith.addf %12, %15 : vector<16x16x1x128xf32>
    %17 = vector.extract_strided_slice %0 {offsets = [1, 1, 0, 0], sizes = [16, 16, 1, 128], strides = [1, 1, 1, 1]} : vector<18x18x1x128xf32> to vector<16x16x1x128xf32>
    %18 = arith.maximumf %14, %17 : vector<16x16x1x128xf32>
    %19 = vector.extract_strided_slice %2 {offsets = [1, 1, 0, 0], sizes = [16, 16, 1, 128], strides = [1, 1, 1, 1]} : vector<18x18x1x128xf32> to vector<16x16x1x128xf32>
    %20 = arith.addf %16, %19 : vector<16x16x1x128xf32>
    %21 = vector.extract_strided_slice %0 {offsets = [1, 2, 0, 0], sizes = [16, 16, 1, 128], strides = [1, 1, 1, 1]} : vector<18x18x1x128xf32> to vector<16x16x1x128xf32>
    %22 = arith.maximumf %18, %21 : vector<16x16x1x128xf32>
    %23 = vector.extract_strided_slice %2 {offsets = [1, 2, 0, 0], sizes = [16, 16, 1, 128], strides = [1, 1, 1, 1]} : vector<18x18x1x128xf32> to vector<16x16x1x128xf32>
    %24 = arith.addf %20, %23 : vector<16x16x1x128xf32>
    %25 = vector.extract_strided_slice %0 {offsets = [2, 0, 0, 0], sizes = [16, 16, 1, 128], strides = [1, 1, 1, 1]} : vector<18x18x1x128xf32> to vector<16x16x1x128xf32>
    %26 = arith.maximumf %22, %25 : vector<16x16x1x128xf32>
    %27 = vector.extract_strided_slice %2 {offsets = [2, 0, 0, 0], sizes = [16, 16, 1, 128], strides = [1, 1, 1, 1]} : vector<18x18x1x128xf32> to vector<16x16x1x128xf32>
    %28 = arith.addf %24, %27 : vector<16x16x1x128xf32>
    %29 = vector.extract_strided_slice %0 {offsets = [2, 1, 0, 0], sizes = [16, 16, 1, 128], strides = [1, 1, 1, 1]} : vector<18x18x1x128xf32> to vector<16x16x1x128xf32>
    %30 = arith.maximumf %26, %29 : vector<16x16x1x128xf32>
    %31 = vector.extract_strided_slice %2 {offsets = [2, 1, 0, 0], sizes = [16, 16, 1, 128], strides = [1, 1, 1, 1]} : vector<18x18x1x128xf32> to vector<16x16x1x128xf32>
    %32 = arith.addf %28, %31 : vector<16x16x1x128xf32>
    %33 = vector.extract_strided_slice %0 {offsets = [2, 2, 0, 0], sizes = [16, 16, 1, 128], strides = [1, 1, 1, 1]} : vector<18x18x1x128xf32> to vector<16x16x1x128xf32>
    %34 = arith.maximumf %30, %33 : vector<16x16x1x128xf32>
    %35 = vector.extract_strided_slice %2 {offsets = [2, 2, 0, 0], sizes = [16, 16, 1, 128], strides = [1, 1, 1, 1]} : vector<18x18x1x128xf32> to vector<16x16x1x128xf32>
    %36 = arith.addf %32, %35 : vector<16x16x1x128xf32>
    %c0_7 = arith.constant 0 : index
    %37 = memref.load %arg1[%c0_7] : memref<1xf32, #tpu.memory_space<smem>>
    %38 = vector.broadcast %37 : f32 to vector<16x16x1x128xf32>
    %39 = arith.mulf %38, %34 : vector<16x16x1x128xf32>
    %c0_8 = arith.constant 0 : index
    %c0_9 = arith.constant 0 : index
    %c0_10 = arith.constant 0 : index
    %c0_11 = arith.constant 0 : index
    %40 = vector.load %arg4[%c0_8, %c0_9, %c0_10, %c0_11] : memref<16x16x1x128xf32, #tpu.memory_space<vmem>>, vector<16x16x1x128xf32>
    %41 = arith.mulf %36, %40 : vector<16x16x1x128xf32>
    %42 = arith.addf %39, %41 : vector<16x16x1x128xf32>
    %c0_12 = arith.constant 0 : index
    %c0_13 = arith.constant 0 : index
    %c0_14 = arith.constant 0 : index
    %c0_15 = arith.constant 0 : index
    %43 = vector.load %arg5[%c0_12, %c0_13, %c0_14, %c0_15] : memref<16x16x1x128xf32, #tpu.memory_space<vmem>>, vector<16x16x1x128xf32>
    tpu.vector_store %arg5[%c0_12, %c0_13, %c0_14, %c0_15], %42 {strides = array<i32>} : memref<16x16x1x128xf32, #tpu.memory_space<vmem>>, vector<16x16x1x128xf32>,
    return
  }
  func.func @transform_0(%arg0: i32) -> i32 {
    %c0_i32 = arith.constant 0 : i32
    %c0_i32_0 = arith.constant 0 : i32
    return %c0_i32 : i32
  }
  func.func @transform_1(%arg0: i32) -> (i32, i32, i32, i32) {
    %c0_i32 = arith.constant 0 : i32
    %c0_i32_0 = arith.constant 0 : i32
    %c0_i32_1 = arith.constant 0 : i32
    %c0_i32_2 = arith.constant 0 : i32
    return %c0_i32, %c0_i32_0, %arg0, %c0_i32_1 : i32, i32, i32, i32
  }
  func.func @transform_2(%arg0: i32) -> (i32, i32, i32, i32) {
    %c0_i32 = arith.constant 0 : i32
    %c0_i32_0 = arith.constant 0 : i32
    %c0_i32_1 = arith.constant 0 : i32
    %c0_i32_2 = arith.constant 0 : i32
    %c0_i32_3 = arith.constant 0 : i32
    return %c0_i32, %c0_i32_0, %c0_i32_1, %c0_i32_2 : i32, i32, i32, i32
  }
  func.func @transform_3(%arg0: i32) -> (i32, i32, i32, i32) {
    %c0_i32 = arith.constant 0 : i32
    %c0_i32_0 = arith.constant 0 : i32
    %c0_i32_1 = arith.constant 0 : i32
    %c0_i32_2 = arith.constant 0 : i32
    %c0_i32_3 = arith.constant 0 : i32
    return %c0_i32, %c0_i32_0, %c0_i32_1, %c0_i32_2 : i32, i32, i32, i32
  }
  func.func @transform_4(%arg0: i32) -> (i32, i32, i32, i32) {
    %c0_i32 = arith.constant 0 : i32
    %c0_i32_0 = arith.constant 0 : i32
    %c0_i32_1 = arith.constant 0 : i32
    %c0_i32_2 = arith.constant 0 : i32
    return %c0_i32, %c0_i32_0, %arg0, %c0_i32_1 : i32, i32, i32, i32
  }
}

</mosaic_0001>

<llo_original>
// kernel: choose_pool.1
$region0: #{choose_pool.1}
  #allocation0 [shape = 'u32[]', space=smem, size = 0x4, offset = 0x4, fixed_abs, tag = 'smem constant byte address 0x4 - core index']
  #allocation1 [shape = 'u32[144,128]{1,0:T(1,128)}', space=vmem, size = 0x12000, scoped, tag = 'internal scratch']
  #allocation2 [shape = 'f32[1]{0:T(128)S(6)}', space=smem, size = 0x200, scoped, tag = 'scoped memory for choose_pool.1']
  %s0 = inlined_call_operand.<no memory space> [shape: f32[1], index: 0, kind: input, shape index: {}]
  %s1 = inlined_call_operand.vmem [shape: f32[18,18,1,128], index: 1, kind: input, shape index: {}]
  %s2 = inlined_call_operand.vmem [shape: f32[18,18,1,128], index: 2, kind: input, shape index: {}]
  %s3 = inlined_call_operand.vmem [shape: f32[16,16,1,128], index: 3, kind: input, shape index: {}]
  %s4 = inlined_call_operand.vmem [shape: f32[16,16,1,128], index: 4, kind: output, shape index: {}]
  %s5 = sld [smem:[#allocation0]]
  $region26: #{choose_pool.1} parent=0
    _
  %s7 = ssub.s32 1, %s5
  %s8 = scalar_select 0, %s7, %s5
  %9 = sst [smem:[#allocation2]] %s0
  // Predicated region
  $region2: #{choose_pool.1} parent=0 // pred_check
    _
  $region3: #{choose_pool.1} parent=0 // pred_check_branch
    %11 = sbr.rel (0) target = $region5
  $region4: #{choose_pool.1} parent=0 // pred_region
    _
  $region5: #{choose_pool.1} parent=0 // pred_fallthru
    _
  // Predicated region
  $region6: #{choose_pool.1} parent=0 // pred_check
    _
  $region7: #{choose_pool.1} parent=0 // pred_check_branch
    %13 = sbr.rel (0) target = $region9
  $region8: #{choose_pool.1} parent=0 // pred_region
    _
  $region9: #{choose_pool.1} parent=0 // pred_fallthru
    _
  // Predicated region
  $region10: #{choose_pool.1} parent=0 // pred_check
    _
  $region11: #{choose_pool.1} parent=0 // pred_check_branch
    %15 = sbr.rel (0) target = $region13
  $region12: #{choose_pool.1} parent=0 // pred_region
    _
  $region13: #{choose_pool.1} parent=0 // pred_fallthru
    _
  // Predicated region
  $region14: #{choose_pool.1} parent=0 // pred_check
    _
  $region15: #{choose_pool.1} parent=0 // pred_check_branch
    %17 = sbr.rel (0) target = $region17
  $region16: #{choose_pool.1} parent=0 // pred_region
    _
  $region17: #{choose_pool.1} parent=0 // pred_fallthru
    _
  %v18 = vld [vmem:[%s1] sm:$0x1]
  %v19 = vld [vmem:[%s1 + $0x1] sm:$0x1]
  %v20 = vld [vmem:[%s1 + $0x2] sm:$0x1]
  %v21 = vld [vmem:[%s1 + $0x3] sm:$0x1]
  %v22 = vld [vmem:[%s1 + $0x4] sm:$0x1]
  %v23 = vld [vmem:[%s1 + $0x5] sm:$0x1]
  %v24 = vld [vmem:[%s1 + $0x6] sm:$0x1]
  %v25 = vld [vmem:[%s1 + $0x7] sm:$0x1]
  %v26 = vld [vmem:[%s1 + $0x8] sm:$0x1]
  %v27 = vld [vmem:[%s1 + $0x9] sm:$0x1]
  %v28 = vld [vmem:[%s1 + $0xa] sm:$0x1]
  %v29 = vld [vmem:[%s1 + $0xb] sm:$0x1]
  %v30 = vld [vmem:[%s1 + $0xc] sm:$0x1]
  %v31 = vld [vmem:[%s1 + $0xd] sm:$0x1]
  %v32 = vld [vmem:[%s1 + $0xe] sm:$0x1]
  %v33 = vld [vmem:[%s1 + $0xf] sm:$0x1]
  %v34 = vld [vmem:[%s1 + $0x10] sm:$0x1]
  %v35 = vld [vmem:[%s1 + $0x11] sm:$0x1]
  %v36 = vld [vmem:[%s1 + $0x12] sm:$0x1]
  %v37 = vld [vmem:[%s1 + $0x13] sm:$0x1]
  %v38 = vld [vmem:[%s1 + $0x14] sm:$0x1]
  %v39 = vld [vmem:[%s1 + $0x15] sm:$0x1]
  %v40 = vld [vmem:[%s1 + $0x16] sm:$0x1]
  %v41 = vld [vmem:[%s1 + $0x17] sm:$0x1]
  %v42 = vld [vmem:[%s1 + $0x18] sm:$0x1]
  %v43 = vld [vmem:[%s1 + $0x19] sm:$0x1]
  %v44 = vld [vmem:[%s1 + $0x1a] sm:$0x1]
  %v45 = vld [vmem:[%s1 + $0x1b] sm:$0x1]
  %v46 = vld [vmem:[%s1 + $0x1c] sm:$0x1]
  %v47 = vld [vmem:[%s1 + $0x1d] sm:$0x1]
  %v48 = vld [vmem:[%s1 + $0x1e] sm:$0x1]
  %v49 = vld [vmem:[%s1 + $0x1f] sm:$0x1]
  %v50 = vld [vmem:[%s1 + $0x20] sm:$0x1]
  %v51 = vld [vmem:[%s1 + $0x21] sm:$0x1]
  %v52 = vld [vmem:[%s1 + $0x22] sm:$0x1]
  %v53 = vld [vmem:[%s1 + $0x23] sm:$0x1]
  %v54 = vld [vmem:[%s1 + $0x24] sm:$0x1]
  %v55 = vld [vmem:[%s1 + $0x25] sm:$0x1]
  %v56 = vld [vmem:[%s1 + $0x26] sm:$0x1]
  %v57 = vld [vmem:[%s1 + $0x27] sm:$0x1]
  %v58 = vld [vmem:[%s1 + $0x28] sm:$0x1]
  %v59 = vld [vmem:[%s1 + $0x29] sm:$0x1]
  %v60 = vld [vmem:[%s1 + $0x2a] sm:$0x1]
  %v61 = vld [vmem:[%s1 + $0x2b] sm:$0x1]
  %v62 = vld [vmem:[%s1 + $0x2c] sm:$0x1]
  %v63 = vld [vmem:[%s1 + $0x2d] sm:$0x1]
  %v64 = vld [vmem:[%s1 + $0x2e] sm:$0x1]
  %v65 = vld [vmem:[%s1 + $0x2f] sm:$0x1]
  %v66 = vld [vmem:[%s1 + $0x30] sm:$0x1]
  %v67 = vld [vmem:[%s1 + $0x31] sm:$0x1]
  %v68 = vld [vmem:[%s1 + $0x32] sm:$0x1]
  %v69 = vld [vmem:[%s1 + $0x33] sm:$0x1]
  %v70 = vld [vmem:[%s1 + $0x34] sm:$0x1]
  %v71 = vld [vmem:[%s1 + $0x35] sm:$0x1]
  %v72 = vld [vmem:[%s1 + $0x36] sm:$0x1]
  %v73 = vld [vmem:[%s1 + $0x37] sm:$0x1]
  %v74 = vld [vmem:[%s1 + $0x38] sm:$0x1]
  %v75 = vld [vmem:[%s1 + $0x39] sm:$0x1]
  %v76 = vld [vmem:[%s1 + $0x3a] sm:$0x1]
  %v77 = vld [vmem:[%s1 + $0x3b] sm:$0x1]
  %v78 = vld [vmem:[%s1 + $0x3c] sm:$0x1]
  %v79 = vld [vmem:[%s1 + $0x3d] sm:$0x1]
  %v80 = vld [vmem:[%s1 + $0x3e] sm:$0x1]
  %v81 = vld [vmem:[%s1 + $0x3f] sm:$0x1]
  %v82 = vld [vmem:[%s1 + $0x40] sm:$0x1]
  %v83 = vld [vmem:[%s1 + $0x41] sm:$0x1]
  %v84 = vld [vmem:[%s1 + $0x42] sm:$0x1]
  %v85 = vld [vmem:[%s1 + $0x43] sm:$0x1]
  %v86 = vld [vmem:[%s1 + $0x44] sm:$0x1]
  %v87 = vld [vmem:[%s1 + $0x45] sm:$0x1]
  %v88 = vld [vmem:[%s1 + $0x46] sm:$0x1]
  %v89 = vld [vmem:[%s1 + $0x47] sm:$0x1]
  %v90 = vld [vmem:[%s1 + $0x48] sm:$0x1]
  %v91 = vld [vmem:[%s1 + $0x49] sm:$0x1]
  %v92 = vld [vmem:[%s1 + $0x4a] sm:$0x1]
  %v93 = vld [vmem:[%s1 + $0x4b] sm:$0x1]
  %v94 = vld [vmem:[%s1 + $0x4c] sm:$0x1]
  %v95 = vld [vmem:[%s1 + $0x4d] sm:$0x1]
  %v96 = vld [vmem:[%s1 + $0x4e] sm:$0x1]
  %v97 = vld [vmem:[%s1 + $0x4f] sm:$0x1]
  %v98 = vld [vmem:[%s1 + $0x50] sm:$0x1]
  %v99 = vld [vmem:[%s1 + $0x51] sm:$0x1]
  %v100 = vld [vmem:[%s1 + $0x52] sm:$0x1]
  %v101 = vld [vmem:[%s1 + $0x53] sm:$0x1]
  %v102 = vld [vmem:[%s1 + $0x54] sm:$0x1]
  %v103 = vld [vmem:[%s1 + $0x55] sm:$0x1]
  %v104 = vld [vmem:[%s1 + $0x56] sm:$0x1]
  %v105 = vld [vmem:[%s1 + $0x57] sm:$0x1]
  %v106 = vld [vmem:[%s1 + $0x58] sm:$0x1]
  %v107 = vld [vmem:[%s1 + $0x59] sm:$0x1]
  %v108 = vld [vmem:[%s1 + $0x5a] sm:$0x1]
  %v109 = vld [vmem:[%s1 + $0x5b] sm:$0x1]
  %v110 = vld [vmem:[%s1 + $0x5c] sm:$0x1]
  %v111 = vld [vmem:[%s1 + $0x5d] sm:$0x1]
  %v112 = vld [vmem:[%s1 + $0x5e] sm:$0x1]
  %v113 = vld [vmem:[%s1 + $0x5f] sm:$0x1]
  %v114 = vld [vmem:[%s1 + $0x60] sm:$0x1]
  %v115 = vld [vmem:[%s1 + $0x61] sm:$0x1]
  %v116 = vld [vmem:[%s1 + $0x62] sm:$0x1]
  %v117 = vld [vmem:[%s1 + $0x63] sm:$0x1]
  %v118 = vld [vmem:[%s1 + $0x64] sm:$0x1]
  %v119 = vld [vmem:[%s1 + $0x65] sm:$0x1]
  %v120 = vld [vmem:[%s1 + $0x66] sm:$0x1]
  %v121 = vld [vmem:[%s1 + $0x67] sm:$0x1]
  %v122 = vld [vmem:[%s1 + $0x68] sm:$0x1]
  %v123 = vld [vmem:[%s1 + $0x69] sm:$0x1]
  %v124 = vld [vmem:[%s1 + $0x6a] sm:$0x1]
  %v125 = vld [vmem:[%s1 + $0x6b] sm:$0x1]
  %v126 = vld [vmem:[%s1 + $0x6c] sm:$0x1]
  %v127 = vld [vmem:[%s1 + $0x6d] sm:$0x1]
  %v128 = vld [vmem:[%s1 + $0x6e] sm:$0x1]
  %v129 = vld [vmem:[%s1 + $0x6f] sm:$0x1]
  %v130 = vld [vmem:[%s1 + $0x70] sm:$0x1]
  %v131 = vld [vmem:[%s1 + $0x71] sm:$0x1]
  %v132 = vld [vmem:[%s1 + $0x72] sm:$0x1]
  %v133 = vld [vmem:[%s1 + $0x73] sm:$0x1]
  %v134 = vld [vmem:[%s1 + $0x74] sm:$0x1]
  %v135 = vld [vmem:[%s1 + $0x75] sm:$0x1]
  %v136 = vld [vmem:[%s1 + $0x76] sm:$0x1]
  %v137 = vld [vmem:[%s1 + $0x77] sm:$0x1]
  %v138 = vld [vmem:[%s1 + $0x78] sm:$0x1]
  %v139 = vld [vmem:[%s1 + $0x79] sm:$0x1]
  %v140 = vld [vmem:[%s1 + $0x7a] sm:$0x1]
  %v141 = vld [vmem:[%s1 + $0x7b] sm:$0x1]
  %v142 = vld [vmem:[%s1 + $0x7c] sm:$0x1]
  %v143 = vld [vmem:[%s1 + $0x7d] sm:$0x1]
  %v144 = vld [vmem:[%s1 + $0x7e] sm:$0x1]
  %v145 = vld [vmem:[%s1 + $0x7f] sm:$0x1]
  %v146 = vld [vmem:[%s1 + $0x80] sm:$0x1]
  %v147 = vld [vmem:[%s1 + $0x81] sm:$0x1]
  %v148 = vld [vmem:[%s1 + $0x82] sm:$0x1]
  %v149 = vld [vmem:[%s1 + $0x83] sm:$0x1]
  %v150 = vld [vmem:[%s1 + $0x84] sm:$0x1]
  %v151 = vld [vmem:[%s1 + $0x85] sm:$0x1]
  %v152 = vld [vmem:[%s1 + $0x86] sm:$0x1]
  %v153 = vld [vmem:[%s1 + $0x87] sm:$0x1]
  %v154 = vld [vmem:[%s1 + $0x88] sm:$0x1]
  %v155 = vld [vmem:[%s1 + $0x89] sm:$0x1]
  %v156 = vld [vmem:[%s1 + $0x8a] sm:$0x1]
  %v157 = vld [vmem:[%s1 + $0x8b] sm:$0x1]
  %v158 = vld [vmem:[%s1 + $0x8c] sm:$0x1]
  %v159 = vld [vmem:[%s1 + $0x8d] sm:$0x1]
  %v160 = vld [vmem:[%s1 + $0x8e] sm:$0x1]
  %v161 = vld [vmem:[%s1 + $0x8f] sm:$0x1]
  %v162 = vld [vmem:[%s1 + $0x90] sm:$0x1]
  %v163 = vld [vmem:[%s1 + $0x91] sm:$0x1]
  %v164 = vld [vmem:[%s1 + $0x92] sm:$0x1]
  %v165 = vld [vmem:[%s1 + $0x93] sm:$0x1]
  %v166 = vld [vmem:[%s1 + $0x94] sm:$0x1]
  %v167 = vld [vmem:[%s1 + $0x95] sm:$0x1]
  %v168 = vld [vmem:[%s1 + $0x96] sm:$0x1]
  %v169 = vld [vmem:[%s1 + $0x97] sm:$0x1]
  %v170 = vld [vmem:[%s1 + $0x98] sm:$0x1]
  %v171 = vld [vmem:[%s1 + $0x99] sm:$0x1]
  %v172 = vld [vmem:[%s1 + $0x9a] sm:$0x1]
  %v173 = vld [vmem:[%s1 + $0x9b] sm:$0x1]
  %v174 = vld [vmem:[%s1 + $0x9c] sm:$0x1]
  %v175 = vld [vmem:[%s1 + $0x9d] sm:$0x1]
  %v176 = vld [vmem:[%s1 + $0x9e] sm:$0x1]
  %v177 = vld [vmem:[%s1 + $0x9f] sm:$0x1]
  %v178 = vld [vmem:[%s1 + $0xa0] sm:$0x1]
  %v179 = vld [vmem:[%s1 + $0xa1] sm:$0x1]
  %v180 = vld [vmem:[%s1 + $0xa2] sm:$0x1]
  %v181 = vld [vmem:[%s1 + $0xa3] sm:$0x1]
  %v182 = vld [vmem:[%s1 + $0xa4] sm:$0x1]
  %v183 = vld [vmem:[%s1 + $0xa5] sm:$0x1]
  %v184 = vld [vmem:[%s1 + $0xa6] sm:$0x1]
  %v185 = vld [vmem:[%s1 + $0xa7] sm:$0x1]
  %v186 = vld [vmem:[%s1 + $0xa8] sm:$0x1]
  %v187 = vld [vmem:[%s1 + $0xa9] sm:$0x1]
  %v188 = vld [vmem:[%s1 + $0xaa] sm:$0x1]
  %v189 = vld [vmem:[%s1 + $0xab] sm:$0x1]
  %v190 = vld [vmem:[%s1 + $0xac] sm:$0x1]
  %v191 = vld [vmem:[%s1 + $0xad] sm:$0x1]
  %v192 = vld [vmem:[%s1 + $0xae] sm:$0x1]
  %v193 = vld [vmem:[%s1 + $0xaf] sm:$0x1]
  %v194 = vld [vmem:[%s1 + $0xb0] sm:$0x1]
  %v195 = vld [vmem:[%s1 + $0xb1] sm:$0x1]
  %v196 = vld [vmem:[%s1 + $0xb2] sm:$0x1]
  %v197 = vld [vmem:[%s1 + $0xb3] sm:$0x1]
  %v198 = vld [vmem:[%s1 + $0xb4] sm:$0x1]
  %v199 = vld [vmem:[%s1 + $0xb5] sm:$0x1]
  %v200 = vld [vmem:[%s1 + $0xb6] sm:$0x1]
  %v201 = vld [vmem:[%s1 + $0xb7] sm:$0x1]
  %v202 = vld [vmem:[%s1 + $0xb8] sm:$0x1]
  %v203 = vld [vmem:[%s1 + $0xb9] sm:$0x1]
  %v204 = vld [vmem:[%s1 + $0xba] sm:$0x1]
  %v205 = vld [vmem:[%s1 + $0xbb] sm:$0x1]
  %v206 = vld [vmem:[%s1 + $0xbc] sm:$0x1]
  %v207 = vld [vmem:[%s1 + $0xbd] sm:$0x1]
  %v208 = vld [vmem:[%s1 + $0xbe] sm:$0x1]
  %v209 = vld [vmem:[%s1 + $0xbf] sm:$0x1]
  %v210 = vld [vmem:[%s1 + $0xc0] sm:$0x1]
  %v211 = vld [vmem:[%s1 + $0xc1] sm:$0x1]
  %v212 = vld [vmem:[%s1 + $0xc2] sm:$0x1]
  %v213 = vld [vmem:[%s1 + $0xc3] sm:$0x1]
  %v214 = vld [vmem:[%s1 + $0xc4] sm:$0x1]
  %v215 = vld [vmem:[%s1 + $0xc5] sm:$0x1]
  %v216 = vld [vmem:[%s1 + $0xc6] sm:$0x1]
  %v217 = vld [vmem:[%s1 + $0xc7] sm:$0x1]
  %v218 = vld [vmem:[%s1 + $0xc8] sm:$0x1]
  %v219 = vld [vmem:[%s1 + $0xc9] sm:$0x1]
  %v220 = vld [vmem:[%s1 + $0xca] sm:$0x1]
  %v221 = vld [vmem:[%s1 + $0xcb] sm:$0x1]
  %v222 = vld [vmem:[%s1 + $0xcc] sm:$0x1]
  %v223 = vld [vmem:[%s1 + $0xcd] sm:$0x1]
  %v224 = vld [vmem:[%s1 + $0xce] sm:$0x1]
  %v225 = vld [vmem:[%s1 + $0xcf] sm:$0x1]
  %v226 = vld [vmem:[%s1 + $0xd0] sm:$0x1]
  %v227 = vld [vmem:[%s1 + $0xd1] sm:$0x1]
  %v228 = vld [vmem:[%s1 + $0xd2] sm:$0x1]
  %v229 = vld [vmem:[%s1 + $0xd3] sm:$0x1]
  %v230 = vld [vmem:[%s1 + $0xd4] sm:$0x1]
  %v231 = vld [vmem:[%s1 + $0xd5] sm:$0x1]
  %v232 = vld [vmem:[%s1 + $0xd6] sm:$0x1]
  %v233 = vld [vmem:[%s1 + $0xd7] sm:$0x1]
  %v234 = vld [vmem:[%s1 + $0xd8] sm:$0x1]
  %v235 = vld [vmem:[%s1 + $0xd9] sm:$0x1]
  %v236 = vld [vmem:[%s1 + $0xda] sm:$0x1]
  %v237 = vld [vmem:[%s1 + $0xdb] sm:$0x1]
  %v238 = vld [vmem:[%s1 + $0xdc] sm:$0x1]
  %v239 = vld [vmem:[%s1 + $0xdd] sm:$0x1]
  %v240 = vld [vmem:[%s1 + $0xde] sm:$0x1]
  %v241 = vld [vmem:[%s1 + $0xdf] sm:$0x1]
  %v242 = vld [vmem:[%s1 + $0xe0] sm:$0x1]
  %v243 = vld [vmem:[%s1 + $0xe1] sm:$0x1]
  %v244 = vld [vmem:[%s1 + $0xe2] sm:$0x1]
  %v245 = vld [vmem:[%s1 + $0xe3] sm:$0x1]
  %v246 = vld [vmem:[%s1 + $0xe4] sm:$0x1]
  %v247 = vld [vmem:[%s1 + $0xe5] sm:$0x1]
  %v248 = vld [vmem:[%s1 + $0xe6] sm:$0x1]
  %v249 = vld [vmem:[%s1 + $0xe7] sm:$0x1]
  %v250 = vld [vmem:[%s1 + $0xe8] sm:$0x1]
  %v251 = vld [vmem:[%s1 + $0xe9] sm:$0x1]
  %v252 = vld [vmem:[%s1 + $0xea] sm:$0x1]
  %v253 = vld [vmem:[%s1 + $0xeb] sm:$0x1]
  %v254 = vld [vmem:[%s1 + $0xec] sm:$0x1]
  %v255 = vld [vmem:[%s1 + $0xed] sm:$0x1]
  %v256 = vld [vmem:[%s1 + $0xee] sm:$0x1]
  %v257 = vld [vmem:[%s1 + $0xef] sm:$0x1]
  %v258 = vld [vmem:[%s1 + $0xf0] sm:$0x1]
  %v259 = vld [vmem:[%s1 + $0xf1] sm:$0x1]
  %v260 = vld [vmem:[%s1 + $0xf2] sm:$0x1]
  %v261 = vld [vmem:[%s1 + $0xf3] sm:$0x1]
  %v262 = vld [vmem:[%s1 + $0xf4] sm:$0x1]
  %v263 = vld [vmem:[%s1 + $0xf5] sm:$0x1]
  %v264 = vld [vmem:[%s1 + $0xf6] sm:$0x1]
  %v265 = vld [vmem:[%s1 + $0xf7] sm:$0x1]
  %v266 = vld [vmem:[%s1 + $0xf8] sm:$0x1]
  %v267 = vld [vmem:[%s1 + $0xf9] sm:$0x1]
  %v268 = vld [vmem:[%s1 + $0xfa] sm:$0x1]
  %v269 = vld [vmem:[%s1 + $0xfb] sm:$0x1]
  %v270 = vld [vmem:[%s1 + $0xfc] sm:$0x1]
  %v271 = vld [vmem:[%s1 + $0xfd] sm:$0x1]
  %v272 = vld [vmem:[%s1 + $0xfe] sm:$0x1]
  %v273 = vld [vmem:[%s1 + $0xff] sm:$0x1]
  %v274 = vld [vmem:[%s1 + $0x100] sm:$0x1]
  %v275 = vld [vmem:[%s1 + $0x101] sm:$0x1]
  %v276 = vld [vmem:[%s1 + $0x102] sm:$0x1]
  %v277 = vld [vmem:[%s1 + $0x103] sm:$0x1]
  %v278 = vld [vmem:[%s1 + $0x104] sm:$0x1]
  %v279 = vld [vmem:[%s1 + $0x105] sm:$0x1]
  %v280 = vld [vmem:[%s1 + $0x106] sm:$0x1]
  %v281 = vld [vmem:[%s1 + $0x107] sm:$0x1]
  %v282 = vld [vmem:[%s1 + $0x108] sm:$0x1]
  %v283 = vld [vmem:[%s1 + $0x109] sm:$0x1]
  %v284 = vld [vmem:[%s1 + $0x10a] sm:$0x1]
  %v285 = vld [vmem:[%s1 + $0x10b] sm:$0x1]
  %v286 = vld [vmem:[%s1 + $0x10c] sm:$0x1]
  %v287 = vld [vmem:[%s1 + $0x10d] sm:$0x1]
  %v288 = vld [vmem:[%s1 + $0x10e] sm:$0x1]
  %v289 = vld [vmem:[%s1 + $0x10f] sm:$0x1]
  %v290 = vld [vmem:[%s1 + $0x110] sm:$0x1]
  %v291 = vld [vmem:[%s1 + $0x111] sm:$0x1]
  %v292 = vld [vmem:[%s1 + $0x112] sm:$0x1]
  %v293 = vld [vmem:[%s1 + $0x113] sm:$0x1]
  %v294 = vld [vmem:[%s1 + $0x114] sm:$0x1]
  %v295 = vld [vmem:[%s1 + $0x115] sm:$0x1]
  %v296 = vld [vmem:[%s1 + $0x116] sm:$0x1]
  %v297 = vld [vmem:[%s1 + $0x117] sm:$0x1]
  %v298 = vld [vmem:[%s1 + $0x118] sm:$0x1]
  %v299 = vld [vmem:[%s1 + $0x119] sm:$0x1]
  %v300 = vld [vmem:[%s1 + $0x11a] sm:$0x1]
  %v301 = vld [vmem:[%s1 + $0x11b] sm:$0x1]
  %v302 = vld [vmem:[%s1 + $0x11c] sm:$0x1]
  %v303 = vld [vmem:[%s1 + $0x11d] sm:$0x1]
  %v304 = vld [vmem:[%s1 + $0x11e] sm:$0x1]
  %v305 = vld [vmem:[%s1 + $0x11f] sm:$0x1]
  %v306 = vld [vmem:[%s1 + $0x120] sm:$0x1]
  %v307 = vld [vmem:[%s1 + $0x121] sm:$0x1]
  %v308 = vld [vmem:[%s1 + $0x122] sm:$0x1]
  %v309 = vld [vmem:[%s1 + $0x123] sm:$0x1]
  %v310 = vld [vmem:[%s1 + $0x124] sm:$0x1]
  %v311 = vld [vmem:[%s1 + $0x125] sm:$0x1]
  %v312 = vld [vmem:[%s1 + $0x126] sm:$0x1]
  %v313 = vld [vmem:[%s1 + $0x127] sm:$0x1]
  %v314 = vld [vmem:[%s1 + $0x128] sm:$0x1]
  %v315 = vld [vmem:[%s1 + $0x129] sm:$0x1]
  %v316 = vld [vmem:[%s1 + $0x12a] sm:$0x1]
  %v317 = vld [vmem:[%s1 + $0x12b] sm:$0x1]
  %v318 = vld [vmem:[%s1 + $0x12c] sm:$0x1]
  %v319 = vld [vmem:[%s1 + $0x12d] sm:$0x1]
  %v320 = vld [vmem:[%s1 + $0x12e] sm:$0x1]
  %v321 = vld [vmem:[%s1 + $0x12f] sm:$0x1]
  %v322 = vld [vmem:[%s1 + $0x130] sm:$0x1]
  %v323 = vld [vmem:[%s1 + $0x131] sm:$0x1]
  %v324 = vld [vmem:[%s1 + $0x132] sm:$0x1]
  %v325 = vld [vmem:[%s1 + $0x133] sm:$0x1]
  %v326 = vld [vmem:[%s1 + $0x134] sm:$0x1]
  %v327 = vld [vmem:[%s1 + $0x135] sm:$0x1]
  %v328 = vld [vmem:[%s1 + $0x136] sm:$0x1]
  %v329 = vld [vmem:[%s1 + $0x137] sm:$0x1]
  %v330 = vld [vmem:[%s1 + $0x138] sm:$0x1]
  %v331 = vld [vmem:[%s1 + $0x139] sm:$0x1]
  %v332 = vld [vmem:[%s1 + $0x13a] sm:$0x1]
  %v333 = vld [vmem:[%s1 + $0x13b] sm:$0x1]
  %v334 = vld [vmem:[%s1 + $0x13c] sm:$0x1]
  %v335 = vld [vmem:[%s1 + $0x13d] sm:$0x1]
  %v336 = vld [vmem:[%s1 + $0x13e] sm:$0x1]
  %v337 = vld [vmem:[%s1 + $0x13f] sm:$0x1]
  %v338 = vld [vmem:[%s1 + $0x140] sm:$0x1]
  %v339 = vld [vmem:[%s1 + $0x141] sm:$0x1]
  %v340 = vld [vmem:[%s1 + $0x142] sm:$0x1]
  %v341 = vld [vmem:[%s1 + $0x143] sm:$0x1]
  %v342 = vld [vmem:[%s2] sm:$0x1]
  %v343 = vld [vmem:[%s2 + $0x1] sm:$0x1]
  %v344 = vld [vmem:[%s2 + $0x2] sm:$0x1]
  %v345 = vld [vmem:[%s2 + $0x3] sm:$0x1]
  %v346 = vld [vmem:[%s2 + $0x4] sm:$0x1]
  %v347 = vld [vmem:[%s2 + $0x5] sm:$0x1]
  %v348 = vld [vmem:[%s2 + $0x6] sm:$0x1]
  %v349 = vld [vmem:[%s2 + $0x7] sm:$0x1]
  %v350 = vld [vmem:[%s2 + $0x8] sm:$0x1]
  %v351 = vld [vmem:[%s2 + $0x9] sm:$0x1]
  %v352 = vld [vmem:[%s2 + $0xa] sm:$0x1]
  %v353 = vld [vmem:[%s2 + $0xb] sm:$0x1]
  %v354 = vld [vmem:[%s2 + $0xc] sm:$0x1]
  %v355 = vld [vmem:[%s2 + $0xd] sm:$0x1]
  %v356 = vld [vmem:[%s2 + $0xe] sm:$0x1]
  %v357 = vld [vmem:[%s2 + $0xf] sm:$0x1]
  %v358 = vld [vmem:[%s2 + $0x10] sm:$0x1]
  %v359 = vld [vmem:[%s2 + $0x11] sm:$0x1]
  %v360 = vld [vmem:[%s2 + $0x12] sm:$0x1]
  %v361 = vld [vmem:[%s2 + $0x13] sm:$0x1]
  %v362 = vld [vmem:[%s2 + $0x14] sm:$0x1]
  %v363 = vld [vmem:[%s2 + $0x15] sm:$0x1]
  %v364 = vld [vmem:[%s2 + $0x16] sm:$0x1]
  %v365 = vld [vmem:[%s2 + $0x17] sm:$0x1]
  %v366 = vld [vmem:[%s2 + $0x18] sm:$0x1]
  %v367 = vld [vmem:[%s2 + $0x19] sm:$0x1]
  %v368 = vld [vmem:[%s2 + $0x1a] sm:$0x1]
  %v369 = vld [vmem:[%s2 + $0x1b] sm:$0x1]
  %v370 = vld [vmem:[%s2 + $0x1c] sm:$0x1]
  %v371 = vld [vmem:[%s2 + $0x1d] sm:$0x1]
  %v372 = vld [vmem:[%s2 + $0x1e] sm:$0x1]
  %v373 = vld [vmem:[%s2 + $0x1f] sm:$0x1]
  %v374 = vld [vmem:[%s2 + $0x20] sm:$0x1]
  %v375 = vld [vmem:[%s2 + $0x21] sm:$0x1]
  %v376 = vld [vmem:[%s2 + $0x22] sm:$0x1]
  %v377 = vld [vmem:[%s2 + $0x23] sm:$0x1]
  %v378 = vld [vmem:[%s2 + $0x24] sm:$0x1]
  %v379 = vld [vmem:[%s2 + $0x25] sm:$0x1]
  %v380 = vld [vmem:[%s2 + $0x26] sm:$0x1]
  %v381 = vld [vmem:[%s2 + $0x27] sm:$0x1]
  %v382 = vld [vmem:[%s2 + $0x28] sm:$0x1]
  %v383 = vld [vmem:[%s2 + $0x29] sm:$0x1]
  %v384 = vld [vmem:[%s2 + $0x2a] sm:$0x1]
  %v385 = vld [vmem:[%s2 + $0x2b] sm:$0x1]
  %v386 = vld [vmem:[%s2 + $0x2c] sm:$0x1]
  %v387 = vld [vmem:[%s2 + $0x2d] sm:$0x1]
  %v388 = vld [vmem:[%s2 + $0x2e] sm:$0x1]
  %v389 = vld [vmem:[%s2 + $0x2f] sm:$0x1]
  %v390 = vld [vmem:[%s2 + $0x30] sm:$0x1]
  %v391 = vld [vmem:[%s2 + $0x31] sm:$0x1]
  %v392 = vld [vmem:[%s2 + $0x32] sm:$0x1]
  %v393 = vld [vmem:[%s2 + $0x33] sm:$0x1]
  %v394 = vld [vmem:[%s2 + $0x34] sm:$0x1]
  %v395 = vld [vmem:[%s2 + $0x35] sm:$0x1]
  %v396 = vld [vmem:[%s2 + $0x36] sm:$0x1]
  %v397 = vld [vmem:[%s2 + $0x37] sm:$0x1]
  %v398 = vld [vmem:[%s2 + $0x38] sm:$0x1]
  %v399 = vld [vmem:[%s2 + $0x39] sm:$0x1]
  %v400 = vld [vmem:[%s2 + $0x3a] sm:$0x1]
  %v401 = vld [vmem:[%s2 + $0x3b] sm:$0x1]
  %v402 = vld [vmem:[%s2 + $0x3c] sm:$0x1]
  %v403 = vld [vmem:[%s2 + $0x3d] sm:$0x1]
  %v404 = vld [vmem:[%s2 + $0x3e] sm:$0x1]
  %v405 = vld [vmem:[%s2 + $0x3f] sm:$0x1]
  %v406 = vld [vmem:[%s2 + $0x40] sm:$0x1]
  %v407 = vld [vmem:[%s2 + $0x41] sm:$0x1]
  %v408 = vld [vmem:[%s2 + $0x42] sm:$0x1]
  %v409 = vld [vmem:[%s2 + $0x43] sm:$0x1]
  %v410 = vld [vmem:[%s2 + $0x44] sm:$0x1]
  %v411 = vld [vmem:[%s2 + $0x45] sm:$0x1]
  %v412 = vld [vmem:[%s2 + $0x46] sm:$0x1]
  %v413 = vld [vmem:[%s2 + $0x47] sm:$0x1]
  %v414 = vld [vmem:[%s2 + $0x48] sm:$0x1]
  %v415 = vld [vmem:[%s2 + $0x49] sm:$0x1]
  %v416 = vld [vmem:[%s2 + $0x4a] sm:$0x1]
  %v417 = vld [vmem:[%s2 + $0x4b] sm:$0x1]
  %v418 = vld [vmem:[%s2 + $0x4c] sm:$0x1]
  %v419 = vld [vmem:[%s2 + $0x4d] sm:$0x1]
  %v420 = vld [vmem:[%s2 + $0x4e] sm:$0x1]
  %v421 = vld [vmem:[%s2 + $0x4f] sm:$0x1]
  %v422 = vld [vmem:[%s2 + $0x50] sm:$0x1]
  %v423 = vld [vmem:[%s2 + $0x51] sm:$0x1]
  %v424 = vld [vmem:[%s2 + $0x52] sm:$0x1]
  %v425 = vld [vmem:[%s2 + $0x53] sm:$0x1]
  %v426 = vld [vmem:[%s2 + $0x54] sm:$0x1]
  %v427 = vld [vmem:[%s2 + $0x55] sm:$0x1]
  %v428 = vld [vmem:[%s2 + $0x56] sm:$0x1]
  %v429 = vld [vmem:[%s2 + $0x57] sm:$0x1]
  %v430 = vld [vmem:[%s2 + $0x58] sm:$0x1]
  %v431 = vld [vmem:[%s2 + $0x59] sm:$0x1]
  %v432 = vld [vmem:[%s2 + $0x5a] sm:$0x1]
  %v433 = vld [vmem:[%s2 + $0x5b] sm:$0x1]
  %v434 = vld [vmem:[%s2 + $0x5c] sm:$0x1]
  %v435 = vld [vmem:[%s2 + $0x5d] sm:$0x1]
  %v436 = vld [vmem:[%s2 + $0x5e] sm:$0x1]
  %v437 = vld [vmem:[%s2 + $0x5f] sm:$0x1]
  %v438 = vld [vmem:[%s2 + $0x60] sm:$0x1]
  %v439 = vld [vmem:[%s2 + $0x61] sm:$0x1]
  %v440 = vld [vmem:[%s2 + $0x62] sm:$0x1]
  %v441 = vld [vmem:[%s2 + $0x63] sm:$0x1]
  %v442 = vld [vmem:[%s2 + $0x64] sm:$0x1]
  %v443 = vld [vmem:[%s2 + $0x65] sm:$0x1]
  %v444 = vld [vmem:[%s2 + $0x66] sm:$0x1]
  %v445 = vld [vmem:[%s2 + $0x67] sm:$0x1]
  %v446 = vld [vmem:[%s2 + $0x68] sm:$0x1]
  %v447 = vld [vmem:[%s2 + $0x69] sm:$0x1]
  %v448 = vld [vmem:[%s2 + $0x6a] sm:$0x1]
  %v449 = vld [vmem:[%s2 + $0x6b] sm:$0x1]
  %v450 = vld [vmem:[%s2 + $0x6c] sm:$0x1]
  %v451 = vld [vmem:[%s2 + $0x6d] sm:$0x1]
  %v452 = vld [vmem:[%s2 + $0x6e] sm:$0x1]
  %v453 = vld [vmem:[%s2 + $0x6f] sm:$0x1]
  %v454 = vld [vmem:[%s2 + $0x70] sm:$0x1]
  %v455 = vld [vmem:[%s2 + $0x71] sm:$0x1]
  %v456 = vld [vmem:[%s2 + $0x72] sm:$0x1]
  %v457 = vld [vmem:[%s2 + $0x73] sm:$0x1]
  %v458 = vld [vmem:[%s2 + $0x74] sm:$0x1]
  %v459 = vld [vmem:[%s2 + $0x75] sm:$0x1]
  %v460 = vld [vmem:[%s2 + $0x76] sm:$0x1]
  %v461 = vld [vmem:[%s2 + $0x77] sm:$0x1]
  %v462 = vld [vmem:[%s2 + $0x78] sm:$0x1]
  %v463 = vld [vmem:[%s2 + $0x79] sm:$0x1]
  %v464 = vld [vmem:[%s2 + $0x7a] sm:$0x1]
  %v465 = vld [vmem:[%s2 + $0x7b] sm:$0x1]
  %v466 = vld [vmem:[%s2 + $0x7c] sm:$0x1]
  %v467 = vld [vmem:[%s2 + $0x7d] sm:$0x1]
  %v468 = vld [vmem:[%s2 + $0x7e] sm:$0x1]
  %v469 = vld [vmem:[%s2 + $0x7f] sm:$0x1]
  %v470 = vld [vmem:[%s2 + $0x80] sm:$0x1]
  %v471 = vld [vmem:[%s2 + $0x81] sm:$0x1]
  %v472 = vld [vmem:[%s2 + $0x82] sm:$0x1]
  %v473 = vld [vmem:[%s2 + $0x83] sm:$0x1]
  %v474 = vld [vmem:[%s2 + $0x84] sm:$0x1]
  %v475 = vld [vmem:[%s2 + $0x85] sm:$0x1]
  %v476 = vld [vmem:[%s2 + $0x86] sm:$0x1]
  %v477 = vld [vmem:[%s2 + $0x87] sm:$0x1]
  %v478 = vld [vmem:[%s2 + $0x88] sm:$0x1]
  %v479 = vld [vmem:[%s2 + $0x89] sm:$0x1]
  %v480 = vld [vmem:[%s2 + $0x8a] sm:$0x1]
  %v481 = vld [vmem:[%s2 + $0x8b] sm:$0x1]
  %v482 = vld [vmem:[%s2 + $0x8c] sm:$0x1]
  %v483 = vld [vmem:[%s2 + $0x8d] sm:$0x1]
  %v484 = vld [vmem:[%s2 + $0x8e] sm:$0x1]
  %v485 = vld [vmem:[%s2 + $0x8f] sm:$0x1]
  %v486 = vld [vmem:[%s2 + $0x90] sm:$0x1]
  %v487 = vld [vmem:[%s2 + $0x91] sm:$0x1]
  %v488 = vld [vmem:[%s2 + $0x92] sm:$0x1]
  %v489 = vld [vmem:[%s2 + $0x93] sm:$0x1]
  %v490 = vld [vmem:[%s2 + $0x94] sm:$0x1]
  %v491 = vld [vmem:[%s2 + $0x95] sm:$0x1]
  %v492 = vld [vmem:[%s2 + $0x96] sm:$0x1]
  %v493 = vld [vmem:[%s2 + $0x97] sm:$0x1]
  %v494 = vld [vmem:[%s2 + $0x98] sm:$0x1]
  %v495 = vld [vmem:[%s2 + $0x99] sm:$0x1]
  %v496 = vld [vmem:[%s2 + $0x9a] sm:$0x1]
  %v497 = vld [vmem:[%s2 + $0x9b] sm:$0x1]
  %v498 = vld [vmem:[%s2 + $0x9c] sm:$0x1]
  %v499 = vld [vmem:[%s2 + $0x9d] sm:$0x1]
  %v500 = vld [vmem:[%s2 + $0x9e] sm:$0x1]
  %v501 = vld [vmem:[%s2 + $0x9f] sm:$0x1]
  %v502 = vld [vmem:[%s2 + $0xa0] sm:$0x1]
  %v503 = vld [vmem:[%s2 + $0xa1] sm:$0x1]
  %v504 = vld [vmem:[%s2 + $0xa2] sm:$0x1]
  %v505 = vld [vmem:[%s2 + $0xa3] sm:$0x1]
  %v506 = vld [vmem:[%s2 + $0xa4] sm:$0x1]
  %v507 = vld [vmem:[%s2 + $0xa5] sm:$0x1]
  %v508 = vld [vmem:[%s2 + $0xa6] sm:$0x1]
  %v509 = vld [vmem:[%s2 + $0xa7] sm:$0x1]
  %v510 = vld [vmem:[%s2 + $0xa8] sm:$0x1]
  %v511 = vld [vmem:[%s2 + $0xa9] sm:$0x1]
  %v512 = vld [vmem:[%s2 + $0xaa] sm:$0x1]
  %v513 = vld [vmem:[%s2 + $0xab] sm:$0x1]
  %v514 = vld [vmem:[%s2 + $0xac] sm:$0x1]
  %v515 = vld [vmem:[%s2 + $0xad] sm:$0x1]
  %v516 = vld [vmem:[%s2 + $0xae] sm:$0x1]
  %v517 = vld [vmem:[%s2 + $0xaf] sm:$0x1]
  %v518 = vld [vmem:[%s2 + $0xb0] sm:$0x1]
  %v519 = vld [vmem:[%s2 + $0xb1] sm:$0x1]
  %v520 = vld [vmem:[%s2 + $0xb2] sm:$0x1]
  %v521 = vld [vmem:[%s2 + $0xb3] sm:$0x1]
  %v522 = vld [vmem:[%s2 + $0xb4] sm:$0x1]
  %v523 = vld [vmem:[%s2 + $0xb5] sm:$0x1]
  %v524 = vld [vmem:[%s2 + $0xb6] sm:$0x1]
  %v525 = vld [vmem:[%s2 + $0xb7] sm:$0x1]
  %v526 = vld [vmem:[%s2 + $0xb8] sm:$0x1]
  %v527 = vld [vmem:[%s2 + $0xb9] sm:$0x1]
  %v528 = vld [vmem:[%s2 + $0xba] sm:$0x1]
  %v529 = vld [vmem:[%s2 + $0xbb] sm:$0x1]
  %v530 = vld [vmem:[%s2 + $0xbc] sm:$0x1]
  %v531 = vld [vmem:[%s2 + $0xbd] sm:$0x1]
  %v532 = vld [vmem:[%s2 + $0xbe] sm:$0x1]
  %v533 = vld [vmem:[%s2 + $0xbf] sm:$0x1]
  %v534 = vld [vmem:[%s2 + $0xc0] sm:$0x1]
  %v535 = vld [vmem:[%s2 + $0xc1] sm:$0x1]
  %v536 = vld [vmem:[%s2 + $0xc2] sm:$0x1]
  %v537 = vld [vmem:[%s2 + $0xc3] sm:$0x1]
  %v538 = vld [vmem:[%s2 + $0xc4] sm:$0x1]
  %v539 = vld [vmem:[%s2 + $0xc5] sm:$0x1]
  %v540 = vld [vmem:[%s2 + $0xc6] sm:$0x1]
  %v541 = vld [vmem:[%s2 + $0xc7] sm:$0x1]
  %v542 = vld [vmem:[%s2 + $0xc8] sm:$0x1]
  %v543 = vld [vmem:[%s2 + $0xc9] sm:$0x1]
  %v544 = vld [vmem:[%s2 + $0xca] sm:$0x1]
  %v545 = vld [vmem:[%s2 + $0xcb] sm:$0x1]
  %v546 = vld [vmem:[%s2 + $0xcc] sm:$0x1]
  %v547 = vld [vmem:[%s2 + $0xcd] sm:$0x1]
  %v548 = vld [vmem:[%s2 + $0xce] sm:$0x1]
  %v549 = vld [vmem:[%s2 + $0xcf] sm:$0x1]
  %v550 = vld [vmem:[%s2 + $0xd0] sm:$0x1]
  %v551 = vld [vmem:[%s2 + $0xd1] sm:$0x1]
  %v552 = vld [vmem:[%s2 + $0xd2] sm:$0x1]
  %v553 = vld [vmem:[%s2 + $0xd3] sm:$0x1]
  %v554 = vld [vmem:[%s2 + $0xd4] sm:$0x1]
  %v555 = vld [vmem:[%s2 + $0xd5] sm:$0x1]
  %v556 = vld [vmem:[%s2 + $0xd6] sm:$0x1]
  %v557 = vld [vmem:[%s2 + $0xd7] sm:$0x1]
  %v558 = vld [vmem:[%s2 + $0xd8] sm:$0x1]
  %v559 = vld [vmem:[%s2 + $0xd9] sm:$0x1]
  %v560 = vld [vmem:[%s2 + $0xda] sm:$0x1]
  %v561 = vld [vmem:[%s2 + $0xdb] sm:$0x1]
  %v562 = vld [vmem:[%s2 + $0xdc] sm:$0x1]
  %v563 = vld [vmem:[%s2 + $0xdd] sm:$0x1]
  %v564 = vld [vmem:[%s2 + $0xde] sm:$0x1]
  %v565 = vld [vmem:[%s2 + $0xdf] sm:$0x1]
  %v566 = vld [vmem:[%s2 + $0xe0] sm:$0x1]
  %v567 = vld [vmem:[%s2 + $0xe1] sm:$0x1]
  %v568 = vld [vmem:[%s2 + $0xe2] sm:$0x1]
  %v569 = vld [vmem:[%s2 + $0xe3] sm:$0x1]
  %v570 = vld [vmem:[%s2 + $0xe4] sm:$0x1]
  %v571 = vld [vmem:[%s2 + $0xe5] sm:$0x1]
  %v572 = vld [vmem:[%s2 + $0xe6] sm:$0x1]
  %v573 = vld [vmem:[%s2 + $0xe7] sm:$0x1]
  %v574 = vld [vmem:[%s2 + $0xe8] sm:$0x1]
  %v575 = vld [vmem:[%s2 + $0xe9] sm:$0x1]
  %v576 = vld [vmem:[%s2 + $0xea] sm:$0x1]
  %v577 = vld [vmem:[%s2 + $0xeb] sm:$0x1]
  %v578 = vld [vmem:[%s2 + $0xec] sm:$0x1]
  %v579 = vld [vmem:[%s2 + $0xed] sm:$0x1]
  %v580 = vld [vmem:[%s2 + $0xee] sm:$0x1]
  %v581 = vld [vmem:[%s2 + $0xef] sm:$0x1]
  %v582 = vld [vmem:[%s2 + $0xf0] sm:$0x1]
  %v583 = vld [vmem:[%s2 + $0xf1] sm:$0x1]
  %v584 = vld [vmem:[%s2 + $0xf2] sm:$0x1]
  %v585 = vld [vmem:[%s2 + $0xf3] sm:$0x1]
  %v586 = vld [vmem:[%s2 + $0xf4] sm:$0x1]
  %v587 = vld [vmem:[%s2 + $0xf5] sm:$0x1]
  %v588 = vld [vmem:[%s2 + $0xf6] sm:$0x1]
  %v589 = vld [vmem:[%s2 + $0xf7] sm:$0x1]
  %v590 = vld [vmem:[%s2 + $0xf8] sm:$0x1]
  %v591 = vld [vmem:[%s2 + $0xf9] sm:$0x1]
  %v592 = vld [vmem:[%s2 + $0xfa] sm:$0x1]
  %v593 = vld [vmem:[%s2 + $0xfb] sm:$0x1]
  %v594 = vld [vmem:[%s2 + $0xfc] sm:$0x1]
  %v595 = vld [vmem:[%s2 + $0xfd] sm:$0x1]
  %v596 = vld [vmem:[%s2 + $0xfe] sm:$0x1]
  %v597 = vld [vmem:[%s2 + $0xff] sm:$0x1]
  %v598 = vld [vmem:[%s2 + $0x100] sm:$0x1]
  %v599 = vld [vmem:[%s2 + $0x101] sm:$0x1]
  %v600 = vld [vmem:[%s2 + $0x102] sm:$0x1]
  %v601 = vld [vmem:[%s2 + $0x103] sm:$0x1]
  %v602 = vld [vmem:[%s2 + $0x104] sm:$0x1]
  %v603 = vld [vmem:[%s2 + $0x105] sm:$0x1]
  %v604 = vld [vmem:[%s2 + $0x106] sm:$0x1]
  %v605 = vld [vmem:[%s2 + $0x107] sm:$0x1]
  %v606 = vld [vmem:[%s2 + $0x108] sm:$0x1]
  %v607 = vld [vmem:[%s2 + $0x109] sm:$0x1]
  %v608 = vld [vmem:[%s2 + $0x10a] sm:$0x1]
  %v609 = vld [vmem:[%s2 + $0x10b] sm:$0x1]
  %v610 = vld [vmem:[%s2 + $0x10c] sm:$0x1]
  %v611 = vld [vmem:[%s2 + $0x10d] sm:$0x1]
  %v612 = vld [vmem:[%s2 + $0x10e] sm:$0x1]
  %v613 = vld [vmem:[%s2 + $0x10f] sm:$0x1]
  %v614 = vld [vmem:[%s2 + $0x110] sm:$0x1]
  %v615 = vld [vmem:[%s2 + $0x111] sm:$0x1]
  %v616 = vld [vmem:[%s2 + $0x112] sm:$0x1]
  %v617 = vld [vmem:[%s2 + $0x113] sm:$0x1]
  %v618 = vld [vmem:[%s2 + $0x114] sm:$0x1]
  %v619 = vld [vmem:[%s2 + $0x115] sm:$0x1]
  %v620 = vld [vmem:[%s2 + $0x116] sm:$0x1]
  %v621 = vld [vmem:[%s2 + $0x117] sm:$0x1]
  %v622 = vld [vmem:[%s2 + $0x118] sm:$0x1]
  %v623 = vld [vmem:[%s2 + $0x119] sm:$0x1]
  %v624 = vld [vmem:[%s2 + $0x11a] sm:$0x1]
  %v625 = vld [vmem:[%s2 + $0x11b] sm:$0x1]
  %v626 = vld [vmem:[%s2 + $0x11c] sm:$0x1]
  %v627 = vld [vmem:[%s2 + $0x11d] sm:$0x1]
  %v628 = vld [vmem:[%s2 + $0x11e] sm:$0x1]
  %v629 = vld [vmem:[%s2 + $0x11f] sm:$0x1]
  %v630 = vld [vmem:[%s2 + $0x120] sm:$0x1]
  %v631 = vld [vmem:[%s2 + $0x121] sm:$0x1]
  %v632 = vld [vmem:[%s2 + $0x122] sm:$0x1]
  %v633 = vld [vmem:[%s2 + $0x123] sm:$0x1]
  %v634 = vld [vmem:[%s2 + $0x124] sm:$0x1]
  %v635 = vld [vmem:[%s2 + $0x125] sm:$0x1]
  %v636 = vld [vmem:[%s2 + $0x126] sm:$0x1]
  %v637 = vld [vmem:[%s2 + $0x127] sm:$0x1]
  %v638 = vld [vmem:[%s2 + $0x128] sm:$0x1]
  %v639 = vld [vmem:[%s2 + $0x129] sm:$0x1]
  %v640 = vld [vmem:[%s2 + $0x12a] sm:$0x1]
  %v641 = vld [vmem:[%s2 + $0x12b] sm:$0x1]
  %v642 = vld [vmem:[%s2 + $0x12c] sm:$0x1]
  %v643 = vld [vmem:[%s2 + $0x12d] sm:$0x1]
  %v644 = vld [vmem:[%s2 + $0x12e] sm:$0x1]
  %v645 = vld [vmem:[%s2 + $0x12f] sm:$0x1]
  %v646 = vld [vmem:[%s2 + $0x130] sm:$0x1]
  %v647 = vld [vmem:[%s2 + $0x131] sm:$0x1]
  %v648 = vld [vmem:[%s2 + $0x132] sm:$0x1]
  %v649 = vld [vmem:[%s2 + $0x133] sm:$0x1]
  %v650 = vld [vmem:[%s2 + $0x134] sm:$0x1]
  %v651 = vld [vmem:[%s2 + $0x135] sm:$0x1]
  %v652 = vld [vmem:[%s2 + $0x136] sm:$0x1]
  %v653 = vld [vmem:[%s2 + $0x137] sm:$0x1]
  %v654 = vld [vmem:[%s2 + $0x138] sm:$0x1]
  %v655 = vld [vmem:[%s2 + $0x139] sm:$0x1]
  %v656 = vld [vmem:[%s2 + $0x13a] sm:$0x1]
  %v657 = vld [vmem:[%s2 + $0x13b] sm:$0x1]
  %v658 = vld [vmem:[%s2 + $0x13c] sm:$0x1]
  %v659 = vld [vmem:[%s2 + $0x13d] sm:$0x1]
  %v660 = vld [vmem:[%s2 + $0x13e] sm:$0x1]
  %v661 = vld [vmem:[%s2 + $0x13f] sm:$0x1]
  %v662 = vld [vmem:[%s2 + $0x140] sm:$0x1]
  %v663 = vld [vmem:[%s2 + $0x141] sm:$0x1]
  %v664 = vld [vmem:[%s2 + $0x142] sm:$0x1]
  %v665 = vld [vmem:[%s2 + $0x143] sm:$0x1]
  %v666 = vmul.f32 %v18, %v342
  %v667 = vmul.f32 %v19, %v343
  %v668 = vmul.f32 %v20, %v344
  %v669 = vmul.f32 %v21, %v345
  %v670 = vmul.f32 %v22, %v346
  %v671 = vmul.f32 %v23, %v347
  %v672 = vmul.f32 %v24, %v348
  %v673 = vmul.f32 %v25, %v349
  %v674 = vmul.f32 %v26, %v350
  %v675 = vmul.f32 %v27, %v351
  %v676 = vmul.f32 %v28, %v352
  %v677 = vmul.f32 %v29, %v353
  %v678 = vmul.f32 %v30, %v354
  %v679 = vmul.f32 %v31, %v355
  %v680 = vmul.f32 %v32, %v356
  %v681 = vmul.f32 %v33, %v357
  %v682 = vmul.f32 %v34, %v358
  %v683 = vmul.f32 %v35, %v359
  %v684 = vmul.f32 %v36, %v360
  %v685 = vmul.f32 %v37, %v361
  %v686 = vmul.f32 %v38, %v362
  %v687 = vmul.f32 %v39, %v363
  %v688 = vmul.f32 %v40, %v364
  %v689 = vmul.f32 %v41, %v365
  %v690 = vmul.f32 %v42, %v366
  %v691 = vmul.f32 %v43, %v367
  %v692 = vmul.f32 %v44, %v368
  %v693 = vmul.f32 %v45, %v369
  %v694 = vmul.f32 %v46, %v370
  %v695 = vmul.f32 %v47, %v371
  %v696 = vmul.f32 %v48, %v372
  %v697 = vmul.f32 %v49, %v373
  %v698 = vmul.f32 %v50, %v374
  %v699 = vmul.f32 %v51, %v375
  %v700 = vmul.f32 %v52, %v376
  %v701 = vmul.f32 %v53, %v377
  %v702 = vmul.f32 %v54, %v378
  %v703 = vmul.f32 %v55, %v379
  %v704 = vmul.f32 %v56, %v380
  %v705 = vmul.f32 %v57, %v381
  %v706 = vmul.f32 %v58, %v382
  %v707 = vmul.f32 %v59, %v383
  %v708 = vmul.f32 %v60, %v384
  %v709 = vmul.f32 %v61, %v385
  %v710 = vmul.f32 %v62, %v386
  %v711 = vmul.f32 %v63, %v387
  %v712 = vmul.f32 %v64, %v388
  %v713 = vmul.f32 %v65, %v389
  %v714 = vmul.f32 %v66, %v390
  %v715 = vmul.f32 %v67, %v391
  %v716 = vmul.f32 %v68, %v392
  %v717 = vmul.f32 %v69, %v393
  %v718 = vmul.f32 %v70, %v394
  %v719 = vmul.f32 %v71, %v395
  %v720 = vmul.f32 %v72, %v396
  %v721 = vmul.f32 %v73, %v397
  %v722 = vmul.f32 %v74, %v398
  %v723 = vmul.f32 %v75, %v399
  %v724 = vmul.f32 %v76, %v400
  %v725 = vmul.f32 %v77, %v401
  %v726 = vmul.f32 %v78, %v402
  %v727 = vmul.f32 %v79, %v403
  %v728 = vmul.f32 %v80, %v404
  %v729 = vmul.f32 %v81, %v405
  %v730 = vmul.f32 %v82, %v406
  %v731 = vmul.f32 %v83, %v407
  %v732 = vmul.f32 %v84, %v408
  %v733 = vmul.f32 %v85, %v409
  %v734 = vmul.f32 %v86, %v410
  %v735 = vmul.f32 %v87, %v411
  %v736 = vmul.f32 %v88, %v412
  %v737 = vmul.f32 %v89, %v413
  %v738 = vmul.f32 %v90, %v414
  %v739 = vmul.f32 %v91, %v415
  %v740 = vmul.f32 %v92, %v416
  %v741 = vmul.f32 %v93, %v417
  %v742 = vmul.f32 %v94, %v418
  %v743 = vmul.f32 %v95, %v419
  %v744 = vmul.f32 %v96, %v420
  %v745 = vmul.f32 %v97, %v421
  %v746 = vmul.f32 %v98, %v422
  %v747 = vmul.f32 %v99, %v423
  %v748 = vmul.f32 %v100, %v424
  %v749 = vmul.f32 %v101, %v425
  %v750 = vmul.f32 %v102, %v426
  %v751 = vmul.f32 %v103, %v427
  %v752 = vmul.f32 %v104, %v428
  %v753 = vmul.f32 %v105, %v429
  %v754 = vmul.f32 %v106, %v430
  %v755 = vmul.f32 %v107, %v431
  %v756 = vmul.f32 %v108, %v432
  %v757 = vmul.f32 %v109, %v433
  %v758 = vmul.f32 %v110, %v434
  %v759 = vmul.f32 %v111, %v435
  %v760 = vmul.f32 %v112, %v436
  %v761 = vmul.f32 %v113, %v437
  %v762 = vmul.f32 %v114, %v438
  %v763 = vmul.f32 %v115, %v439
  %v764 = vmul.f32 %v116, %v440
  %v765 = vmul.f32 %v117, %v441
  %v766 = vmul.f32 %v118, %v442
  %v767 = vmul.f32 %v119, %v443
  %v768 = vmul.f32 %v120, %v444
  %v769 = vmul.f32 %v121, %v445
  %v770 = vmul.f32 %v122, %v446
  %v771 = vmul.f32 %v123, %v447
  %v772 = vmul.f32 %v124, %v448
  %v773 = vmul.f32 %v125, %v449
  %v774 = vmul.f32 %v126, %v450
  %v775 = vmul.f32 %v127, %v451
  %v776 = vmul.f32 %v128, %v452
  %v777 = vmul.f32 %v129, %v453
  %v778 = vmul.f32 %v130, %v454
  %v779 = vmul.f32 %v131, %v455
  %v780 = vmul.f32 %v132, %v456
  %v781 = vmul.f32 %v133, %v457
  %v782 = vmul.f32 %v134, %v458
  %v783 = vmul.f32 %v135, %v459
  %v784 = vmul.f32 %v136, %v460
  %v785 = vmul.f32 %v137, %v461
  %v786 = vmul.f32 %v138, %v462
  %v787 = vmul.f32 %v139, %v463
  %v788 = vmul.f32 %v140, %v464
  %v789 = vmul.f32 %v141, %v465
  %v790 = vmul.f32 %v142, %v466
  %v791 = vmul.f32 %v143, %v467
  %v792 = vmul.f32 %v144, %v468
  %v793 = vmul.f32 %v145, %v469
  %v794 = vmul.f32 %v146, %v470
  %v795 = vmul.f32 %v147, %v471
  %v796 = vmul.f32 %v148, %v472
  %v797 = vmul.f32 %v149, %v473
  %v798 = vmul.f32 %v150, %v474
  %v799 = vmul.f32 %v151, %v475
  %v800 = vmul.f32 %v152, %v476
  %v801 = vmul.f32 %v153, %v477
  %v802 = vmul.f32 %v154, %v478
  %v803 = vmul.f32 %v155, %v479
  %v804 = vmul.f32 %v156, %v480
  %v805 = vmul.f32 %v157, %v481
  %v806 = vmul.f32 %v158, %v482
  %v807 = vmul.f32 %v159, %v483
  %v808 = vmul.f32 %v160, %v484
  %v809 = vmul.f32 %v161, %v485
  %v810 = vmul.f32 %v162, %v486
  %v811 = vmul.f32 %v163, %v487
  %v812 = vmul.f32 %v164, %v488
  %v813 = vmul.f32 %v165, %v489
  %v814 = vmul.f32 %v166, %v490
  %v815 = vmul.f32 %v167, %v491
  %v816 = vmul.f32 %v168, %v492
  %v817 = vmul.f32 %v169, %v493
  %v818 = vmul.f32 %v170, %v494
  %v819 = vmul.f32 %v171, %v495
  %v820 = vmul.f32 %v172, %v496
  %v821 = vmul.f32 %v173, %v497
  %v822 = vmul.f32 %v174, %v498
  %v823 = vmul.f32 %v175, %v499
  %v824 = vmul.f32 %v176, %v500
  %v825 = vmul.f32 %v177, %v501
  %v826 = vmul.f32 %v178, %v502
  %v827 = vmul.f32 %v179, %v503
  %v828 = vmul.f32 %v180, %v504
  %v829 = vmul.f32 %v181, %v505
  %v830 = vmul.f32 %v182, %v506
  %v831 = vmul.f32 %v183, %v507
  %v832 = vmul.f32 %v184, %v508
  %v833 = vmul.f32 %v185, %v509
  %v834 = vmul.f32 %v186, %v510
  %v835 = vmul.f32 %v187, %v511
  %v836 = vmul.f32 %v188, %v512
  %v837 = vmul.f32 %v189, %v513
  %v838 = vmul.f32 %v190, %v514
  %v839 = vmul.f32 %v191, %v515
  %v840 = vmul.f32 %v192, %v516
  %v841 = vmul.f32 %v193, %v517
  %v842 = vmul.f32 %v194, %v518
  %v843 = vmul.f32 %v195, %v519
  %v844 = vmul.f32 %v196, %v520
  %v845 = vmul.f32 %v197, %v521
  %v846 = vmul.f32 %v198, %v522
  %v847 = vmul.f32 %v199, %v523
  %v848 = vmul.f32 %v200, %v524
  %v849 = vmul.f32 %v201, %v525
  %v850 = vmul.f32 %v202, %v526
  %v851 = vmul.f32 %v203, %v527
  %v852 = vmul.f32 %v204, %v528
  %v853 = vmul.f32 %v205, %v529
  %v854 = vmul.f32 %v206, %v530
  %v855 = vmul.f32 %v207, %v531
  %v856 = vmul.f32 %v208, %v532
  %v857 = vmul.f32 %v209, %v533
  %v858 = vmul.f32 %v210, %v534
  %v859 = vmul.f32 %v211, %v535
  %v860 = vmul.f32 %v212, %v536
  %v861 = vmul.f32 %v213, %v537
  %v862 = vmul.f32 %v214, %v538
  %v863 = vmul.f32 %v215, %v539
  %v864 = vmul.f32 %v216, %v540
  %v865 = vmul.f32 %v217, %v541
  %v866 = vmul.f32 %v218, %v542
  %v867 = vmul.f32 %v219, %v543
  %v868 = vmul.f32 %v220, %v544
  %v869 = vmul.f32 %v221, %v545
  %v870 = vmul.f32 %v222, %v546
  %v871 = vmul.f32 %v223, %v547
  %v872 = vmul.f32 %v224, %v548
  %v873 = vmul.f32 %v225, %v549
  %v874 = vmul.f32 %v226, %v550
  %v875 = vmul.f32 %v227, %v551
  %v876 = vmul.f32 %v228, %v552
  %v877 = vmul.f32 %v229, %v553
  %v878 = vmul.f32 %v230, %v554
  %v879 = vmul.f32 %v231, %v555
  %v880 = vmul.f32 %v232, %v556
  %v881 = vmul.f32 %v233, %v557
  %v882 = vmul.f32 %v234, %v558
  %v883 = vmul.f32 %v235, %v559
  %v884 = vmul.f32 %v236, %v560
  %v885 = vmul.f32 %v237, %v561
  %v886 = vmul.f32 %v238, %v562
  %v887 = vmul.f32 %v239, %v563
  %v888 = vmul.f32 %v240, %v564
  %v889 = vmul.f32 %v241, %v565
  %v890 = vmul.f32 %v242, %v566
  %v891 = vmul.f32 %v243, %v567
  %v892 = vmul.f32 %v244, %v568
  %v893 = vmul.f32 %v245, %v569
  %v894 = vmul.f32 %v246, %v570
  %v895 = vmul.f32 %v247, %v571
  %v896 = vmul.f32 %v248, %v572
  %v897 = vmul.f32 %v249, %v573
  %v898 = vmul.f32 %v250, %v574
  %v899 = vmul.f32 %v251, %v575
  %v900 = vmul.f32 %v252, %v576
  %v901 = vmul.f32 %v253, %v577
  %v902 = vmul.f32 %v254, %v578
  %v903 = vmul.f32 %v255, %v579
  %v904 = vmul.f32 %v256, %v580
  %v905 = vmul.f32 %v257, %v581
  %v906 = vmul.f32 %v258, %v582
  %v907 = vmul.f32 %v259, %v583
  %v908 = vmul.f32 %v260, %v584
  %v909 = vmul.f32 %v261, %v585
  %v910 = vmul.f32 %v262, %v586
  %v911 = vmul.f32 %v263, %v587
  %v912 = vmul.f32 %v264, %v588
  %v913 = vmul.f32 %v265, %v589
  %v914 = vmul.f32 %v266, %v590
  %v915 = vmul.f32 %v267, %v591
  %v916 = vmul.f32 %v268, %v592
  %v917 = vmul.f32 %v269, %v593
  %v918 = vmul.f32 %v270, %v594
  %v919 = vmul.f32 %v271, %v595
  %v920 = vmul.f32 %v272, %v596
  %v921 = vmul.f32 %v273, %v597
  %v922 = vmul.f32 %v274, %v598
  %v923 = vmul.f32 %v275, %v599
  %v924 = vmul.f32 %v276, %v600
  %v925 = vmul.f32 %v277, %v601
  %v926 = vmul.f32 %v278, %v602
  %v927 = vmul.f32 %v279, %v603
  %v928 = vmul.f32 %v280, %v604
  %v929 = vmul.f32 %v281, %v605
  %v930 = vmul.f32 %v282, %v606
  %v931 = vmul.f32 %v283, %v607
  %v932 = vmul.f32 %v284, %v608
  %v933 = vmul.f32 %v285, %v609
  %v934 = vmul.f32 %v286, %v610
  %v935 = vmul.f32 %v287, %v611
  %v936 = vmul.f32 %v288, %v612
  %v937 = vmul.f32 %v289, %v613
  %v938 = vmul.f32 %v290, %v614
  %v939 = vmul.f32 %v291, %v615
  %v940 = vmul.f32 %v292, %v616
  %v941 = vmul.f32 %v293, %v617
  %v942 = vmul.f32 %v294, %v618
  %v943 = vmul.f32 %v295, %v619
  %v944 = vmul.f32 %v296, %v620
  %v945 = vmul.f32 %v297, %v621
  %v946 = vmul.f32 %v298, %v622
  %v947 = vmul.f32 %v299, %v623
  %v948 = vmul.f32 %v300, %v624
  %v949 = vmul.f32 %v301, %v625
  %v950 = vmul.f32 %v302, %v626
  %v951 = vmul.f32 %v303, %v627
  %v952 = vmul.f32 %v304, %v628
  %v953 = vmul.f32 %v305, %v629
  %v954 = vmul.f32 %v306, %v630
  %v955 = vmul.f32 %v307, %v631
  %v956 = vmul.f32 %v308, %v632
  %v957 = vmul.f32 %v309, %v633
  %v958 = vmul.f32 %v310, %v634
  %v959 = vmul.f32 %v311, %v635
  %v960 = vmul.f32 %v312, %v636
  %v961 = vmul.f32 %v313, %v637
  %v962 = vmul.f32 %v314, %v638
  %v963 = vmul.f32 %v315, %v639
  %v964 = vmul.f32 %v316, %v640
  %v965 = vmul.f32 %v317, %v641
  %v966 = vmul.f32 %v318, %v642
  %v967 = vmul.f32 %v319, %v643
  %v968 = vmul.f32 %v320, %v644
  %v969 = vmul.f32 %v321, %v645
  %v970 = vmul.f32 %v322, %v646
  %v971 = vmul.f32 %v323, %v647
  %v972 = vmul.f32 %v324, %v648
  %v973 = vmul.f32 %v325, %v649
  %v974 = vmul.f32 %v326, %v650
  %v975 = vmul.f32 %v327, %v651
  %v976 = vmul.f32 %v328, %v652
  %v977 = vmul.f32 %v329, %v653
  %v978 = vmul.f32 %v330, %v654
  %v979 = vmul.f32 %v331, %v655
  %v980 = vmul.f32 %v332, %v656
  %v981 = vmul.f32 %v333, %v657
  %v982 = vmul.f32 %v334, %v658
  %v983 = vmul.f32 %v335, %v659
  %v984 = vmul.f32 %v336, %v660
  %v985 = vmul.f32 %v337, %v661
  %v986 = vmul.f32 %v338, %v662
  %v987 = vmul.f32 %v339, %v663
  %v988 = vmul.f32 %v340, %v664
  %v989 = vmul.f32 %v341, %v665
  %v990 = vmax.f32 %v18, %v19
  %v991 = vmax.f32 %v19, %v20
  %v992 = vmax.f32 %v20, %v21
  %v993 = vmax.f32 %v21, %v22
  %v994 = vmax.f32 %v22, %v23
  %v995 = vmax.f32 %v23, %v24
  %v996 = vmax.f32 %v24, %v25
  %v997 = vmax.f32 %v25, %v26
  %v998 = vmax.f32 %v26, %v27
  %v999 = vmax.f32 %v27, %v28
  %v1000 = vmax.f32 %v28, %v29
  %v1001 = vmax.f32 %v29, %v30
  %v1002 = vmax.f32 %v30, %v31
  %v1003 = vmax.f32 %v31, %v32
  %v1004 = vmax.f32 %v32, %v33
  %v1005 = vmax.f32 %v33, %v34
  %v1006 = vmax.f32 %v36, %v37
  %v1007 = vmax.f32 %v37, %v38
  %v1008 = vmax.f32 %v38, %v39
  %v1009 = vmax.f32 %v39, %v40
  %v1010 = vmax.f32 %v40, %v41
  %v1011 = vmax.f32 %v41, %v42
  %v1012 = vmax.f32 %v42, %v43
  %v1013 = vmax.f32 %v43, %v44
  %v1014 = vmax.f32 %v44, %v45
  %v1015 = vmax.f32 %v45, %v46
  %v1016 = vmax.f32 %v46, %v47
  %v1017 = vmax.f32 %v47, %v48
  %v1018 = vmax.f32 %v48, %v49
  %v1019 = vmax.f32 %v49, %v50
  %v1020 = vmax.f32 %v50, %v51
  %v1021 = vmax.f32 %v51, %v52
  %v1022 = vmax.f32 %v54, %v55
  %v1023 = vmax.f32 %v55, %v56
  %v1024 = vmax.f32 %v56, %v57
  %v1025 = vmax.f32 %v57, %v58
  %v1026 = vmax.f32 %v58, %v59
  %v1027 = vmax.f32 %v59, %v60
  %v1028 = vmax.f32 %v60, %v61
  %v1029 = vmax.f32 %v61, %v62
  %v1030 = vmax.f32 %v62, %v63
  %v1031 = vmax.f32 %v63, %v64
  %v1032 = vmax.f32 %v64, %v65
  %v1033 = vmax.f32 %v65, %v66
  %v1034 = vmax.f32 %v66, %v67
  %v1035 = vmax.f32 %v67, %v68
  %v1036 = vmax.f32 %v68, %v69
  %v1037 = vmax.f32 %v69, %v70
  %v1038 = vmax.f32 %v72, %v73
  %v1039 = vmax.f32 %v73, %v74
  %v1040 = vmax.f32 %v74, %v75
  %v1041 = vmax.f32 %v75, %v76
  %v1042 = vmax.f32 %v76, %v77
  %v1043 = vmax.f32 %v77, %v78
  %v1044 = vmax.f32 %v78, %v79
  %v1045 = vmax.f32 %v79, %v80
  %v1046 = vmax.f32 %v80, %v81
  %v1047 = vmax.f32 %v81, %v82
  %v1048 = vmax.f32 %v82, %v83
  %v1049 = vmax.f32 %v83, %v84
  %v1050 = vmax.f32 %v84, %v85
  %v1051 = vmax.f32 %v85, %v86
  %v1052 = vmax.f32 %v86, %v87
  %v1053 = vmax.f32 %v87, %v88
  %v1054 = vmax.f32 %v90, %v91
  %v1055 = vmax.f32 %v91, %v92
  %v1056 = vmax.f32 %v92, %v93
  %v1057 = vmax.f32 %v93, %v94
  %v1058 = vmax.f32 %v94, %v95
  %v1059 = vmax.f32 %v95, %v96
  %v1060 = vmax.f32 %v96, %v97
  %v1061 = vmax.f32 %v97, %v98
  %v1062 = vmax.f32 %v98, %v99
  %v1063 = vmax.f32 %v99, %v100
  %v1064 = vmax.f32 %v100, %v101
  %v1065 = vmax.f32 %v101, %v102
  %v1066 = vmax.f32 %v102, %v103
  %v1067 = vmax.f32 %v103, %v104
  %v1068 = vmax.f32 %v104, %v105
  %v1069 = vmax.f32 %v105, %v106
  %v1070 = vmax.f32 %v108, %v109
  %v1071 = vmax.f32 %v109, %v110
  %v1072 = vmax.f32 %v110, %v111
  %v1073 = vmax.f32 %v111, %v112
  %v1074 = vmax.f32 %v112, %v113
  %v1075 = vmax.f32 %v113, %v114
  %v1076 = vmax.f32 %v114, %v115
  %v1077 = vmax.f32 %v115, %v116
  %v1078 = vmax.f32 %v116, %v117
  %v1079 = vmax.f32 %v117, %v118
  %v1080 = vmax.f32 %v118, %v119
  %v1081 = vmax.f32 %v119, %v120
  %v1082 = vmax.f32 %v120, %v121
  %v1083 = vmax.f32 %v121, %v122
  %v1084 = vmax.f32 %v122, %v123
  %v1085 = vmax.f32 %v123, %v124
  %v1086 = vmax.f32 %v126, %v127
  %v1087 = vmax.f32 %v127, %v128
  %v1088 = vmax.f32 %v128, %v129
  %v1089 = vmax.f32 %v129, %v130
  %v1090 = vmax.f32 %v130, %v131
  %v1091 = vmax.f32 %v131, %v132
  %v1092 = vmax.f32 %v132, %v133
  %v1093 = vmax.f32 %v133, %v134
  %v1094 = vmax.f32 %v134, %v135
  %v1095 = vmax.f32 %v135, %v136
  %v1096 = vmax.f32 %v136, %v137
  %v1097 = vmax.f32 %v137, %v138
  %v1098 = vmax.f32 %v138, %v139
  %v1099 = vmax.f32 %v139, %v140
  %v1100 = vmax.f32 %v140, %v141
  %v1101 = vmax.f32 %v141, %v142
  %v1102 = vmax.f32 %v144, %v145
  %v1103 = vmax.f32 %v145, %v146
  %v1104 = vmax.f32 %v146, %v147
  %v1105 = vmax.f32 %v147, %v148
  %v1106 = vmax.f32 %v148, %v149
  %v1107 = vmax.f32 %v149, %v150
  %v1108 = vmax.f32 %v150, %v151
  %v1109 = vmax.f32 %v151, %v152
  %v1110 = vmax.f32 %v152, %v153
  %v1111 = vmax.f32 %v153, %v154
  %v1112 = vmax.f32 %v154, %v155
  %v1113 = vmax.f32 %v155, %v156
  %v1114 = vmax.f32 %v156, %v157
  %v1115 = vmax.f32 %v157, %v158
  %v1116 = vmax.f32 %v158, %v159
  %v1117 = vmax.f32 %v159, %v160
  %v1118 = vmax.f32 %v162, %v163
  %v1119 = vmax.f32 %v163, %v164
  %v1120 = vmax.f32 %v164, %v165
  %v1121 = vmax.f32 %v165, %v166
  %v1122 = vmax.f32 %v166, %v167
  %v1123 = vmax.f32 %v167, %v168
  %v1124 = vmax.f32 %v168, %v169
  %v1125 = vmax.f32 %v169, %v170
  %v1126 = vmax.f32 %v170, %v171
  %v1127 = vmax.f32 %v171, %v172
  %v1128 = vmax.f32 %v172, %v173
  %v1129 = vmax.f32 %v173, %v174
  %v1130 = vmax.f32 %v174, %v175
  %v1131 = vmax.f32 %v175, %v176
  %v1132 = vmax.f32 %v176, %v177
  %v1133 = vmax.f32 %v177, %v178
  %v1134 = vmax.f32 %v180, %v181
  %v1135 = vmax.f32 %v181, %v182
  %v1136 = vmax.f32 %v182, %v183
  %v1137 = vmax.f32 %v183, %v184
  %v1138 = vmax.f32 %v184, %v185
  %v1139 = vmax.f32 %v185, %v186
  %v1140 = vmax.f32 %v186, %v187
  %v1141 = vmax.f32 %v187, %v188
  %v1142 = vmax.f32 %v188, %v189
  %v1143 = vmax.f32 %v189, %v190
  %v1144 = vmax.f32 %v190, %v191
  %v1145 = vmax.f32 %v191, %v192
  %v1146 = vmax.f32 %v192, %v193
  %v1147 = vmax.f32 %v193, %v194
  %v1148 = vmax.f32 %v194, %v195
  %v1149 = vmax.f32 %v195, %v196
  %v1150 = vmax.f32 %v198, %v199
  %v1151 = vmax.f32 %v199, %v200
  %v1152 = vmax.f32 %v200, %v201
  %v1153 = vmax.f32 %v201, %v202
  %v1154 = vmax.f32 %v202, %v203
  %v1155 = vmax.f32 %v203, %v204
  %v1156 = vmax.f32 %v204, %v205
  %v1157 = vmax.f32 %v205, %v206
  %v1158 = vmax.f32 %v206, %v207
  %v1159 = vmax.f32 %v207, %v208
  %v1160 = vmax.f32 %v208, %v209
  %v1161 = vmax.f32 %v209, %v210
  %v1162 = vmax.f32 %v210, %v211
  %v1163 = vmax.f32 %v211, %v212
  %v1164 = vmax.f32 %v212, %v213
  %v1165 = vmax.f32 %v213, %v214
  %v1166 = vmax.f32 %v216, %v217
  %v1167 = vmax.f32 %v217, %v218
  %v1168 = vmax.f32 %v218, %v219
  %v1169 = vmax.f32 %v219, %v220
  %v1170 = vmax.f32 %v220, %v221
  %v1171 = vmax.f32 %v221, %v222
  %v1172 = vmax.f32 %v222, %v223
  %v1173 = vmax.f32 %v223, %v224
  %v1174 = vmax.f32 %v224, %v225
  %v1175 = vmax.f32 %v225, %v226
  %v1176 = vmax.f32 %v226, %v227
  %v1177 = vmax.f32 %v227, %v228
  %v1178 = vmax.f32 %v228, %v229
  %v1179 = vmax.f32 %v229, %v230
  %v1180 = vmax.f32 %v230, %v231
  %v1181 = vmax.f32 %v231, %v232
  %v1182 = vmax.f32 %v234, %v235
  %v1183 = vmax.f32 %v235, %v236
  %v1184 = vmax.f32 %v236, %v237
  %v1185 = vmax.f32 %v237, %v238
  %v1186 = vmax.f32 %v238, %v239
  %v1187 = vmax.f32 %v239, %v240
  %v1188 = vmax.f32 %v240, %v241
  %v1189 = vmax.f32 %v241, %v242
  %v1190 = vmax.f32 %v242, %v243
  %v1191 = vmax.f32 %v243, %v244
  %v1192 = vmax.f32 %v244, %v245
  %v1193 = vmax.f32 %v245, %v246
  %v1194 = vmax.f32 %v246, %v247
  %v1195 = vmax.f32 %v247, %v248
  %v1196 = vmax.f32 %v248, %v249
  %v1197 = vmax.f32 %v249, %v250
  %v1198 = vmax.f32 %v252, %v253
  %v1199 = vmax.f32 %v253, %v254
  %v1200 = vmax.f32 %v254, %v255
  %v1201 = vmax.f32 %v255, %v256
  %v1202 = vmax.f32 %v256, %v257
  %v1203 = vmax.f32 %v257, %v258
  %v1204 = vmax.f32 %v258, %v259
  %v1205 = vmax.f32 %v259, %v260
  %v1206 = vmax.f32 %v260, %v261
  %v1207 = vmax.f32 %v261, %v262
  %v1208 = vmax.f32 %v262, %v263
  %v1209 = vmax.f32 %v263, %v264
  %v1210 = vmax.f32 %v264, %v265
  %v1211 = vmax.f32 %v265, %v266
  %v1212 = vmax.f32 %v266, %v267
  %v1213 = vmax.f32 %v267, %v268
  %v1214 = vmax.f32 %v270, %v271
  %v1215 = vmax.f32 %v271, %v272
  %v1216 = vmax.f32 %v272, %v273
  %v1217 = vmax.f32 %v273, %v274
  %v1218 = vmax.f32 %v274, %v275
  %v1219 = vmax.f32 %v275, %v276
  %v1220 = vmax.f32 %v276, %v277
  %v1221 = vmax.f32 %v277, %v278
  %v1222 = vmax.f32 %v278, %v279
  %v1223 = vmax.f32 %v279, %v280
  %v1224 = vmax.f32 %v280, %v281
  %v1225 = vmax.f32 %v281, %v282
  %v1226 = vmax.f32 %v282, %v283
  %v1227 = vmax.f32 %v283, %v284
  %v1228 = vmax.f32 %v284, %v285
  %v1229 = vmax.f32 %v285, %v286
  %v1230 = vmax.f32 %v288, %v289
  %v1231 = vmax.f32 %v289, %v290
  %v1232 = vmax.f32 %v290, %v291
  %v1233 = vmax.f32 %v291, %v292
  %v1234 = vmax.f32 %v292, %v293
  %v1235 = vmax.f32 %v293, %v294
  %v1236 = vmax.f32 %v294, %v295
  %v1237 = vmax.f32 %v295, %v296
  %v1238 = vmax.f32 %v296, %v297
  %v1239 = vmax.f32 %v297, %v298
  %v1240 = vmax.f32 %v298, %v299
  %v1241 = vmax.f32 %v299, %v300
  %v1242 = vmax.f32 %v300, %v301
  %v1243 = vmax.f32 %v301, %v302
  %v1244 = vmax.f32 %v302, %v303
  %v1245 = vmax.f32 %v303, %v304
  %v1246 = vadd.f32 %v666, %v667
  %v1247 = vadd.f32 %v667, %v668
  %v1248 = vadd.f32 %v668, %v669
  %v1249 = vadd.f32 %v669, %v670
  %v1250 = vadd.f32 %v670, %v671
  %v1251 = vadd.f32 %v671, %v672
  %v1252 = vadd.f32 %v672, %v673
  %v1253 = vadd.f32 %v673, %v674
  %v1254 = vadd.f32 %v674, %v675
  %v1255 = vadd.f32 %v675, %v676
  %v1256 = vadd.f32 %v676, %v677
  %v1257 = vadd.f32 %v677, %v678
  %v1258 = vadd.f32 %v678, %v679
  %v1259 = vadd.f32 %v679, %v680
  %v1260 = vadd.f32 %v680, %v681
  %v1261 = vadd.f32 %v681, %v682
  %v1262 = vadd.f32 %v684, %v685
  %v1263 = vadd.f32 %v685, %v686
  %v1264 = vadd.f32 %v686, %v687
  %v1265 = vadd.f32 %v687, %v688
  %v1266 = vadd.f32 %v688, %v689
  %v1267 = vadd.f32 %v689, %v690
  %v1268 = vadd.f32 %v690, %v691
  %v1269 = vadd.f32 %v691, %v692
  %v1270 = vadd.f32 %v692, %v693
  %v1271 = vadd.f32 %v693, %v694
  %v1272 = vadd.f32 %v694, %v695
  %v1273 = vadd.f32 %v695, %v696
  %v1274 = vadd.f32 %v696, %v697
  %v1275 = vadd.f32 %v697, %v698
  %v1276 = vadd.f32 %v698, %v699
  %v1277 = vadd.f32 %v699, %v700
  %v1278 = vadd.f32 %v702, %v703
  %v1279 = vadd.f32 %v703, %v704
  %v1280 = vadd.f32 %v704, %v705
  %v1281 = vadd.f32 %v705, %v706
  %v1282 = vadd.f32 %v706, %v707
  %v1283 = vadd.f32 %v707, %v708
  %v1284 = vadd.f32 %v708, %v709
  %v1285 = vadd.f32 %v709, %v710
  %v1286 = vadd.f32 %v710, %v711
  %v1287 = vadd.f32 %v711, %v712
  %v1288 = vadd.f32 %v712, %v713
  %v1289 = vadd.f32 %v713, %v714
  %v1290 = vadd.f32 %v714, %v715
  %v1291 = vadd.f32 %v715, %v716
  %v1292 = vadd.f32 %v716, %v717
  %v1293 = vadd.f32 %v717, %v718
  %v1294 = vadd.f32 %v720, %v721
  %v1295 = vadd.f32 %v721, %v722
  %v1296 = vadd.f32 %v722, %v723
  %v1297 = vadd.f32 %v723, %v724
  %v1298 = vadd.f32 %v724, %v725
  %v1299 = vadd.f32 %v725, %v726
  %v1300 = vadd.f32 %v726, %v727
  %v1301 = vadd.f32 %v727, %v728
  %v1302 = vadd.f32 %v728, %v729
  %v1303 = vadd.f32 %v729, %v730
  %v1304 = vadd.f32 %v730, %v731
  %v1305 = vadd.f32 %v731, %v732
  %v1306 = vadd.f32 %v732, %v733
  %v1307 = vadd.f32 %v733, %v734
  %v1308 = vadd.f32 %v734, %v735
  %v1309 = vadd.f32 %v735, %v736
  %v1310 = vadd.f32 %v738, %v739
  %v1311 = vadd.f32 %v739, %v740
  %v1312 = vadd.f32 %v740, %v741
  %v1313 = vadd.f32 %v741, %v742
  %v1314 = vadd.f32 %v742, %v743
  %v1315 = vadd.f32 %v743, %v744
  %v1316 = vadd.f32 %v744, %v745
  %v1317 = vadd.f32 %v745, %v746
  %v1318 = vadd.f32 %v746, %v747
  %v1319 = vadd.f32 %v747, %v748
  %v1320 = vadd.f32 %v748, %v749
  %v1321 = vadd.f32 %v749, %v750
  %v1322 = vadd.f32 %v750, %v751
  %v1323 = vadd.f32 %v751, %v752
  %v1324 = vadd.f32 %v752, %v753
  %v1325 = vadd.f32 %v753, %v754
  %v1326 = vadd.f32 %v756, %v757
  %v1327 = vadd.f32 %v757, %v758
  %v1328 = vadd.f32 %v758, %v759
  %v1329 = vadd.f32 %v759, %v760
  %v1330 = vadd.f32 %v760, %v761
  %v1331 = vadd.f32 %v761, %v762
  %v1332 = vadd.f32 %v762, %v763
  %v1333 = vadd.f32 %v763, %v764
  %v1334 = vadd.f32 %v764, %v765
  %v1335 = vadd.f32 %v765, %v766
  %v1336 = vadd.f32 %v766, %v767
  %v1337 = vadd.f32 %v767, %v768
  %v1338 = vadd.f32 %v768, %v769
  %v1339 = vadd.f32 %v769, %v770
  %v1340 = vadd.f32 %v770, %v771
  %v1341 = vadd.f32 %v771, %v772
  %v1342 = vadd.f32 %v774, %v775
  %v1343 = vadd.f32 %v775, %v776
  %v1344 = vadd.f32 %v776, %v777
  %v1345 = vadd.f32 %v777, %v778
  %v1346 = vadd.f32 %v778, %v779
  %v1347 = vadd.f32 %v779, %v780
  %v1348 = vadd.f32 %v780, %v781
  %v1349 = vadd.f32 %v781, %v782
  %v1350 = vadd.f32 %v782, %v783
  %v1351 = vadd.f32 %v783, %v784
  %v1352 = vadd.f32 %v784, %v785
  %v1353 = vadd.f32 %v785, %v786
  %v1354 = vadd.f32 %v786, %v787
  %v1355 = vadd.f32 %v787, %v788
  %v1356 = vadd.f32 %v788, %v789
  %v1357 = vadd.f32 %v789, %v790
  %v1358 = vadd.f32 %v792, %v793
  %v1359 = vadd.f32 %v793, %v794
  %v1360 = vadd.f32 %v794, %v795
  %v1361 = vadd.f32 %v795, %v796
  %v1362 = vadd.f32 %v796, %v797
  %v1363 = vadd.f32 %v797, %v798
  %v1364 = vadd.f32 %v798, %v799
  %v1365 = vadd.f32 %v799, %v800
  %v1366 = vadd.f32 %v800, %v801
  %v1367 = vadd.f32 %v801, %v802
  %v1368 = vadd.f32 %v802, %v803
  %v1369 = vadd.f32 %v803, %v804
  %v1370 = vadd.f32 %v804, %v805
  %v1371 = vadd.f32 %v805, %v806
  %v1372 = vadd.f32 %v806, %v807
  %v1373 = vadd.f32 %v807, %v808
  %v1374 = vadd.f32 %v810, %v811
  %v1375 = vadd.f32 %v811, %v812
  %v1376 = vadd.f32 %v812, %v813
  %v1377 = vadd.f32 %v813, %v814
  %v1378 = vadd.f32 %v814, %v815
  %v1379 = vadd.f32 %v815, %v816
  %v1380 = vadd.f32 %v816, %v817
  %v1381 = vadd.f32 %v817, %v818
  %v1382 = vadd.f32 %v818, %v819
  %v1383 = vadd.f32 %v819, %v820
  %v1384 = vadd.f32 %v820, %v821
  %v1385 = vadd.f32 %v821, %v822
  %v1386 = vadd.f32 %v822, %v823
  %v1387 = vadd.f32 %v823, %v824
  %v1388 = vadd.f32 %v824, %v825
  %v1389 = vadd.f32 %v825, %v826
  %v1390 = vadd.f32 %v828, %v829
  %v1391 = vadd.f32 %v829, %v830
  %v1392 = vadd.f32 %v830, %v831
  %v1393 = vadd.f32 %v831, %v832
  %v1394 = vadd.f32 %v832, %v833
  %v1395 = vadd.f32 %v833, %v834
  %v1396 = vadd.f32 %v834, %v835
  %v1397 = vadd.f32 %v835, %v836
  %v1398 = vadd.f32 %v836, %v837
  %v1399 = vadd.f32 %v837, %v838
  %v1400 = vadd.f32 %v838, %v839
  %v1401 = vadd.f32 %v839, %v840
  %v1402 = vadd.f32 %v840, %v841
  %v1403 = vadd.f32 %v841, %v842
  %v1404 = vadd.f32 %v842, %v843
  %v1405 = vadd.f32 %v843, %v844
  %v1406 = vadd.f32 %v846, %v847
  %v1407 = vadd.f32 %v847, %v848
  %v1408 = vadd.f32 %v848, %v849
  %v1409 = vadd.f32 %v849, %v850
  %v1410 = vadd.f32 %v850, %v851
  %v1411 = vadd.f32 %v851, %v852
  %v1412 = vadd.f32 %v852, %v853
  %v1413 = vadd.f32 %v853, %v854
  %v1414 = vadd.f32 %v854, %v855
  %v1415 = vadd.f32 %v855, %v856
  %v1416 = vadd.f32 %v856, %v857
  %v1417 = vadd.f32 %v857, %v858
  %v1418 = vadd.f32 %v858, %v859
  %v1419 = vadd.f32 %v859, %v860
  %v1420 = vadd.f32 %v860, %v861
  %v1421 = vadd.f32 %v861, %v862
  %v1422 = vadd.f32 %v864, %v865
  %v1423 = vadd.f32 %v865, %v866
  %v1424 = vadd.f32 %v866, %v867
  %v1425 = vadd.f32 %v867, %v868
  %v1426 = vadd.f32 %v868, %v869
  %v1427 = vadd.f32 %v869, %v870
  %v1428 = vadd.f32 %v870, %v871
  %v1429 = vadd.f32 %v871, %v872
  %v1430 = vadd.f32 %v872, %v873
  %v1431 = vadd.f32 %v873, %v874
  %v1432 = vadd.f32 %v874, %v875
  %v1433 = vadd.f32 %v875, %v876
  %v1434 = vadd.f32 %v876, %v877
  %v1435 = vadd.f32 %v877, %v878
  %v1436 = vadd.f32 %v878, %v879
  %v1437 = vadd.f32 %v879, %v880
  %v1438 = vadd.f32 %v882, %v883
  %v1439 = vadd.f32 %v883, %v884
  %v1440 = vadd.f32 %v884, %v885
  %v1441 = vadd.f32 %v885, %v886
  %v1442 = vadd.f32 %v886, %v887
  %v1443 = vadd.f32 %v887, %v888
  %v1444 = vadd.f32 %v888, %v889
  %v1445 = vadd.f32 %v889, %v890
  %v1446 = vadd.f32 %v890, %v891
  %v1447 = vadd.f32 %v891, %v892
  %v1448 = vadd.f32 %v892, %v893
  %v1449 = vadd.f32 %v893, %v894
  %v1450 = vadd.f32 %v894, %v895
  %v1451 = vadd.f32 %v895, %v896
  %v1452 = vadd.f32 %v896, %v897
  %v1453 = vadd.f32 %v897, %v898
  %v1454 = vadd.f32 %v900, %v901
  %v1455 = vadd.f32 %v901, %v902
  %v1456 = vadd.f32 %v902, %v903
  %v1457 = vadd.f32 %v903, %v904
  %v1458 = vadd.f32 %v904, %v905
  %v1459 = vadd.f32 %v905, %v906
  %v1460 = vadd.f32 %v906, %v907
  %v1461 = vadd.f32 %v907, %v908
  %v1462 = vadd.f32 %v908, %v909
  %v1463 = vadd.f32 %v909, %v910
  %v1464 = vadd.f32 %v910, %v911
  %v1465 = vadd.f32 %v911, %v912
  %v1466 = vadd.f32 %v912, %v913
  %v1467 = vadd.f32 %v913, %v914
  %v1468 = vadd.f32 %v914, %v915
  %v1469 = vadd.f32 %v915, %v916
  %v1470 = vadd.f32 %v918, %v919
  %v1471 = vadd.f32 %v919, %v920
  %v1472 = vadd.f32 %v920, %v921
  %v1473 = vadd.f32 %v921, %v922
  %v1474 = vadd.f32 %v922, %v923
  %v1475 = vadd.f32 %v923, %v924
  %v1476 = vadd.f32 %v924, %v925
  %v1477 = vadd.f32 %v925, %v926
  %v1478 = vadd.f32 %v926, %v927
  %v1479 = vadd.f32 %v927, %v928
  %v1480 = vadd.f32 %v928, %v929
  %v1481 = vadd.f32 %v929, %v930
  %v1482 = vadd.f32 %v930, %v931
  %v1483 = vadd.f32 %v931, %v932
  %v1484 = vadd.f32 %v932, %v933
  %v1485 = vadd.f32 %v933, %v934
  %v1486 = vadd.f32 %v936, %v937
  %v1487 = vadd.f32 %v937, %v938
  %v1488 = vadd.f32 %v938, %v939
  %v1489 = vadd.f32 %v939, %v940
  %v1490 = vadd.f32 %v940, %v941
  %v1491 = vadd.f32 %v941, %v942
  %v1492 = vadd.f32 %v942, %v943
  %v1493 = vadd.f32 %v943, %v944
  %v1494 = vadd.f32 %v944, %v945
  %v1495 = vadd.f32 %v945, %v946
  %v1496 = vadd.f32 %v946, %v947
  %v1497 = vadd.f32 %v947, %v948
  %v1498 = vadd.f32 %v948, %v949
  %v1499 = vadd.f32 %v949, %v950
  %v1500 = vadd.f32 %v950, %v951
  %v1501 = vadd.f32 %v951, %v952
  %v1502 = vmax.f32 %v990, %v20
  %v1503 = vmax.f32 %v991, %v21
  %v1504 = vmax.f32 %v992, %v22
  %v1505 = vmax.f32 %v993, %v23
  %v1506 = vmax.f32 %v994, %v24
  %v1507 = vmax.f32 %v995, %v25
  %v1508 = vmax.f32 %v996, %v26
  %v1509 = vmax.f32 %v997, %v27
  %v1510 = vmax.f32 %v998, %v28
  %v1511 = vmax.f32 %v999, %v29
  %v1512 = vmax.f32 %v1000, %v30
  %v1513 = vmax.f32 %v1001, %v31
  %v1514 = vmax.f32 %v1002, %v32
  %v1515 = vmax.f32 %v1003, %v33
  %v1516 = vmax.f32 %v1004, %v34
  %v1517 = vmax.f32 %v1005, %v35
  %v1518 = vmax.f32 %v1006, %v38
  %v1519 = vmax.f32 %v1007, %v39
  %v1520 = vmax.f32 %v1008, %v40
  %v1521 = vmax.f32 %v1009, %v41
  %v1522 = vmax.f32 %v1010, %v42
  %v1523 = vmax.f32 %v1011, %v43
  %v1524 = vmax.f32 %v1012, %v44
  %v1525 = vmax.f32 %v1013, %v45
  %v1526 = vmax.f32 %v1014, %v46
  %v1527 = vmax.f32 %v1015, %v47
  %v1528 = vmax.f32 %v1016, %v48
  %v1529 = vmax.f32 %v1017, %v49
  %v1530 = vmax.f32 %v1018, %v50
  %v1531 = vmax.f32 %v1019, %v51
  %v1532 = vmax.f32 %v1020, %v52
  %v1533 = vmax.f32 %v1021, %v53
  %v1534 = vmax.f32 %v1022, %v56
  %v1535 = vmax.f32 %v1023, %v57
  %v1536 = vmax.f32 %v1024, %v58
  %v1537 = vmax.f32 %v1025, %v59
  %v1538 = vmax.f32 %v1026, %v60
  %v1539 = vmax.f32 %v1027, %v61
  %v1540 = vmax.f32 %v1028, %v62
  %v1541 = vmax.f32 %v1029, %v63
  %v1542 = vmax.f32 %v1030, %v64
  %v1543 = vmax.f32 %v1031, %v65
  %v1544 = vmax.f32 %v1032, %v66
  %v1545 = vmax.f32 %v1033, %v67
  %v1546 = vmax.f32 %v1034, %v68
  %v1547 = vmax.f32 %v1035, %v69
  %v1548 = vmax.f32 %v1036, %v70
  %v1549 = vmax.f32 %v1037, %v71
  %v1550 = vmax.f32 %v1038, %v74
  %v1551 = vmax.f32 %v1039, %v75
  %v1552 = vmax.f32 %v1040, %v76
  %v1553 = vmax.f32 %v1041, %v77
  %v1554 = vmax.f32 %v1042, %v78
  %v1555 = vmax.f32 %v1043, %v79
  %v1556 = vmax.f32 %v1044, %v80
  %v1557 = vmax.f32 %v1045, %v81
  %v1558 = vmax.f32 %v1046, %v82
  %v1559 = vmax.f32 %v1047, %v83
  %v1560 = vmax.f32 %v1048, %v84
  %v1561 = vmax.f32 %v1049, %v85
  %v1562 = vmax.f32 %v1050, %v86
  %v1563 = vmax.f32 %v1051, %v87
  %v1564 = vmax.f32 %v1052, %v88
  %v1565 = vmax.f32 %v1053, %v89
  %v1566 = vmax.f32 %v1054, %v92
  %v1567 = vmax.f32 %v1055, %v93
  %v1568 = vmax.f32 %v1056, %v94
  %v1569 = vmax.f32 %v1057, %v95
  %v1570 = vmax.f32 %v1058, %v96
  %v1571 = vmax.f32 %v1059, %v97
  %v1572 = vmax.f32 %v1060, %v98
  %v1573 = vmax.f32 %v1061, %v99
  %v1574 = vmax.f32 %v1062, %v100
  %v1575 = vmax.f32 %v1063, %v101
  %v1576 = vmax.f32 %v1064, %v102
  %v1577 = vmax.f32 %v1065, %v103
  %v1578 = vmax.f32 %v1066, %v104
  %v1579 = vmax.f32 %v1067, %v105
  %v1580 = vmax.f32 %v1068, %v106
  %v1581 = vmax.f32 %v1069, %v107
  %v1582 = vmax.f32 %v1070, %v110
  %v1583 = vmax.f32 %v1071, %v111
  %v1584 = vmax.f32 %v1072, %v112
  %v1585 = vmax.f32 %v1073, %v113
  %v1586 = vmax.f32 %v1074, %v114
  %v1587 = vmax.f32 %v1075, %v115
  %v1588 = vmax.f32 %v1076, %v116
  %v1589 = vmax.f32 %v1077, %v117
  %v1590 = vmax.f32 %v1078, %v118
  %v1591 = vmax.f32 %v1079, %v119
  %v1592 = vmax.f32 %v1080, %v120
  %v1593 = vmax.f32 %v1081, %v121
  %v1594 = vmax.f32 %v1082, %v122
  %v1595 = vmax.f32 %v1083, %v123
  %v1596 = vmax.f32 %v1084, %v124
  %v1597 = vmax.f32 %v1085, %v125
  %v1598 = vmax.f32 %v1086, %v128
  %v1599 = vmax.f32 %v1087, %v129
  %v1600 = vmax.f32 %v1088, %v130
  %v1601 = vmax.f32 %v1089, %v131
  %v1602 = vmax.f32 %v1090, %v132
  %v1603 = vmax.f32 %v1091, %v133
  %v1604 = vmax.f32 %v1092, %v134
  %v1605 = vmax.f32 %v1093, %v135
  %v1606 = vmax.f32 %v1094, %v136
  %v1607 = vmax.f32 %v1095, %v137
  %v1608 = vmax.f32 %v1096, %v138
  %v1609 = vmax.f32 %v1097, %v139
  %v1610 = vmax.f32 %v1098, %v140
  %v1611 = vmax.f32 %v1099, %v141
  %v1612 = vmax.f32 %v1100, %v142
  %v1613 = vmax.f32 %v1101, %v143
  %v1614 = vmax.f32 %v1102, %v146
  %v1615 = vmax.f32 %v1103, %v147
  %v1616 = vmax.f32 %v1104, %v148
  %v1617 = vmax.f32 %v1105, %v149
  %v1618 = vmax.f32 %v1106, %v150
  %v1619 = vmax.f32 %v1107, %v151
  %v1620 = vmax.f32 %v1108, %v152
  %v1621 = vmax.f32 %v1109, %v153
  %v1622 = vmax.f32 %v1110, %v154
  %v1623 = vmax.f32 %v1111, %v155
  %v1624 = vmax.f32 %v1112, %v156
  %v1625 = vmax.f32 %v1113, %v157
  %v1626 = vmax.f32 %v1114, %v158
  %v1627 = vmax.f32 %v1115, %v159
  %v1628 = vmax.f32 %v1116, %v160
  %v1629 = vmax.f32 %v1117, %v161
  %v1630 = vmax.f32 %v1118, %v164
  %v1631 = vmax.f32 %v1119, %v165
  %v1632 = vmax.f32 %v1120, %v166
  %v1633 = vmax.f32 %v1121, %v167
  %v1634 = vmax.f32 %v1122, %v168
  %v1635 = vmax.f32 %v1123, %v169
  %v1636 = vmax.f32 %v1124, %v170
  %v1637 = vmax.f32 %v1125, %v171
  %v1638 = vmax.f32 %v1126, %v172
  %v1639 = vmax.f32 %v1127, %v173
  %v1640 = vmax.f32 %v1128, %v174
  %v1641 = vmax.f32 %v1129, %v175
  %v1642 = vmax.f32 %v1130, %v176
  %v1643 = vmax.f32 %v1131, %v177
  %v1644 = vmax.f32 %v1132, %v178
  %v1645 = vmax.f32 %v1133, %v179
  %v1646 = vmax.f32 %v1134, %v182
  %v1647 = vmax.f32 %v1135, %v183
  %v1648 = vmax.f32 %v1136, %v184
  %v1649 = vmax.f32 %v1137, %v185
  %v1650 = vmax.f32 %v1138, %v186
  %v1651 = vmax.f32 %v1139, %v187
  %v1652 = vmax.f32 %v1140, %v188
  %v1653 = vmax.f32 %v1141, %v189
  %v1654 = vmax.f32 %v1142, %v190
  %v1655 = vmax.f32 %v1143, %v191
  %v1656 = vmax.f32 %v1144, %v192
  %v1657 = vmax.f32 %v1145, %v193
  %v1658 = vmax.f32 %v1146, %v194
  %v1659 = vmax.f32 %v1147, %v195
  %v1660 = vmax.f32 %v1148, %v196
  %v1661 = vmax.f32 %v1149, %v197
  %v1662 = vmax.f32 %v1150, %v200
  %v1663 = vmax.f32 %v1151, %v201
  %v1664 = vmax.f32 %v1152, %v202
  %v1665 = vmax.f32 %v1153, %v203
  %v1666 = vmax.f32 %v1154, %v204
  %v1667 = vmax.f32 %v1155, %v205
  %v1668 = vmax.f32 %v1156, %v206
  %v1669 = vmax.f32 %v1157, %v207
  %v1670 = vmax.f32 %v1158, %v208
  %v1671 = vmax.f32 %v1159, %v209
  %v1672 = vmax.f32 %v1160, %v210
  %v1673 = vmax.f32 %v1161, %v211
  %v1674 = vmax.f32 %v1162, %v212
  %v1675 = vmax.f32 %v1163, %v213
  %v1676 = vmax.f32 %v1164, %v214
  %v1677 = vmax.f32 %v1165, %v215
  %v1678 = vmax.f32 %v1166, %v218
  %v1679 = vmax.f32 %v1167, %v219
  %v1680 = vmax.f32 %v1168, %v220
  %v1681 = vmax.f32 %v1169, %v221
  %v1682 = vmax.f32 %v1170, %v222
  %v1683 = vmax.f32 %v1171, %v223
  %v1684 = vmax.f32 %v1172, %v224
  %v1685 = vmax.f32 %v1173, %v225
  %v1686 = vmax.f32 %v1174, %v226
  %v1687 = vmax.f32 %v1175, %v227
  %v1688 = vmax.f32 %v1176, %v228
  %v1689 = vmax.f32 %v1177, %v229
  %v1690 = vmax.f32 %v1178, %v230
  %v1691 = vmax.f32 %v1179, %v231
  %v1692 = vmax.f32 %v1180, %v232
  %v1693 = vmax.f32 %v1181, %v233
  %v1694 = vmax.f32 %v1182, %v236
  %v1695 = vmax.f32 %v1183, %v237
  %v1696 = vmax.f32 %v1184, %v238
  %v1697 = vmax.f32 %v1185, %v239
  %v1698 = vmax.f32 %v1186, %v240
  %v1699 = vmax.f32 %v1187, %v241
  %v1700 = vmax.f32 %v1188, %v242
  %v1701 = vmax.f32 %v1189, %v243
  %v1702 = vmax.f32 %v1190, %v244
  %v1703 = vmax.f32 %v1191, %v245
  %v1704 = vmax.f32 %v1192, %v246
  %v1705 = vmax.f32 %v1193, %v247
  %v1706 = vmax.f32 %v1194, %v248
  %v1707 = vmax.f32 %v1195, %v249
  %v1708 = vmax.f32 %v1196, %v250
  %v1709 = vmax.f32 %v1197, %v251
  %v1710 = vmax.f32 %v1198, %v254
  %v1711 = vmax.f32 %v1199, %v255
  %v1712 = vmax.f32 %v1200, %v256
  %v1713 = vmax.f32 %v1201, %v257
  %v1714 = vmax.f32 %v1202, %v258
  %v1715 = vmax.f32 %v1203, %v259
  %v1716 = vmax.f32 %v1204, %v260
  %v1717 = vmax.f32 %v1205, %v261
  %v1718 = vmax.f32 %v1206, %v262
  %v1719 = vmax.f32 %v1207, %v263
  %v1720 = vmax.f32 %v1208, %v264
  %v1721 = vmax.f32 %v1209, %v265
  %v1722 = vmax.f32 %v1210, %v266
  %v1723 = vmax.f32 %v1211, %v267
  %v1724 = vmax.f32 %v1212, %v268
  %v1725 = vmax.f32 %v1213, %v269
  %v1726 = vmax.f32 %v1214, %v272
  %v1727 = vmax.f32 %v1215, %v273
  %v1728 = vmax.f32 %v1216, %v274
  %v1729 = vmax.f32 %v1217, %v275
  %v1730 = vmax.f32 %v1218, %v276
  %v1731 = vmax.f32 %v1219, %v277
  %v1732 = vmax.f32 %v1220, %v278
  %v1733 = vmax.f32 %v1221, %v279
  %v1734 = vmax.f32 %v1222, %v280
  %v1735 = vmax.f32 %v1223, %v281
  %v1736 = vmax.f32 %v1224, %v282
  %v1737 = vmax.f32 %v1225, %v283
  %v1738 = vmax.f32 %v1226, %v284
  %v1739 = vmax.f32 %v1227, %v285
  %v1740 = vmax.f32 %v1228, %v286
  %v1741 = vmax.f32 %v1229, %v287
  %v1742 = vmax.f32 %v1230, %v290
  %v1743 = vmax.f32 %v1231, %v291
  %v1744 = vmax.f32 %v1232, %v292
  %v1745 = vmax.f32 %v1233, %v293
  %v1746 = vmax.f32 %v1234, %v294
  %v1747 = vmax.f32 %v1235, %v295
  %v1748 = vmax.f32 %v1236, %v296
  %v1749 = vmax.f32 %v1237, %v297
  %v1750 = vmax.f32 %v1238, %v298
  %v1751 = vmax.f32 %v1239, %v299
  %v1752 = vmax.f32 %v1240, %v300
  %v1753 = vmax.f32 %v1241, %v301
  %v1754 = vmax.f32 %v1242, %v302
  %v1755 = vmax.f32 %v1243, %v303
  %v1756 = vmax.f32 %v1244, %v304
  %v1757 = vmax.f32 %v1245, %v305
  %v1758 = vadd.f32 %v1246, %v668
  %v1759 = vadd.f32 %v1247, %v669
  %v1760 = vadd.f32 %v1248, %v670
  %v1761 = vadd.f32 %v1249, %v671
  %v1762 = vadd.f32 %v1250, %v672
  %v1763 = vadd.f32 %v1251, %v673
  %v1764 = vadd.f32 %v1252, %v674
  %v1765 = vadd.f32 %v1253, %v675
  %v1766 = vadd.f32 %v1254, %v676
  %v1767 = vadd.f32 %v1255, %v677
  %v1768 = vadd.f32 %v1256, %v678
  %v1769 = vadd.f32 %v1257, %v679
  %v1770 = vadd.f32 %v1258, %v680
  %v1771 = vadd.f32 %v1259, %v681
  %v1772 = vadd.f32 %v1260, %v682
  %v1773 = vadd.f32 %v1261, %v683
  %v1774 = vadd.f32 %v1262, %v686
  %v1775 = vadd.f32 %v1263, %v687
  %v1776 = vadd.f32 %v1264, %v688
  %v1777 = vadd.f32 %v1265, %v689
  %v1778 = vadd.f32 %v1266, %v690
  %v1779 = vadd.f32 %v1267, %v691
  %v1780 = vadd.f32 %v1268, %v692
  %v1781 = vadd.f32 %v1269, %v693
  %v1782 = vadd.f32 %v1270, %v694
  %v1783 = vadd.f32 %v1271, %v695
  %v1784 = vadd.f32 %v1272, %v696
  %v1785 = vadd.f32 %v1273, %v697
  %v1786 = vadd.f32 %v1274, %v698
  %v1787 = vadd.f32 %v1275, %v699
  %v1788 = vadd.f32 %v1276, %v700
  %v1789 = vadd.f32 %v1277, %v701
  %v1790 = vadd.f32 %v1278, %v704
  %v1791 = vadd.f32 %v1279, %v705
  %v1792 = vadd.f32 %v1280, %v706
  %v1793 = vadd.f32 %v1281, %v707
  %v1794 = vadd.f32 %v1282, %v708
  %v1795 = vadd.f32 %v1283, %v709
  %v1796 = vadd.f32 %v1284, %v710
  %v1797 = vadd.f32 %v1285, %v711
  %v1798 = vadd.f32 %v1286, %v712
  %v1799 = vadd.f32 %v1287, %v713
  %v1800 = vadd.f32 %v1288, %v714
  %v1801 = vadd.f32 %v1289, %v715
  %v1802 = vadd.f32 %v1290, %v716
  %v1803 = vadd.f32 %v1291, %v717
  %v1804 = vadd.f32 %v1292, %v718
  %v1805 = vadd.f32 %v1293, %v719
  %v1806 = vadd.f32 %v1294, %v722
  %v1807 = vadd.f32 %v1295, %v723
  %v1808 = vadd.f32 %v1296, %v724
  %v1809 = vadd.f32 %v1297, %v725
  %v1810 = vadd.f32 %v1298, %v726
  %v1811 = vadd.f32 %v1299, %v727
  %v1812 = vadd.f32 %v1300, %v728
  %v1813 = vadd.f32 %v1301, %v729
  %v1814 = vadd.f32 %v1302, %v730
  %v1815 = vadd.f32 %v1303, %v731
  %v1816 = vadd.f32 %v1304, %v732
  %v1817 = vadd.f32 %v1305, %v733
  %v1818 = vadd.f32 %v1306, %v734
  %v1819 = vadd.f32 %v1307, %v735
  %v1820 = vadd.f32 %v1308, %v736
  %v1821 = vadd.f32 %v1309, %v737
  %v1822 = vadd.f32 %v1310, %v740
  %v1823 = vadd.f32 %v1311, %v741
  %v1824 = vadd.f32 %v1312, %v742
  %v1825 = vadd.f32 %v1313, %v743
  %v1826 = vadd.f32 %v1314, %v744
  %v1827 = vadd.f32 %v1315, %v745
  %v1828 = vadd.f32 %v1316, %v746
  %v1829 = vadd.f32 %v1317, %v747
  %v1830 = vadd.f32 %v1318, %v748
  %v1831 = vadd.f32 %v1319, %v749
  %v1832 = vadd.f32 %v1320, %v750
  %v1833 = vadd.f32 %v1321, %v751
  %v1834 = vadd.f32 %v1322, %v752
  %v1835 = vadd.f32 %v1323, %v753
  %v1836 = vadd.f32 %v1324, %v754
  %v1837 = vadd.f32 %v1325, %v755
  %v1838 = vadd.f32 %v1326, %v758
  %v1839 = vadd.f32 %v1327, %v759
  %v1840 = vadd.f32 %v1328, %v760
  %v1841 = vadd.f32 %v1329, %v761
  %v1842 = vadd.f32 %v1330, %v762
  %v1843 = vadd.f32 %v1331, %v763
  %v1844 = vadd.f32 %v1332, %v764
  %v1845 = vadd.f32 %v1333, %v765
  %v1846 = vadd.f32 %v1334, %v766
  %v1847 = vadd.f32 %v1335, %v767
  %v1848 = vadd.f32 %v1336, %v768
  %v1849 = vadd.f32 %v1337, %v769
  %v1850 = vadd.f32 %v1338, %v770
  %v1851 = vadd.f32 %v1339, %v771
  %v1852 = vadd.f32 %v1340, %v772
  %v1853 = vadd.f32 %v1341, %v773
  %v1854 = vadd.f32 %v1342, %v776
  %v1855 = vadd.f32 %v1343, %v777
  %v1856 = vadd.f32 %v1344, %v778
  %v1857 = vadd.f32 %v1345, %v779
  %v1858 = vadd.f32 %v1346, %v780
  %v1859 = vadd.f32 %v1347, %v781
  %v1860 = vadd.f32 %v1348, %v782
  %v1861 = vadd.f32 %v1349, %v783
  %v1862 = vadd.f32 %v1350, %v784
  %v1863 = vadd.f32 %v1351, %v785
  %v1864 = vadd.f32 %v1352, %v786
  %v1865 = vadd.f32 %v1353, %v787
  %v1866 = vadd.f32 %v1354, %v788
  %v1867 = vadd.f32 %v1355, %v789
  %v1868 = vadd.f32 %v1356, %v790
  %v1869 = vadd.f32 %v1357, %v791
  %v1870 = vadd.f32 %v1358, %v794
  %v1871 = vadd.f32 %v1359, %v795
  %v1872 = vadd.f32 %v1360, %v796
  %v1873 = vadd.f32 %v1361, %v797
  %v1874 = vadd.f32 %v1362, %v798
  %v1875 = vadd.f32 %v1363, %v799
  %v1876 = vadd.f32 %v1364, %v800
  %v1877 = vadd.f32 %v1365, %v801
  %v1878 = vadd.f32 %v1366, %v802
  %v1879 = vadd.f32 %v1367, %v803
  %v1880 = vadd.f32 %v1368, %v804
  %v1881 = vadd.f32 %v1369, %v805
  %v1882 = vadd.f32 %v1370, %v806
  %v1883 = vadd.f32 %v1371, %v807
  %v1884 = vadd.f32 %v1372, %v808
  %v1885 = vadd.f32 %v1373, %v809
  %v1886 = vadd.f32 %v1374, %v812
  %v1887 = vadd.f32 %v1375, %v813
  %v1888 = vadd.f32 %v1376, %v814
  %v1889 = vadd.f32 %v1377, %v815
  %v1890 = vadd.f32 %v1378, %v816
  %v1891 = vadd.f32 %v1379, %v817
  %v1892 = vadd.f32 %v1380, %v818
  %v1893 = vadd.f32 %v1381, %v819
  %v1894 = vadd.f32 %v1382, %v820
  %v1895 = vadd.f32 %v1383, %v821
  %v1896 = vadd.f32 %v1384, %v822
  %v1897 = vadd.f32 %v1385, %v823
  %v1898 = vadd.f32 %v1386, %v824
  %v1899 = vadd.f32 %v1387, %v825
  %v1900 = vadd.f32 %v1388, %v826
  %v1901 = vadd.f32 %v1389, %v827
  %v1902 = vadd.f32 %v1390, %v830
  %v1903 = vadd.f32 %v1391, %v831
  %v1904 = vadd.f32 %v1392, %v832
  %v1905 = vadd.f32 %v1393, %v833
  %v1906 = vadd.f32 %v1394, %v834
  %v1907 = vadd.f32 %v1395, %v835
  %v1908 = vadd.f32 %v1396, %v836
  %v1909 = vadd.f32 %v1397, %v837
  %v1910 = vadd.f32 %v1398, %v838
  %v1911 = vadd.f32 %v1399, %v839
  %v1912 = vadd.f32 %v1400, %v840
  %v1913 = vadd.f32 %v1401, %v841
  %v1914 = vadd.f32 %v1402, %v842
  %v1915 = vadd.f32 %v1403, %v843
  %v1916 = vadd.f32 %v1404, %v844
  %v1917 = vadd.f32 %v1405, %v845
  %v1918 = vadd.f32 %v1406, %v848
  %v1919 = vadd.f32 %v1407, %v849
  %v1920 = vadd.f32 %v1408, %v850
  %v1921 = vadd.f32 %v1409, %v851
  %v1922 = vadd.f32 %v1410, %v852
  %v1923 = vadd.f32 %v1411, %v853
  %v1924 = vadd.f32 %v1412, %v854
  %v1925 = vadd.f32 %v1413, %v855
  %v1926 = vadd.f32 %v1414, %v856
  %v1927 = vadd.f32 %v1415, %v857
  %v1928 = vadd.f32 %v1416, %v858
  %v1929 = vadd.f32 %v1417, %v859
  %v1930 = vadd.f32 %v1418, %v860
  %v1931 = vadd.f32 %v1419, %v861
  %v1932 = vadd.f32 %v1420, %v862
  %v1933 = vadd.f32 %v1421, %v863
  %v1934 = vadd.f32 %v1422, %v866
  %v1935 = vadd.f32 %v1423, %v867
  %v1936 = vadd.f32 %v1424, %v868
  %v1937 = vadd.f32 %v1425, %v869
  %v1938 = vadd.f32 %v1426, %v870
  %v1939 = vadd.f32 %v1427, %v871
  %v1940 = vadd.f32 %v1428, %v872
  %v1941 = vadd.f32 %v1429, %v873
  %v1942 = vadd.f32 %v1430, %v874
  %v1943 = vadd.f32 %v1431, %v875
  %v1944 = vadd.f32 %v1432, %v876
  %v1945 = vadd.f32 %v1433, %v877
  %v1946 = vadd.f32 %v1434, %v878
  %v1947 = vadd.f32 %v1435, %v879
  %v1948 = vadd.f32 %v1436, %v880
  %v1949 = vadd.f32 %v1437, %v881
  %v1950 = vadd.f32 %v1438, %v884
  %v1951 = vadd.f32 %v1439, %v885
  %v1952 = vadd.f32 %v1440, %v886
  %v1953 = vadd.f32 %v1441, %v887
  %v1954 = vadd.f32 %v1442, %v888
  %v1955 = vadd.f32 %v1443, %v889
  %v1956 = vadd.f32 %v1444, %v890
  %v1957 = vadd.f32 %v1445, %v891
  %v1958 = vadd.f32 %v1446, %v892
  %v1959 = vadd.f32 %v1447, %v893
  %v1960 = vadd.f32 %v1448, %v894
  %v1961 = vadd.f32 %v1449, %v895
  %v1962 = vadd.f32 %v1450, %v896
  %v1963 = vadd.f32 %v1451, %v897
  %v1964 = vadd.f32 %v1452, %v898
  %v1965 = vadd.f32 %v1453, %v899
  %v1966 = vadd.f32 %v1454, %v902
  %v1967 = vadd.f32 %v1455, %v903
  %v1968 = vadd.f32 %v1456, %v904
  %v1969 = vadd.f32 %v1457, %v905
  %v1970 = vadd.f32 %v1458, %v906
  %v1971 = vadd.f32 %v1459, %v907
  %v1972 = vadd.f32 %v1460, %v908
  %v1973 = vadd.f32 %v1461, %v909
  %v1974 = vadd.f32 %v1462, %v910
  %v1975 = vadd.f32 %v1463, %v911
  %v1976 = vadd.f32 %v1464, %v912
  %v1977 = vadd.f32 %v1465, %v913
  %v1978 = vadd.f32 %v1466, %v914
  %v1979 = vadd.f32 %v1467, %v915
  %v1980 = vadd.f32 %v1468, %v916
  %v1981 = vadd.f32 %v1469, %v917
  %v1982 = vadd.f32 %v1470, %v920
  %v1983 = vadd.f32 %v1471, %v921
  %v1984 = vadd.f32 %v1472, %v922
  %v1985 = vadd.f32 %v1473, %v923
  %v1986 = vadd.f32 %v1474, %v924
  %v1987 = vadd.f32 %v1475, %v925
  %v1988 = vadd.f32 %v1476, %v926
  %v1989 = vadd.f32 %v1477, %v927
  %v1990 = vadd.f32 %v1478, %v928
  %v1991 = vadd.f32 %v1479, %v929
  %v1992 = vadd.f32 %v1480, %v930
  %v1993 = vadd.f32 %v1481, %v931
  %v1994 = vadd.f32 %v1482, %v932
  %v1995 = vadd.f32 %v1483, %v933
  %v1996 = vadd.f32 %v1484, %v934
  %v1997 = vadd.f32 %v1485, %v935
  %v1998 = vadd.f32 %v1486, %v938
  %v1999 = vadd.f32 %v1487, %v939
  %v2000 = vadd.f32 %v1488, %v940
  %v2001 = vadd.f32 %v1489, %v941
  %v2002 = vadd.f32 %v1490, %v942
  %v2003 = vadd.f32 %v1491, %v943
  %v2004 = vadd.f32 %v1492, %v944
  %v2005 = vadd.f32 %v1493, %v945
  %v2006 = vadd.f32 %v1494, %v946
  %v2007 = vadd.f32 %v1495, %v947
  %v2008 = vadd.f32 %v1496, %v948
  %v2009 = vadd.f32 %v1497, %v949
  %v2010 = vadd.f32 %v1498, %v950
  %v2011 = vadd.f32 %v1499, %v951
  %v2012 = vadd.f32 %v1500, %v952
  %v2013 = vadd.f32 %v1501, %v953
  %v2014 = vmax.f32 %v1502, %v36
  %v2015 = vmax.f32 %v1503, %v37
  %v2016 = vmax.f32 %v1504, %v38
  %v2017 = vmax.f32 %v1505, %v39
  %v2018 = vmax.f32 %v1506, %v40
  %v2019 = vmax.f32 %v1507, %v41
  %v2020 = vmax.f32 %v1508, %v42
  %v2021 = vmax.f32 %v1509, %v43
  %v2022 = vmax.f32 %v1510, %v44
  %v2023 = vmax.f32 %v1511, %v45
  %v2024 = vmax.f32 %v1512, %v46
  %v2025 = vmax.f32 %v1513, %v47
  %v2026 = vmax.f32 %v1514, %v48
  %v2027 = vmax.f32 %v1515, %v49
  %v2028 = vmax.f32 %v1516, %v50
  %v2029 = vmax.f32 %v1517, %v51
  %v2030 = vmax.f32 %v1518, %v54
  %v2031 = vmax.f32 %v1519, %v55
  %v2032 = vmax.f32 %v1520, %v56
  %v2033 = vmax.f32 %v1521, %v57
  %v2034 = vmax.f32 %v1522, %v58
  %v2035 = vmax.f32 %v1523, %v59
  %v2036 = vmax.f32 %v1524, %v60
  %v2037 = vmax.f32 %v1525, %v61
  %v2038 = vmax.f32 %v1526, %v62
  %v2039 = vmax.f32 %v1527, %v63
  %v2040 = vmax.f32 %v1528, %v64
  %v2041 = vmax.f32 %v1529, %v65
  %v2042 = vmax.f32 %v1530, %v66
  %v2043 = vmax.f32 %v1531, %v67
  %v2044 = vmax.f32 %v1532, %v68
  %v2045 = vmax.f32 %v1533, %v69
  %v2046 = vmax.f32 %v1534, %v72
  %v2047 = vmax.f32 %v1535, %v73
  %v2048 = vmax.f32 %v1536, %v74
  %v2049 = vmax.f32 %v1537, %v75
  %v2050 = vmax.f32 %v1538, %v76
  %v2051 = vmax.f32 %v1539, %v77
  %v2052 = vmax.f32 %v1540, %v78
  %v2053 = vmax.f32 %v1541, %v79
  %v2054 = vmax.f32 %v1542, %v80
  %v2055 = vmax.f32 %v1543, %v81
  %v2056 = vmax.f32 %v1544, %v82
  %v2057 = vmax.f32 %v1545, %v83
  %v2058 = vmax.f32 %v1546, %v84
  %v2059 = vmax.f32 %v1547, %v85
  %v2060 = vmax.f32 %v1548, %v86
  %v2061 = vmax.f32 %v1549, %v87
  %v2062 = vmax.f32 %v1550, %v90
  %v2063 = vmax.f32 %v1551, %v91
  %v2064 = vmax.f32 %v1552, %v92
  %v2065 = vmax.f32 %v1553, %v93
  %v2066 = vmax.f32 %v1554, %v94
  %v2067 = vmax.f32 %v1555, %v95
  %v2068 = vmax.f32 %v1556, %v96
  %v2069 = vmax.f32 %v1557, %v97
  %v2070 = vmax.f32 %v1558, %v98
  %v2071 = vmax.f32 %v1559, %v99
  %v2072 = vmax.f32 %v1560, %v100
  %v2073 = vmax.f32 %v1561, %v101
  %v2074 = vmax.f32 %v1562, %v102
  %v2075 = vmax.f32 %v1563, %v103
  %v2076 = vmax.f32 %v1564, %v104
  %v2077 = vmax.f32 %v1565, %v105
  %v2078 = vmax.f32 %v1566, %v108
  %v2079 = vmax.f32 %v1567, %v109
  %v2080 = vmax.f32 %v1568, %v110
  %v2081 = vmax.f32 %v1569, %v111
  %v2082 = vmax.f32 %v1570, %v112
  %v2083 = vmax.f32 %v1571, %v113
  %v2084 = vmax.f32 %v1572, %v114
  %v2085 = vmax.f32 %v1573, %v115
  %v2086 = vmax.f32 %v1574, %v116
  %v2087 = vmax.f32 %v1575, %v117
  %v2088 = vmax.f32 %v1576, %v118
  %v2089 = vmax.f32 %v1577, %v119
  %v2090 = vmax.f32 %v1578, %v120
  %v2091 = vmax.f32 %v1579, %v121
  %v2092 = vmax.f32 %v1580, %v122
  %v2093 = vmax.f32 %v1581, %v123
  %v2094 = vmax.f32 %v1582, %v126
  %v2095 = vmax.f32 %v1583, %v127
  %v2096 = vmax.f32 %v1584, %v128
  %v2097 = vmax.f32 %v1585, %v129
  %v2098 = vmax.f32 %v1586, %v130
  %v2099 = vmax.f32 %v1587, %v131
  %v2100 = vmax.f32 %v1588, %v132
  %v2101 = vmax.f32 %v1589, %v133
  %v2102 = vmax.f32 %v1590, %v134
  %v2103 = vmax.f32 %v1591, %v135
  %v2104 = vmax.f32 %v1592, %v136
  %v2105 = vmax.f32 %v1593, %v137
  %v2106 = vmax.f32 %v1594, %v138
  %v2107 = vmax.f32 %v1595, %v139
  %v2108 = vmax.f32 %v1596, %v140
  %v2109 = vmax.f32 %v1597, %v141
  %v2110 = vmax.f32 %v1598, %v144
  %v2111 = vmax.f32 %v1599, %v145
  %v2112 = vmax.f32 %v1600, %v146
  %v2113 = vmax.f32 %v1601, %v147
  %v2114 = vmax.f32 %v1602, %v148
  %v2115 = vmax.f32 %v1603, %v149
  %v2116 = vmax.f32 %v1604, %v150
  %v2117 = vmax.f32 %v1605, %v151
  %v2118 = vmax.f32 %v1606, %v152
  %v2119 = vmax.f32 %v1607, %v153
  %v2120 = vmax.f32 %v1608, %v154
  %v2121 = vmax.f32 %v1609, %v155
  %v2122 = vmax.f32 %v1610, %v156
  %v2123 = vmax.f32 %v1611, %v157
  %v2124 = vmax.f32 %v1612, %v158
  %v2125 = vmax.f32 %v1613, %v159
  %v2126 = vmax.f32 %v1614, %v162
  %v2127 = vmax.f32 %v1615, %v163
  %v2128 = vmax.f32 %v1616, %v164
  %v2129 = vmax.f32 %v1617, %v165
  %v2130 = vmax.f32 %v1618, %v166
  %v2131 = vmax.f32 %v1619, %v167
  %v2132 = vmax.f32 %v1620, %v168
  %v2133 = vmax.f32 %v1621, %v169
  %v2134 = vmax.f32 %v1622, %v170
  %v2135 = vmax.f32 %v1623, %v171
  %v2136 = vmax.f32 %v1624, %v172
  %v2137 = vmax.f32 %v1625, %v173
  %v2138 = vmax.f32 %v1626, %v174
  %v2139 = vmax.f32 %v1627, %v175
  %v2140 = vmax.f32 %v1628, %v176
  %v2141 = vmax.f32 %v1629, %v177
  %v2142 = vmax.f32 %v1630, %v180
  %v2143 = vmax.f32 %v1631, %v181
  %v2144 = vmax.f32 %v1632, %v182
  %v2145 = vmax.f32 %v1633, %v183
  %v2146 = vmax.f32 %v1634, %v184
  %v2147 = vmax.f32 %v1635, %v185
  %v2148 = vmax.f32 %v1636, %v186
  %v2149 = vmax.f32 %v1637, %v187
  %v2150 = vmax.f32 %v1638, %v188
  %v2151 = vmax.f32 %v1639, %v189
  %v2152 = vmax.f32 %v1640, %v190
  %v2153 = vmax.f32 %v1641, %v191
  %v2154 = vmax.f32 %v1642, %v192
  %v2155 = vmax.f32 %v1643, %v193
  %v2156 = vmax.f32 %v1644, %v194
  %v2157 = vmax.f32 %v1645, %v195
  %v2158 = vmax.f32 %v1646, %v198
  %v2159 = vmax.f32 %v1647, %v199
  %v2160 = vmax.f32 %v1648, %v200
  %v2161 = vmax.f32 %v1649, %v201
  %v2162 = vmax.f32 %v1650, %v202
  %v2163 = vmax.f32 %v1651, %v203
  %v2164 = vmax.f32 %v1652, %v204
  %v2165 = vmax.f32 %v1653, %v205
  %v2166 = vmax.f32 %v1654, %v206
  %v2167 = vmax.f32 %v1655, %v207
  %v2168 = vmax.f32 %v1656, %v208
  %v2169 = vmax.f32 %v1657, %v209
  %v2170 = vmax.f32 %v1658, %v210
  %v2171 = vmax.f32 %v1659, %v211
  %v2172 = vmax.f32 %v1660, %v212
  %v2173 = vmax.f32 %v1661, %v213
  %v2174 = vmax.f32 %v1662, %v216
  %v2175 = vmax.f32 %v1663, %v217
  %v2176 = vmax.f32 %v1664, %v218
  %v2177 = vmax.f32 %v1665, %v219
  %v2178 = vmax.f32 %v1666, %v220
  %v2179 = vmax.f32 %v1667, %v221
  %v2180 = vmax.f32 %v1668, %v222
  %v2181 = vmax.f32 %v1669, %v223
  %v2182 = vmax.f32 %v1670, %v224
  %v2183 = vmax.f32 %v1671, %v225
  %v2184 = vmax.f32 %v1672, %v226
  %v2185 = vmax.f32 %v1673, %v227
  %v2186 = vmax.f32 %v1674, %v228
  %v2187 = vmax.f32 %v1675, %v229
  %v2188 = vmax.f32 %v1676, %v230
  %v2189 = vmax.f32 %v1677, %v231
  %v2190 = vmax.f32 %v1678, %v234
  %v2191 = vmax.f32 %v1679, %v235
  %v2192 = vmax.f32 %v1680, %v236
  %v2193 = vmax.f32 %v1681, %v237
  %v2194 = vmax.f32 %v1682, %v238
  %v2195 = vmax.f32 %v1683, %v239
  %v2196 = vmax.f32 %v1684, %v240
  %v2197 = vmax.f32 %v1685, %v241
  %v2198 = vmax.f32 %v1686, %v242
  %v2199 = vmax.f32 %v1687, %v243
  %v2200 = vmax.f32 %v1688, %v244
  %v2201 = vmax.f32 %v1689, %v245
  %v2202 = vmax.f32 %v1690, %v246
  %v2203 = vmax.f32 %v1691, %v247
  %v2204 = vmax.f32 %v1692, %v248
  %v2205 = vmax.f32 %v1693, %v249
  %v2206 = vmax.f32 %v1694, %v252
  %v2207 = vmax.f32 %v1695, %v253
  %v2208 = vmax.f32 %v1696, %v254
  %v2209 = vmax.f32 %v1697, %v255
  %v2210 = vmax.f32 %v1698, %v256
  %v2211 = vmax.f32 %v1699, %v257
  %v2212 = vmax.f32 %v1700, %v258
  %v2213 = vmax.f32 %v1701, %v259
  %v2214 = vmax.f32 %v1702, %v260
  %v2215 = vmax.f32 %v1703, %v261
  %v2216 = vmax.f32 %v1704, %v262
  %v2217 = vmax.f32 %v1705, %v263
  %v2218 = vmax.f32 %v1706, %v264
  %v2219 = vmax.f32 %v1707, %v265
  %v2220 = vmax.f32 %v1708, %v266
  %v2221 = vmax.f32 %v1709, %v267
  %v2222 = vmax.f32 %v1710, %v270
  %v2223 = vmax.f32 %v1711, %v271
  %v2224 = vmax.f32 %v1712, %v272
  %v2225 = vmax.f32 %v1713, %v273
  %v2226 = vmax.f32 %v1714, %v274
  %v2227 = vmax.f32 %v1715, %v275
  %v2228 = vmax.f32 %v1716, %v276
  %v2229 = vmax.f32 %v1717, %v277
  %v2230 = vmax.f32 %v1718, %v278
  %v2231 = vmax.f32 %v1719, %v279
  %v2232 = vmax.f32 %v1720, %v280
  %v2233 = vmax.f32 %v1721, %v281
  %v2234 = vmax.f32 %v1722, %v282
  %v2235 = vmax.f32 %v1723, %v283
  %v2236 = vmax.f32 %v1724, %v284
  %v2237 = vmax.f32 %v1725, %v285
  %v2238 = vmax.f32 %v1726, %v288
  %v2239 = vmax.f32 %v1727, %v289
  %v2240 = vmax.f32 %v1728, %v290
  %v2241 = vmax.f32 %v1729, %v291
  %v2242 = vmax.f32 %v1730, %v292
  %v2243 = vmax.f32 %v1731, %v293
  %v2244 = vmax.f32 %v1732, %v294
  %v2245 = vmax.f32 %v1733, %v295
  %v2246 = vmax.f32 %v1734, %v296
  %v2247 = vmax.f32 %v1735, %v297
  %v2248 = vmax.f32 %v1736, %v298
  %v2249 = vmax.f32 %v1737, %v299
  %v2250 = vmax.f32 %v1738, %v300
  %v2251 = vmax.f32 %v1739, %v301
  %v2252 = vmax.f32 %v1740, %v302
  %v2253 = vmax.f32 %v1741, %v303
  %v2254 = vmax.f32 %v1742, %v306
  %v2255 = vmax.f32 %v1743, %v307
  %v2256 = vmax.f32 %v1744, %v308
  %v2257 = vmax.f32 %v1745, %v309
  %v2258 = vmax.f32 %v1746, %v310
  %v2259 = vmax.f32 %v1747, %v311
  %v2260 = vmax.f32 %v1748, %v312
  %v2261 = vmax.f32 %v1749, %v313
  %v2262 = vmax.f32 %v1750, %v314
  %v2263 = vmax.f32 %v1751, %v315
  %v2264 = vmax.f32 %v1752, %v316
  %v2265 = vmax.f32 %v1753, %v317
  %v2266 = vmax.f32 %v1754, %v318
  %v2267 = vmax.f32 %v1755, %v319
  %v2268 = vmax.f32 %v1756, %v320
  %v2269 = vmax.f32 %v1757, %v321
  %v2270 = vadd.f32 %v1758, %v684
  %v2271 = vadd.f32 %v1759, %v685
  %v2272 = vadd.f32 %v1760, %v686
  %v2273 = vadd.f32 %v1761, %v687
  %v2274 = vadd.f32 %v1762, %v688
  %v2275 = vadd.f32 %v1763, %v689
  %v2276 = vadd.f32 %v1764, %v690
  %v2277 = vadd.f32 %v1765, %v691
  %v2278 = vadd.f32 %v1766, %v692
  %v2279 = vadd.f32 %v1767, %v693
  %v2280 = vadd.f32 %v1768, %v694
  %v2281 = vadd.f32 %v1769, %v695
  %v2282 = vadd.f32 %v1770, %v696
  %v2283 = vadd.f32 %v1771, %v697
  %v2284 = vadd.f32 %v1772, %v698
  %v2285 = vadd.f32 %v1773, %v699
  %v2286 = vadd.f32 %v1774, %v702
  %v2287 = vadd.f32 %v1775, %v703
  %v2288 = vadd.f32 %v1776, %v704
  %v2289 = vadd.f32 %v1777, %v705
  %v2290 = vadd.f32 %v1778, %v706
  %v2291 = vadd.f32 %v1779, %v707
  %v2292 = vadd.f32 %v1780, %v708
  %v2293 = vadd.f32 %v1781, %v709
  %v2294 = vadd.f32 %v1782, %v710
  %v2295 = vadd.f32 %v1783, %v711
  %v2296 = vadd.f32 %v1784, %v712
  %v2297 = vadd.f32 %v1785, %v713
  %v2298 = vadd.f32 %v1786, %v714
  %v2299 = vadd.f32 %v1787, %v715
  %v2300 = vadd.f32 %v1788, %v716
  %v2301 = vadd.f32 %v1789, %v717
  %v2302 = vadd.f32 %v1790, %v720
  %v2303 = vadd.f32 %v1791, %v721
  %v2304 = vadd.f32 %v1792, %v722
  %v2305 = vadd.f32 %v1793, %v723
  %v2306 = vadd.f32 %v1794, %v724
  %v2307 = vadd.f32 %v1795, %v725
  %v2308 = vadd.f32 %v1796, %v726
  %v2309 = vadd.f32 %v1797, %v727
  %v2310 = vadd.f32 %v1798, %v728
  %v2311 = vadd.f32 %v1799, %v729
  %v2312 = vadd.f32 %v1800, %v730
  %v2313 = vadd.f32 %v1801, %v731
  %v2314 = vadd.f32 %v1802, %v732
  %v2315 = vadd.f32 %v1803, %v733
  %v2316 = vadd.f32 %v1804, %v734
  %v2317 = vadd.f32 %v1805, %v735
  %v2318 = vadd.f32 %v1806, %v738
  %v2319 = vadd.f32 %v1807, %v739
  %v2320 = vadd.f32 %v1808, %v740
  %v2321 = vadd.f32 %v1809, %v741
  %v2322 = vadd.f32 %v1810, %v742
  %v2323 = vadd.f32 %v1811, %v743
  %v2324 = vadd.f32 %v1812, %v744
  %v2325 = vadd.f32 %v1813, %v745
  %v2326 = vadd.f32 %v1814, %v746
  %v2327 = vadd.f32 %v1815, %v747
  %v2328 = vadd.f32 %v1816, %v748
  %v2329 = vadd.f32 %v1817, %v749
  %v2330 = vadd.f32 %v1818, %v750
  %v2331 = vadd.f32 %v1819, %v751
  %v2332 = vadd.f32 %v1820, %v752
  %v2333 = vadd.f32 %v1821, %v753
  %v2334 = vadd.f32 %v1822, %v756
  %v2335 = vadd.f32 %v1823, %v757
  %v2336 = vadd.f32 %v1824, %v758
  %v2337 = vadd.f32 %v1825, %v759
  %v2338 = vadd.f32 %v1826, %v760
  %v2339 = vadd.f32 %v1827, %v761
  %v2340 = vadd.f32 %v1828, %v762
  %v2341 = vadd.f32 %v1829, %v763
  %v2342 = vadd.f32 %v1830, %v764
  %v2343 = vadd.f32 %v1831, %v765
  %v2344 = vadd.f32 %v1832, %v766
  %v2345 = vadd.f32 %v1833, %v767
  %v2346 = vadd.f32 %v1834, %v768
  %v2347 = vadd.f32 %v1835, %v769
  %v2348 = vadd.f32 %v1836, %v770
  %v2349 = vadd.f32 %v1837, %v771
  %v2350 = vadd.f32 %v1838, %v774
  %v2351 = vadd.f32 %v1839, %v775
  %v2352 = vadd.f32 %v1840, %v776
  %v2353 = vadd.f32 %v1841, %v777
  %v2354 = vadd.f32 %v1842, %v778
  %v2355 = vadd.f32 %v1843, %v779
  %v2356 = vadd.f32 %v1844, %v780
  %v2357 = vadd.f32 %v1845, %v781
  %v2358 = vadd.f32 %v1846, %v782
  %v2359 = vadd.f32 %v1847, %v783
  %v2360 = vadd.f32 %v1848, %v784
  %v2361 = vadd.f32 %v1849, %v785
  %v2362 = vadd.f32 %v1850, %v786
  %v2363 = vadd.f32 %v1851, %v787
  %v2364 = vadd.f32 %v1852, %v788
  %v2365 = vadd.f32 %v1853, %v789
  %v2366 = vadd.f32 %v1854, %v792
  %v2367 = vadd.f32 %v1855, %v793
  %v2368 = vadd.f32 %v1856, %v794
  %v2369 = vadd.f32 %v1857, %v795
  %v2370 = vadd.f32 %v1858, %v796
  %v2371 = vadd.f32 %v1859, %v797
  %v2372 = vadd.f32 %v1860, %v798
  %v2373 = vadd.f32 %v1861, %v799
  %v2374 = vadd.f32 %v1862, %v800
  %v2375 = vadd.f32 %v1863, %v801
  %v2376 = vadd.f32 %v1864, %v802
  %v2377 = vadd.f32 %v1865, %v803
  %v2378 = vadd.f32 %v1866, %v804
  %v2379 = vadd.f32 %v1867, %v805
  %v2380 = vadd.f32 %v1868, %v806
  %v2381 = vadd.f32 %v1869, %v807
  %v2382 = vadd.f32 %v1870, %v810
  %v2383 = vadd.f32 %v1871, %v811
  %v2384 = vadd.f32 %v1872, %v812
  %v2385 = vadd.f32 %v1873, %v813
  %v2386 = vadd.f32 %v1874, %v814
  %v2387 = vadd.f32 %v1875, %v815
  %v2388 = vadd.f32 %v1876, %v816
  %v2389 = vadd.f32 %v1877, %v817
  %v2390 = vadd.f32 %v1878, %v818
  %v2391 = vadd.f32 %v1879, %v819
  %v2392 = vadd.f32 %v1880, %v820
  %v2393 = vadd.f32 %v1881, %v821
  %v2394 = vadd.f32 %v1882, %v822
  %v2395 = vadd.f32 %v1883, %v823
  %v2396 = vadd.f32 %v1884, %v824
  %v2397 = vadd.f32 %v1885, %v825
  %v2398 = vadd.f32 %v1886, %v828
  %v2399 = vadd.f32 %v1887, %v829
  %v2400 = vadd.f32 %v1888, %v830
  %v2401 = vadd.f32 %v1889, %v831
  %v2402 = vadd.f32 %v1890, %v832
  %v2403 = vadd.f32 %v1891, %v833
  %v2404 = vadd.f32 %v1892, %v834
  %v2405 = vadd.f32 %v1893, %v835
  %v2406 = vadd.f32 %v1894, %v836
  %v2407 = vadd.f32 %v1895, %v837
  %v2408 = vadd.f32 %v1896, %v838
  %v2409 = vadd.f32 %v1897, %v839
  %v2410 = vadd.f32 %v1898, %v840
  %v2411 = vadd.f32 %v1899, %v841
  %v2412 = vadd.f32 %v1900, %v842
  %v2413 = vadd.f32 %v1901, %v843
  %v2414 = vadd.f32 %v1902, %v846
  %v2415 = vadd.f32 %v1903, %v847
  %v2416 = vadd.f32 %v1904, %v848
  %v2417 = vadd.f32 %v1905, %v849
  %v2418 = vadd.f32 %v1906, %v850
  %v2419 = vadd.f32 %v1907, %v851
  %v2420 = vadd.f32 %v1908, %v852
  %v2421 = vadd.f32 %v1909, %v853
  %v2422 = vadd.f32 %v1910, %v854
  %v2423 = vadd.f32 %v1911, %v855
  %v2424 = vadd.f32 %v1912, %v856
  %v2425 = vadd.f32 %v1913, %v857
  %v2426 = vadd.f32 %v1914, %v858
  %v2427 = vadd.f32 %v1915, %v859
  %v2428 = vadd.f32 %v1916, %v860
  %v2429 = vadd.f32 %v1917, %v861
  %v2430 = vadd.f32 %v1918, %v864
  %v2431 = vadd.f32 %v1919, %v865
  %v2432 = vadd.f32 %v1920, %v866
  %v2433 = vadd.f32 %v1921, %v867
  %v2434 = vadd.f32 %v1922, %v868
  %v2435 = vadd.f32 %v1923, %v869
  %v2436 = vadd.f32 %v1924, %v870
  %v2437 = vadd.f32 %v1925, %v871
  %v2438 = vadd.f32 %v1926, %v872
  %v2439 = vadd.f32 %v1927, %v873
  %v2440 = vadd.f32 %v1928, %v874
  %v2441 = vadd.f32 %v1929, %v875
  %v2442 = vadd.f32 %v1930, %v876
  %v2443 = vadd.f32 %v1931, %v877
  %v2444 = vadd.f32 %v1932, %v878
  %v2445 = vadd.f32 %v1933, %v879
  %v2446 = vadd.f32 %v1934, %v882
  %v2447 = vadd.f32 %v1935, %v883
  %v2448 = vadd.f32 %v1936, %v884
  %v2449 = vadd.f32 %v1937, %v885
  %v2450 = vadd.f32 %v1938, %v886
  %v2451 = vadd.f32 %v1939, %v887
  %v2452 = vadd.f32 %v1940, %v888
  %v2453 = vadd.f32 %v1941, %v889
  %v2454 = vadd.f32 %v1942, %v890
  %v2455 = vadd.f32 %v1943, %v891
  %v2456 = vadd.f32 %v1944, %v892
  %v2457 = vadd.f32 %v1945, %v893
  %v2458 = vadd.f32 %v1946, %v894
  %v2459 = vadd.f32 %v1947, %v895
  %v2460 = vadd.f32 %v1948, %v896
  %v2461 = vadd.f32 %v1949, %v897
  %v2462 = vadd.f32 %v1950, %v900
  %v2463 = vadd.f32 %v1951, %v901
  %v2464 = vadd.f32 %v1952, %v902
  %v2465 = vadd.f32 %v1953, %v903
  %v2466 = vadd.f32 %v1954, %v904
  %v2467 = vadd.f32 %v1955, %v905
  %v2468 = vadd.f32 %v1956, %v906
  %v2469 = vadd.f32 %v1957, %v907
  %v2470 = vadd.f32 %v1958, %v908
  %v2471 = vadd.f32 %v1959, %v909
  %v2472 = vadd.f32 %v1960, %v910
  %v2473 = vadd.f32 %v1961, %v911
  %v2474 = vadd.f32 %v1962, %v912
  %v2475 = vadd.f32 %v1963, %v913
  %v2476 = vadd.f32 %v1964, %v914
  %v2477 = vadd.f32 %v1965, %v915
  %v2478 = vadd.f32 %v1966, %v918
  %v2479 = vadd.f32 %v1967, %v919
  %v2480 = vadd.f32 %v1968, %v920
  %v2481 = vadd.f32 %v1969, %v921
  %v2482 = vadd.f32 %v1970, %v922
  %v2483 = vadd.f32 %v1971, %v923
  %v2484 = vadd.f32 %v1972, %v924
  %v2485 = vadd.f32 %v1973, %v925
  %v2486 = vadd.f32 %v1974, %v926
  %v2487 = vadd.f32 %v1975, %v927
  %v2488 = vadd.f32 %v1976, %v928
  %v2489 = vadd.f32 %v1977, %v929
  %v2490 = vadd.f32 %v1978, %v930
  %v2491 = vadd.f32 %v1979, %v931
  %v2492 = vadd.f32 %v1980, %v932
  %v2493 = vadd.f32 %v1981, %v933
  %v2494 = vadd.f32 %v1982, %v936
  %v2495 = vadd.f32 %v1983, %v937
  %v2496 = vadd.f32 %v1984, %v938
  %v2497 = vadd.f32 %v1985, %v939
  %v2498 = vadd.f32 %v1986, %v940
  %v2499 = vadd.f32 %v1987, %v941
  %v2500 = vadd.f32 %v1988, %v942
  %v2501 = vadd.f32 %v1989, %v943
  %v2502 = vadd.f32 %v1990, %v944
  %v2503 = vadd.f32 %v1991, %v945
  %v2504 = vadd.f32 %v1992, %v946
  %v2505 = vadd.f32 %v1993, %v947
  %v2506 = vadd.f32 %v1994, %v948
  %v2507 = vadd.f32 %v1995, %v949
  %v2508 = vadd.f32 %v1996, %v950
  %v2509 = vadd.f32 %v1997, %v951
  %v2510 = vadd.f32 %v1998, %v954
  %v2511 = vadd.f32 %v1999, %v955
  %v2512 = vadd.f32 %v2000, %v956
  %v2513 = vadd.f32 %v2001, %v957
  %v2514 = vadd.f32 %v2002, %v958
  %v2515 = vadd.f32 %v2003, %v959
  %v2516 = vadd.f32 %v2004, %v960
  %v2517 = vadd.f32 %v2005, %v961
  %v2518 = vadd.f32 %v2006, %v962
  %v2519 = vadd.f32 %v2007, %v963
  %v2520 = vadd.f32 %v2008, %v964
  %v2521 = vadd.f32 %v2009, %v965
  %v2522 = vadd.f32 %v2010, %v966
  %v2523 = vadd.f32 %v2011, %v967
  %v2524 = vadd.f32 %v2012, %v968
  %v2525 = vadd.f32 %v2013, %v969
  %v2526 = vmax.f32 %v2014, %v37
  %v2527 = vmax.f32 %v2015, %v38
  %v2528 = vmax.f32 %v2016, %v39
  %v2529 = vmax.f32 %v2017, %v40
  %v2530 = vmax.f32 %v2018, %v41
  %v2531 = vmax.f32 %v2019, %v42
  %v2532 = vmax.f32 %v2020, %v43
  %v2533 = vmax.f32 %v2021, %v44
  %v2534 = vmax.f32 %v2022, %v45
  %v2535 = vmax.f32 %v2023, %v46
  %v2536 = vmax.f32 %v2024, %v47
  %v2537 = vmax.f32 %v2025, %v48
  %v2538 = vmax.f32 %v2026, %v49
  %v2539 = vmax.f32 %v2027, %v50
  %v2540 = vmax.f32 %v2028, %v51
  %v2541 = vmax.f32 %v2029, %v52
  %v2542 = vmax.f32 %v2030, %v55
  %v2543 = vmax.f32 %v2031, %v56
  %v2544 = vmax.f32 %v2032, %v57
  %v2545 = vmax.f32 %v2033, %v58
  %v2546 = vmax.f32 %v2034, %v59
  %v2547 = vmax.f32 %v2035, %v60
  %v2548 = vmax.f32 %v2036, %v61
  %v2549 = vmax.f32 %v2037, %v62
  %v2550 = vmax.f32 %v2038, %v63
  %v2551 = vmax.f32 %v2039, %v64
  %v2552 = vmax.f32 %v2040, %v65
  %v2553 = vmax.f32 %v2041, %v66
  %v2554 = vmax.f32 %v2042, %v67
  %v2555 = vmax.f32 %v2043, %v68
  %v2556 = vmax.f32 %v2044, %v69
  %v2557 = vmax.f32 %v2045, %v70
  %v2558 = vmax.f32 %v2046, %v73
  %v2559 = vmax.f32 %v2047, %v74
  %v2560 = vmax.f32 %v2048, %v75
  %v2561 = vmax.f32 %v2049, %v76
  %v2562 = vmax.f32 %v2050, %v77
  %v2563 = vmax.f32 %v2051, %v78
  %v2564 = vmax.f32 %v2052, %v79
  %v2565 = vmax.f32 %v2053, %v80
  %v2566 = vmax.f32 %v2054, %v81
  %v2567 = vmax.f32 %v2055, %v82
  %v2568 = vmax.f32 %v2056, %v83
  %v2569 = vmax.f32 %v2057, %v84
  %v2570 = vmax.f32 %v2058, %v85
  %v2571 = vmax.f32 %v2059, %v86
  %v2572 = vmax.f32 %v2060, %v87
  %v2573 = vmax.f32 %v2061, %v88
  %v2574 = vmax.f32 %v2062, %v91
  %v2575 = vmax.f32 %v2063, %v92
  %v2576 = vmax.f32 %v2064, %v93
  %v2577 = vmax.f32 %v2065, %v94
  %v2578 = vmax.f32 %v2066, %v95
  %v2579 = vmax.f32 %v2067, %v96
  %v2580 = vmax.f32 %v2068, %v97
  %v2581 = vmax.f32 %v2069, %v98
  %v2582 = vmax.f32 %v2070, %v99
  %v2583 = vmax.f32 %v2071, %v100
  %v2584 = vmax.f32 %v2072, %v101
  %v2585 = vmax.f32 %v2073, %v102
  %v2586 = vmax.f32 %v2074, %v103
  %v2587 = vmax.f32 %v2075, %v104
  %v2588 = vmax.f32 %v2076, %v105
  %v2589 = vmax.f32 %v2077, %v106
  %v2590 = vmax.f32 %v2078, %v109
  %v2591 = vmax.f32 %v2079, %v110
  %v2592 = vmax.f32 %v2080, %v111
  %v2593 = vmax.f32 %v2081, %v112
  %v2594 = vmax.f32 %v2082, %v113
  %v2595 = vmax.f32 %v2083, %v114
  %v2596 = vmax.f32 %v2084, %v115
  %v2597 = vmax.f32 %v2085, %v116
  %v2598 = vmax.f32 %v2086, %v117
  %v2599 = vmax.f32 %v2087, %v118
  %v2600 = vmax.f32 %v2088, %v119
  %v2601 = vmax.f32 %v2089, %v120
  %v2602 = vmax.f32 %v2090, %v121
  %v2603 = vmax.f32 %v2091, %v122
  %v2604 = vmax.f32 %v2092, %v123
  %v2605 = vmax.f32 %v2093, %v124
  %v2606 = vmax.f32 %v2094, %v127
  %v2607 = vmax.f32 %v2095, %v128
  %v2608 = vmax.f32 %v2096, %v129
  %v2609 = vmax.f32 %v2097, %v130
  %v2610 = vmax.f32 %v2098, %v131
  %v2611 = vmax.f32 %v2099, %v132
  %v2612 = vmax.f32 %v2100, %v133
  %v2613 = vmax.f32 %v2101, %v134
  %v2614 = vmax.f32 %v2102, %v135
  %v2615 = vmax.f32 %v2103, %v136
  %v2616 = vmax.f32 %v2104, %v137
  %v2617 = vmax.f32 %v2105, %v138
  %v2618 = vmax.f32 %v2106, %v139
  %v2619 = vmax.f32 %v2107, %v140
  %v2620 = vmax.f32 %v2108, %v141
  %v2621 = vmax.f32 %v2109, %v142
  %v2622 = vmax.f32 %v2110, %v145
  %v2623 = vmax.f32 %v2111, %v146
  %v2624 = vmax.f32 %v2112, %v147
  %v2625 = vmax.f32 %v2113, %v148
  %v2626 = vmax.f32 %v2114, %v149
  %v2627 = vmax.f32 %v2115, %v150
  %v2628 = vmax.f32 %v2116, %v151
  %v2629 = vmax.f32 %v2117, %v152
  %v2630 = vmax.f32 %v2118, %v153
  %v2631 = vmax.f32 %v2119, %v154
  %v2632 = vmax.f32 %v2120, %v155
  %v2633 = vmax.f32 %v2121, %v156
  %v2634 = vmax.f32 %v2122, %v157
  %v2635 = vmax.f32 %v2123, %v158
  %v2636 = vmax.f32 %v2124, %v159
  %v2637 = vmax.f32 %v2125, %v160
  %v2638 = vmax.f32 %v2126, %v163
  %v2639 = vmax.f32 %v2127, %v164
  %v2640 = vmax.f32 %v2128, %v165
  %v2641 = vmax.f32 %v2129, %v166
  %v2642 = vmax.f32 %v2130, %v167
  %v2643 = vmax.f32 %v2131, %v168
  %v2644 = vmax.f32 %v2132, %v169
  %v2645 = vmax.f32 %v2133, %v170
  %v2646 = vmax.f32 %v2134, %v171
  %v2647 = vmax.f32 %v2135, %v172
  %v2648 = vmax.f32 %v2136, %v173
  %v2649 = vmax.f32 %v2137, %v174
  %v2650 = vmax.f32 %v2138, %v175
  %v2651 = vmax.f32 %v2139, %v176
  %v2652 = vmax.f32 %v2140, %v177
  %v2653 = vmax.f32 %v2141, %v178
  %v2654 = vmax.f32 %v2142, %v181
  %v2655 = vmax.f32 %v2143, %v182
  %v2656 = vmax.f32 %v2144, %v183
  %v2657 = vmax.f32 %v2145, %v184
  %v2658 = vmax.f32 %v2146, %v185
  %v2659 = vmax.f32 %v2147, %v186
  %v2660 = vmax.f32 %v2148, %v187
  %v2661 = vmax.f32 %v2149, %v188
  %v2662 = vmax.f32 %v2150, %v189
  %v2663 = vmax.f32 %v2151, %v190
  %v2664 = vmax.f32 %v2152, %v191
  %v2665 = vmax.f32 %v2153, %v192
  %v2666 = vmax.f32 %v2154, %v193
  %v2667 = vmax.f32 %v2155, %v194
  %v2668 = vmax.f32 %v2156, %v195
  %v2669 = vmax.f32 %v2157, %v196
  %v2670 = vmax.f32 %v2158, %v199
  %v2671 = vmax.f32 %v2159, %v200
  %v2672 = vmax.f32 %v2160, %v201
  %v2673 = vmax.f32 %v2161, %v202
  %v2674 = vmax.f32 %v2162, %v203
  %v2675 = vmax.f32 %v2163, %v204
  %v2676 = vmax.f32 %v2164, %v205
  %v2677 = vmax.f32 %v2165, %v206
  %v2678 = vmax.f32 %v2166, %v207
  %v2679 = vmax.f32 %v2167, %v208
  %v2680 = vmax.f32 %v2168, %v209
  %v2681 = vmax.f32 %v2169, %v210
  %v2682 = vmax.f32 %v2170, %v211
  %v2683 = vmax.f32 %v2171, %v212
  %v2684 = vmax.f32 %v2172, %v213
  %v2685 = vmax.f32 %v2173, %v214
  %v2686 = vmax.f32 %v2174, %v217
  %v2687 = vmax.f32 %v2175, %v218
  %v2688 = vmax.f32 %v2176, %v219
  %v2689 = vmax.f32 %v2177, %v220
  %v2690 = vmax.f32 %v2178, %v221
  %v2691 = vmax.f32 %v2179, %v222
  %v2692 = vmax.f32 %v2180, %v223
  %v2693 = vmax.f32 %v2181, %v224
  %v2694 = vmax.f32 %v2182, %v225
  %v2695 = vmax.f32 %v2183, %v226
  %v2696 = vmax.f32 %v2184, %v227
  %v2697 = vmax.f32 %v2185, %v228
  %v2698 = vmax.f32 %v2186, %v229
  %v2699 = vmax.f32 %v2187, %v230
  %v2700 = vmax.f32 %v2188, %v231
  %v2701 = vmax.f32 %v2189, %v232
  %v2702 = vmax.f32 %v2190, %v235
  %v2703 = vmax.f32 %v2191, %v236
  %v2704 = vmax.f32 %v2192, %v237
  %v2705 = vmax.f32 %v2193, %v238
  %v2706 = vmax.f32 %v2194, %v239
  %v2707 = vmax.f32 %v2195, %v240
  %v2708 = vmax.f32 %v2196, %v241
  %v2709 = vmax.f32 %v2197, %v242
  %v2710 = vmax.f32 %v2198, %v243
  %v2711 = vmax.f32 %v2199, %v244
  %v2712 = vmax.f32 %v2200, %v245
  %v2713 = vmax.f32 %v2201, %v246
  %v2714 = vmax.f32 %v2202, %v247
  %v2715 = vmax.f32 %v2203, %v248
  %v2716 = vmax.f32 %v2204, %v249
  %v2717 = vmax.f32 %v2205, %v250
  %v2718 = vmax.f32 %v2206, %v253
  %v2719 = vmax.f32 %v2207, %v254
  %v2720 = vmax.f32 %v2208, %v255
  %v2721 = vmax.f32 %v2209, %v256
  %v2722 = vmax.f32 %v2210, %v257
  %v2723 = vmax.f32 %v2211, %v258
  %v2724 = vmax.f32 %v2212, %v259
  %v2725 = vmax.f32 %v2213, %v260
  %v2726 = vmax.f32 %v2214, %v261
  %v2727 = vmax.f32 %v2215, %v262
  %v2728 = vmax.f32 %v2216, %v263
  %v2729 = vmax.f32 %v2217, %v264
  %v2730 = vmax.f32 %v2218, %v265
  %v2731 = vmax.f32 %v2219, %v266
  %v2732 = vmax.f32 %v2220, %v267
  %v2733 = vmax.f32 %v2221, %v268
  %v2734 = vmax.f32 %v2222, %v271
  %v2735 = vmax.f32 %v2223, %v272
  %v2736 = vmax.f32 %v2224, %v273
  %v2737 = vmax.f32 %v2225, %v274
  %v2738 = vmax.f32 %v2226, %v275
  %v2739 = vmax.f32 %v2227, %v276
  %v2740 = vmax.f32 %v2228, %v277
  %v2741 = vmax.f32 %v2229, %v278
  %v2742 = vmax.f32 %v2230, %v279
  %v2743 = vmax.f32 %v2231, %v280
  %v2744 = vmax.f32 %v2232, %v281
  %v2745 = vmax.f32 %v2233, %v282
  %v2746 = vmax.f32 %v2234, %v283
  %v2747 = vmax.f32 %v2235, %v284
  %v2748 = vmax.f32 %v2236, %v285
  %v2749 = vmax.f32 %v2237, %v286
  %v2750 = vmax.f32 %v2238, %v289
  %v2751 = vmax.f32 %v2239, %v290
  %v2752 = vmax.f32 %v2240, %v291
  %v2753 = vmax.f32 %v2241, %v292
  %v2754 = vmax.f32 %v2242, %v293
  %v2755 = vmax.f32 %v2243, %v294
  %v2756 = vmax.f32 %v2244, %v295
  %v2757 = vmax.f32 %v2245, %v296
  %v2758 = vmax.f32 %v2246, %v297
  %v2759 = vmax.f32 %v2247, %v298
  %v2760 = vmax.f32 %v2248, %v299
  %v2761 = vmax.f32 %v2249, %v300
  %v2762 = vmax.f32 %v2250, %v301
  %v2763 = vmax.f32 %v2251, %v302
  %v2764 = vmax.f32 %v2252, %v303
  %v2765 = vmax.f32 %v2253, %v304
  %v2766 = vmax.f32 %v2254, %v307
  %v2767 = vmax.f32 %v2255, %v308
  %v2768 = vmax.f32 %v2256, %v309
  %v2769 = vmax.f32 %v2257, %v310
  %v2770 = vmax.f32 %v2258, %v311
  %v2771 = vmax.f32 %v2259, %v312
  %v2772 = vmax.f32 %v2260, %v313
  %v2773 = vmax.f32 %v2261, %v314
  %v2774 = vmax.f32 %v2262, %v315
  %v2775 = vmax.f32 %v2263, %v316
  %v2776 = vmax.f32 %v2264, %v317
  %v2777 = vmax.f32 %v2265, %v318
  %v2778 = vmax.f32 %v2266, %v319
  %v2779 = vmax.f32 %v2267, %v320
  %v2780 = vmax.f32 %v2268, %v321
  %v2781 = vmax.f32 %v2269, %v322
  %v2782 = vadd.f32 %v2270, %v685
  %v2783 = vadd.f32 %v2271, %v686
  %v2784 = vadd.f32 %v2272, %v687
  %v2785 = vadd.f32 %v2273, %v688
  %v2786 = vadd.f32 %v2274, %v689
  %v2787 = vadd.f32 %v2275, %v690
  %v2788 = vadd.f32 %v2276, %v691
  %v2789 = vadd.f32 %v2277, %v692
  %v2790 = vadd.f32 %v2278, %v693
  %v2791 = vadd.f32 %v2279, %v694
  %v2792 = vadd.f32 %v2280, %v695
  %v2793 = vadd.f32 %v2281, %v696
  %v2794 = vadd.f32 %v2282, %v697
  %v2795 = vadd.f32 %v2283, %v698
  %v2796 = vadd.f32 %v2284, %v699
  %v2797 = vadd.f32 %v2285, %v700
  %v2798 = vadd.f32 %v2286, %v703
  %v2799 = vadd.f32 %v2287, %v704
  %v2800 = vadd.f32 %v2288, %v705
  %v2801 = vadd.f32 %v2289, %v706
  %v2802 = vadd.f32 %v2290, %v707
  %v2803 = vadd.f32 %v2291, %v708
  %v2804 = vadd.f32 %v2292, %v709
  %v2805 = vadd.f32 %v2293, %v710
  %v2806 = vadd.f32 %v2294, %v711
  %v2807 = vadd.f32 %v2295, %v712
  %v2808 = vadd.f32 %v2296, %v713
  %v2809 = vadd.f32 %v2297, %v714
  %v2810 = vadd.f32 %v2298, %v715
  %v2811 = vadd.f32 %v2299, %v716
  %v2812 = vadd.f32 %v2300, %v717
  %v2813 = vadd.f32 %v2301, %v718
  %v2814 = vadd.f32 %v2302, %v721
  %v2815 = vadd.f32 %v2303, %v722
  %v2816 = vadd.f32 %v2304, %v723
  %v2817 = vadd.f32 %v2305, %v724
  %v2818 = vadd.f32 %v2306, %v725
  %v2819 = vadd.f32 %v2307, %v726
  %v2820 = vadd.f32 %v2308, %v727
  %v2821 = vadd.f32 %v2309, %v728
  %v2822 = vadd.f32 %v2310, %v729
  %v2823 = vadd.f32 %v2311, %v730
  %v2824 = vadd.f32 %v2312, %v731
  %v2825 = vadd.f32 %v2313, %v732
  %v2826 = vadd.f32 %v2314, %v733
  %v2827 = vadd.f32 %v2315, %v734
  %v2828 = vadd.f32 %v2316, %v735
  %v2829 = vadd.f32 %v2317, %v736
  %v2830 = vadd.f32 %v2318, %v739
  %v2831 = vadd.f32 %v2319, %v740
  %v2832 = vadd.f32 %v2320, %v741
  %v2833 = vadd.f32 %v2321, %v742
  %v2834 = vadd.f32 %v2322, %v743
  %v2835 = vadd.f32 %v2323, %v744
  %v2836 = vadd.f32 %v2324, %v745
  %v2837 = vadd.f32 %v2325, %v746
  %v2838 = vadd.f32 %v2326, %v747
  %v2839 = vadd.f32 %v2327, %v748
  %v2840 = vadd.f32 %v2328, %v749
  %v2841 = vadd.f32 %v2329, %v750
  %v2842 = vadd.f32 %v2330, %v751
  %v2843 = vadd.f32 %v2331, %v752
  %v2844 = vadd.f32 %v2332, %v753
  %v2845 = vadd.f32 %v2333, %v754
  %v2846 = vadd.f32 %v2334, %v757
  %v2847 = vadd.f32 %v2335, %v758
  %v2848 = vadd.f32 %v2336, %v759
  %v2849 = vadd.f32 %v2337, %v760
  %v2850 = vadd.f32 %v2338, %v761
  %v2851 = vadd.f32 %v2339, %v762
  %v2852 = vadd.f32 %v2340, %v763
  %v2853 = vadd.f32 %v2341, %v764
  %v2854 = vadd.f32 %v2342, %v765
  %v2855 = vadd.f32 %v2343, %v766
  %v2856 = vadd.f32 %v2344, %v767
  %v2857 = vadd.f32 %v2345, %v768
  %v2858 = vadd.f32 %v2346, %v769
  %v2859 = vadd.f32 %v2347, %v770
  %v2860 = vadd.f32 %v2348, %v771
  %v2861 = vadd.f32 %v2349, %v772
  %v2862 = vadd.f32 %v2350, %v775
  %v2863 = vadd.f32 %v2351, %v776
  %v2864 = vadd.f32 %v2352, %v777
  %v2865 = vadd.f32 %v2353, %v778
  %v2866 = vadd.f32 %v2354, %v779
  %v2867 = vadd.f32 %v2355, %v780
  %v2868 = vadd.f32 %v2356, %v781
  %v2869 = vadd.f32 %v2357, %v782
  %v2870 = vadd.f32 %v2358, %v783
  %v2871 = vadd.f32 %v2359, %v784
  %v2872 = vadd.f32 %v2360, %v785
  %v2873 = vadd.f32 %v2361, %v786
  %v2874 = vadd.f32 %v2362, %v787
  %v2875 = vadd.f32 %v2363, %v788
  %v2876 = vadd.f32 %v2364, %v789
  %v2877 = vadd.f32 %v2365, %v790
  %v2878 = vadd.f32 %v2366, %v793
  %v2879 = vadd.f32 %v2367, %v794
  %v2880 = vadd.f32 %v2368, %v795
  %v2881 = vadd.f32 %v2369, %v796
  %v2882 = vadd.f32 %v2370, %v797
  %v2883 = vadd.f32 %v2371, %v798
  %v2884 = vadd.f32 %v2372, %v799
  %v2885 = vadd.f32 %v2373, %v800
  %v2886 = vadd.f32 %v2374, %v801
  %v2887 = vadd.f32 %v2375, %v802
  %v2888 = vadd.f32 %v2376, %v803
  %v2889 = vadd.f32 %v2377, %v804
  %v2890 = vadd.f32 %v2378, %v805
  %v2891 = vadd.f32 %v2379, %v806
  %v2892 = vadd.f32 %v2380, %v807
  %v2893 = vadd.f32 %v2381, %v808
  %v2894 = vadd.f32 %v2382, %v811
  %v2895 = vadd.f32 %v2383, %v812
  %v2896 = vadd.f32 %v2384, %v813
  %v2897 = vadd.f32 %v2385, %v814
  %v2898 = vadd.f32 %v2386, %v815
  %v2899 = vadd.f32 %v2387, %v816
  %v2900 = vadd.f32 %v2388, %v817
  %v2901 = vadd.f32 %v2389, %v818
  %v2902 = vadd.f32 %v2390, %v819
  %v2903 = vadd.f32 %v2391, %v820
  %v2904 = vadd.f32 %v2392, %v821
  %v2905 = vadd.f32 %v2393, %v822
  %v2906 = vadd.f32 %v2394, %v823
  %v2907 = vadd.f32 %v2395, %v824
  %v2908 = vadd.f32 %v2396, %v825
  %v2909 = vadd.f32 %v2397, %v826
  %v2910 = vadd.f32 %v2398, %v829
  %v2911 = vadd.f32 %v2399, %v830
  %v2912 = vadd.f32 %v2400, %v831
  %v2913 = vadd.f32 %v2401, %v832
  %v2914 = vadd.f32 %v2402, %v833
  %v2915 = vadd.f32 %v2403, %v834
  %v2916 = vadd.f32 %v2404, %v835
  %v2917 = vadd.f32 %v2405, %v836
  %v2918 = vadd.f32 %v2406, %v837
  %v2919 = vadd.f32 %v2407, %v838
  %v2920 = vadd.f32 %v2408, %v839
  %v2921 = vadd.f32 %v2409, %v840
  %v2922 = vadd.f32 %v2410, %v841
  %v2923 = vadd.f32 %v2411, %v842
  %v2924 = vadd.f32 %v2412, %v843
  %v2925 = vadd.f32 %v2413, %v844
  %v2926 = vadd.f32 %v2414, %v847
  %v2927 = vadd.f32 %v2415, %v848
  %v2928 = vadd.f32 %v2416, %v849
  %v2929 = vadd.f32 %v2417, %v850
  %v2930 = vadd.f32 %v2418, %v851
  %v2931 = vadd.f32 %v2419, %v852
  %v2932 = vadd.f32 %v2420, %v853
  %v2933 = vadd.f32 %v2421, %v854
  %v2934 = vadd.f32 %v2422, %v855
  %v2935 = vadd.f32 %v2423, %v856
  %v2936 = vadd.f32 %v2424, %v857
  %v2937 = vadd.f32 %v2425, %v858
  %v2938 = vadd.f32 %v2426, %v859
  %v2939 = vadd.f32 %v2427, %v860
  %v2940 = vadd.f32 %v2428, %v861
  %v2941 = vadd.f32 %v2429, %v862
  %v2942 = vadd.f32 %v2430, %v865
  %v2943 = vadd.f32 %v2431, %v866
  %v2944 = vadd.f32 %v2432, %v867
  %v2945 = vadd.f32 %v2433, %v868
  %v2946 = vadd.f32 %v2434, %v869
  %v2947 = vadd.f32 %v2435, %v870
  %v2948 = vadd.f32 %v2436, %v871
  %v2949 = vadd.f32 %v2437, %v872
  %v2950 = vadd.f32 %v2438, %v873
  %v2951 = vadd.f32 %v2439, %v874
  %v2952 = vadd.f32 %v2440, %v875
  %v2953 = vadd.f32 %v2441, %v876
  %v2954 = vadd.f32 %v2442, %v877
  %v2955 = vadd.f32 %v2443, %v878
  %v2956 = vadd.f32 %v2444, %v879
  %v2957 = vadd.f32 %v2445, %v880
  %v2958 = vadd.f32 %v2446, %v883
  %v2959 = vadd.f32 %v2447, %v884
  %v2960 = vadd.f32 %v2448, %v885
  %v2961 = vadd.f32 %v2449, %v886
  %v2962 = vadd.f32 %v2450, %v887
  %v2963 = vadd.f32 %v2451, %v888
  %v2964 = vadd.f32 %v2452, %v889
  %v2965 = vadd.f32 %v2453, %v890
  %v2966 = vadd.f32 %v2454, %v891
  %v2967 = vadd.f32 %v2455, %v892
  %v2968 = vadd.f32 %v2456, %v893
  %v2969 = vadd.f32 %v2457, %v894
  %v2970 = vadd.f32 %v2458, %v895
  %v2971 = vadd.f32 %v2459, %v896
  %v2972 = vadd.f32 %v2460, %v897
  %v2973 = vadd.f32 %v2461, %v898
  %v2974 = vadd.f32 %v2462, %v901
  %v2975 = vadd.f32 %v2463, %v902
  %v2976 = vadd.f32 %v2464, %v903
  %v2977 = vadd.f32 %v2465, %v904
  %v2978 = vadd.f32 %v2466, %v905
  %v2979 = vadd.f32 %v2467, %v906
  %v2980 = vadd.f32 %v2468, %v907
  %v2981 = vadd.f32 %v2469, %v908
  %v2982 = vadd.f32 %v2470, %v909
  %v2983 = vadd.f32 %v2471, %v910
  %v2984 = vadd.f32 %v2472, %v911
  %v2985 = vadd.f32 %v2473, %v912
  %v2986 = vadd.f32 %v2474, %v913
  %v2987 = vadd.f32 %v2475, %v914
  %v2988 = vadd.f32 %v2476, %v915
  %v2989 = vadd.f32 %v2477, %v916
  %v2990 = vadd.f32 %v2478, %v919
  %v2991 = vadd.f32 %v2479, %v920
  %v2992 = vadd.f32 %v2480, %v921
  %v2993 = vadd.f32 %v2481, %v922
  %v2994 = vadd.f32 %v2482, %v923
  %v2995 = vadd.f32 %v2483, %v924
  %v2996 = vadd.f32 %v2484, %v925
  %v2997 = vadd.f32 %v2485, %v926
  %v2998 = vadd.f32 %v2486, %v927
  %v2999 = vadd.f32 %v2487, %v928
  %v3000 = vadd.f32 %v2488, %v929
  %v3001 = vadd.f32 %v2489, %v930
  %v3002 = vadd.f32 %v2490, %v931
  %v3003 = vadd.f32 %v2491, %v932
  %v3004 = vadd.f32 %v2492, %v933
  %v3005 = vadd.f32 %v2493, %v934
  %v3006 = vadd.f32 %v2494, %v937
  %v3007 = vadd.f32 %v2495, %v938
  %v3008 = vadd.f32 %v2496, %v939
  %v3009 = vadd.f32 %v2497, %v940
  %v3010 = vadd.f32 %v2498, %v941
  %v3011 = vadd.f32 %v2499, %v942
  %v3012 = vadd.f32 %v2500, %v943
  %v3013 = vadd.f32 %v2501, %v944
  %v3014 = vadd.f32 %v2502, %v945
  %v3015 = vadd.f32 %v2503, %v946
  %v3016 = vadd.f32 %v2504, %v947
  %v3017 = vadd.f32 %v2505, %v948
  %v3018 = vadd.f32 %v2506, %v949
  %v3019 = vadd.f32 %v2507, %v950
  %v3020 = vadd.f32 %v2508, %v951
  %v3021 = vadd.f32 %v2509, %v952
  %v3022 = vadd.f32 %v2510, %v955
  %v3023 = vadd.f32 %v2511, %v956
  %v3024 = vadd.f32 %v2512, %v957
  %v3025 = vadd.f32 %v2513, %v958
  %v3026 = vadd.f32 %v2514, %v959
  %v3027 = vadd.f32 %v2515, %v960
  %v3028 = vadd.f32 %v2516, %v961
  %v3029 = vadd.f32 %v2517, %v962
  %v3030 = vadd.f32 %v2518, %v963
  %v3031 = vadd.f32 %v2519, %v964
  %v3032 = vadd.f32 %v2520, %v965
  %v3033 = vadd.f32 %v2521, %v966
  %v3034 = vadd.f32 %v2522, %v967
  %v3035 = vadd.f32 %v2523, %v968
  %v3036 = vadd.f32 %v2524, %v969
  %v3037 = vadd.f32 %v2525, %v970
  %v3038 = vmax.f32 %v2526, %v38
  %v3039 = vmax.f32 %v2527, %v39
  %v3040 = vmax.f32 %v2528, %v40
  %v3041 = vmax.f32 %v2529, %v41
  %v3042 = vmax.f32 %v2530, %v42
  %v3043 = vmax.f32 %v2531, %v43
  %v3044 = vmax.f32 %v2532, %v44
  %v3045 = vmax.f32 %v2533, %v45
  %v3046 = vmax.f32 %v2534, %v46
  %v3047 = vmax.f32 %v2535, %v47
  %v3048 = vmax.f32 %v2536, %v48
  %v3049 = vmax.f32 %v2537, %v49
  %v3050 = vmax.f32 %v2538, %v50
  %v3051 = vmax.f32 %v2539, %v51
  %v3052 = vmax.f32 %v2540, %v52
  %v3053 = vmax.f32 %v2541, %v53
  %v3054 = vmax.f32 %v2542, %v56
  %v3055 = vmax.f32 %v2543, %v57
  %v3056 = vmax.f32 %v2544, %v58
  %v3057 = vmax.f32 %v2545, %v59
  %v3058 = vmax.f32 %v2546, %v60
  %v3059 = vmax.f32 %v2547, %v61
  %v3060 = vmax.f32 %v2548, %v62
  %v3061 = vmax.f32 %v2549, %v63
  %v3062 = vmax.f32 %v2550, %v64
  %v3063 = vmax.f32 %v2551, %v65
  %v3064 = vmax.f32 %v2552, %v66
  %v3065 = vmax.f32 %v2553, %v67
  %v3066 = vmax.f32 %v2554, %v68
  %v3067 = vmax.f32 %v2555, %v69
  %v3068 = vmax.f32 %v2556, %v70
  %v3069 = vmax.f32 %v2557, %v71
  %v3070 = vmax.f32 %v2558, %v74
  %v3071 = vmax.f32 %v2559, %v75
  %v3072 = vmax.f32 %v2560, %v76
  %v3073 = vmax.f32 %v2561, %v77
  %v3074 = vmax.f32 %v2562, %v78
  %v3075 = vmax.f32 %v2563, %v79
  %v3076 = vmax.f32 %v2564, %v80
  %v3077 = vmax.f32 %v2565, %v81
  %v3078 = vmax.f32 %v2566, %v82
  %v3079 = vmax.f32 %v2567, %v83
  %v3080 = vmax.f32 %v2568, %v84
  %v3081 = vmax.f32 %v2569, %v85
  %v3082 = vmax.f32 %v2570, %v86
  %v3083 = vmax.f32 %v2571, %v87
  %v3084 = vmax.f32 %v2572, %v88
  %v3085 = vmax.f32 %v2573, %v89
  %v3086 = vmax.f32 %v2574, %v92
  %v3087 = vmax.f32 %v2575, %v93
  %v3088 = vmax.f32 %v2576, %v94
  %v3089 = vmax.f32 %v2577, %v95
  %v3090 = vmax.f32 %v2578, %v96
  %v3091 = vmax.f32 %v2579, %v97
  %v3092 = vmax.f32 %v2580, %v98
  %v3093 = vmax.f32 %v2581, %v99
  %v3094 = vmax.f32 %v2582, %v100
  %v3095 = vmax.f32 %v2583, %v101
  %v3096 = vmax.f32 %v2584, %v102
  %v3097 = vmax.f32 %v2585, %v103
  %v3098 = vmax.f32 %v2586, %v104
  %v3099 = vmax.f32 %v2587, %v105
  %v3100 = vmax.f32 %v2588, %v106
  %v3101 = vmax.f32 %v2589, %v107
  %v3102 = vmax.f32 %v2590, %v110
  %v3103 = vmax.f32 %v2591, %v111
  %v3104 = vmax.f32 %v2592, %v112
  %v3105 = vmax.f32 %v2593, %v113
  %v3106 = vmax.f32 %v2594, %v114
  %v3107 = vmax.f32 %v2595, %v115
  %v3108 = vmax.f32 %v2596, %v116
  %v3109 = vmax.f32 %v2597, %v117
  %v3110 = vmax.f32 %v2598, %v118
  %v3111 = vmax.f32 %v2599, %v119
  %v3112 = vmax.f32 %v2600, %v120
  %v3113 = vmax.f32 %v2601, %v121
  %v3114 = vmax.f32 %v2602, %v122
  %v3115 = vmax.f32 %v2603, %v123
  %v3116 = vmax.f32 %v2604, %v124
  %v3117 = vmax.f32 %v2605, %v125
  %v3118 = vmax.f32 %v2606, %v128
  %v3119 = vmax.f32 %v2607, %v129
  %v3120 = vmax.f32 %v2608, %v130
  %v3121 = vmax.f32 %v2609, %v131
  %v3122 = vmax.f32 %v2610, %v132
  %v3123 = vmax.f32 %v2611, %v133
  %v3124 = vmax.f32 %v2612, %v134
  %v3125 = vmax.f32 %v2613, %v135
  %v3126 = vmax.f32 %v2614, %v136
  %v3127 = vmax.f32 %v2615, %v137
  %v3128 = vmax.f32 %v2616, %v138
  %v3129 = vmax.f32 %v2617, %v139
  %v3130 = vmax.f32 %v2618, %v140
  %v3131 = vmax.f32 %v2619, %v141
  %v3132 = vmax.f32 %v2620, %v142
  %v3133 = vmax.f32 %v2621, %v143
  %v3134 = vmax.f32 %v2622, %v146
  %v3135 = vmax.f32 %v2623, %v147
  %v3136 = vmax.f32 %v2624, %v148
  %v3137 = vmax.f32 %v2625, %v149
  %v3138 = vmax.f32 %v2626, %v150
  %v3139 = vmax.f32 %v2627, %v151
  %v3140 = vmax.f32 %v2628, %v152
  %v3141 = vmax.f32 %v2629, %v153
  %v3142 = vmax.f32 %v2630, %v154
  %v3143 = vmax.f32 %v2631, %v155
  %v3144 = vmax.f32 %v2632, %v156
  %v3145 = vmax.f32 %v2633, %v157
  %v3146 = vmax.f32 %v2634, %v158
  %v3147 = vmax.f32 %v2635, %v159
  %v3148 = vmax.f32 %v2636, %v160
  %v3149 = vmax.f32 %v2637, %v161
  %v3150 = vmax.f32 %v2638, %v164
  %v3151 = vmax.f32 %v2639, %v165
  %v3152 = vmax.f32 %v2640, %v166
  %v3153 = vmax.f32 %v2641, %v167
  %v3154 = vmax.f32 %v2642, %v168
  %v3155 = vmax.f32 %v2643, %v169
  %v3156 = vmax.f32 %v2644, %v170
  %v3157 = vmax.f32 %v2645, %v171
  %v3158 = vmax.f32 %v2646, %v172
  %v3159 = vmax.f32 %v2647, %v173
  %v3160 = vmax.f32 %v2648, %v174
  %v3161 = vmax.f32 %v2649, %v175
  %v3162 = vmax.f32 %v2650, %v176
  %v3163 = vmax.f32 %v2651, %v177
  %v3164 = vmax.f32 %v2652, %v178
  %v3165 = vmax.f32 %v2653, %v179
  %v3166 = vmax.f32 %v2654, %v182
  %v3167 = vmax.f32 %v2655, %v183
  %v3168 = vmax.f32 %v2656, %v184
  %v3169 = vmax.f32 %v2657, %v185
  %v3170 = vmax.f32 %v2658, %v186
  %v3171 = vmax.f32 %v2659, %v187
  %v3172 = vmax.f32 %v2660, %v188
  %v3173 = vmax.f32 %v2661, %v189
  %v3174 = vmax.f32 %v2662, %v190
  %v3175 = vmax.f32 %v2663, %v191
  %v3176 = vmax.f32 %v2664, %v192
  %v3177 = vmax.f32 %v2665, %v193
  %v3178 = vmax.f32 %v2666, %v194
  %v3179 = vmax.f32 %v2667, %v195
  %v3180 = vmax.f32 %v2668, %v196
  %v3181 = vmax.f32 %v2669, %v197
  %v3182 = vmax.f32 %v2670, %v200
  %v3183 = vmax.f32 %v2671, %v201
  %v3184 = vmax.f32 %v2672, %v202
  %v3185 = vmax.f32 %v2673, %v203
  %v3186 = vmax.f32 %v2674, %v204
  %v3187 = vmax.f32 %v2675, %v205
  %v3188 = vmax.f32 %v2676, %v206
  %v3189 = vmax.f32 %v2677, %v207
  %v3190 = vmax.f32 %v2678, %v208
  %v3191 = vmax.f32 %v2679, %v209
  %v3192 = vmax.f32 %v2680, %v210
  %v3193 = vmax.f32 %v2681, %v211
  %v3194 = vmax.f32 %v2682, %v212
  %v3195 = vmax.f32 %v2683, %v213
  %v3196 = vmax.f32 %v2684, %v214
  %v3197 = vmax.f32 %v2685, %v215
  %v3198 = vmax.f32 %v2686, %v218
  %v3199 = vmax.f32 %v2687, %v219
  %v3200 = vmax.f32 %v2688, %v220
  %v3201 = vmax.f32 %v2689, %v221
  %v3202 = vmax.f32 %v2690, %v222
  %v3203 = vmax.f32 %v2691, %v223
  %v3204 = vmax.f32 %v2692, %v224
  %v3205 = vmax.f32 %v2693, %v225
  %v3206 = vmax.f32 %v2694, %v226
  %v3207 = vmax.f32 %v2695, %v227
  %v3208 = vmax.f32 %v2696, %v228
  %v3209 = vmax.f32 %v2697, %v229
  %v3210 = vmax.f32 %v2698, %v230
  %v3211 = vmax.f32 %v2699, %v231
  %v3212 = vmax.f32 %v2700, %v232
  %v3213 = vmax.f32 %v2701, %v233
  %v3214 = vmax.f32 %v2702, %v236
  %v3215 = vmax.f32 %v2703, %v237
  %v3216 = vmax.f32 %v2704, %v238
  %v3217 = vmax.f32 %v2705, %v239
  %v3218 = vmax.f32 %v2706, %v240
  %v3219 = vmax.f32 %v2707, %v241
  %v3220 = vmax.f32 %v2708, %v242
  %v3221 = vmax.f32 %v2709, %v243
  %v3222 = vmax.f32 %v2710, %v244
  %v3223 = vmax.f32 %v2711, %v245
  %v3224 = vmax.f32 %v2712, %v246
  %v3225 = vmax.f32 %v2713, %v247
  %v3226 = vmax.f32 %v2714, %v248
  %v3227 = vmax.f32 %v2715, %v249
  %v3228 = vmax.f32 %v2716, %v250
  %v3229 = vmax.f32 %v2717, %v251
  %v3230 = vmax.f32 %v2718, %v254
  %v3231 = vmax.f32 %v2719, %v255
  %v3232 = vmax.f32 %v2720, %v256
  %v3233 = vmax.f32 %v2721, %v257
  %v3234 = vmax.f32 %v2722, %v258
  %v3235 = vmax.f32 %v2723, %v259
  %v3236 = vmax.f32 %v2724, %v260
  %v3237 = vmax.f32 %v2725, %v261
  %v3238 = vmax.f32 %v2726, %v262
  %v3239 = vmax.f32 %v2727, %v263
  %v3240 = vmax.f32 %v2728, %v264
  %v3241 = vmax.f32 %v2729, %v265
  %v3242 = vmax.f32 %v2730, %v266
  %v3243 = vmax.f32 %v2731, %v267
  %v3244 = vmax.f32 %v2732, %v268
  %v3245 = vmax.f32 %v2733, %v269
  %v3246 = vmax.f32 %v2734, %v272
  %v3247 = vmax.f32 %v2735, %v273
  %v3248 = vmax.f32 %v2736, %v274
  %v3249 = vmax.f32 %v2737, %v275
  %v3250 = vmax.f32 %v2738, %v276
  %v3251 = vmax.f32 %v2739, %v277
  %v3252 = vmax.f32 %v2740, %v278
  %v3253 = vmax.f32 %v2741, %v279
  %v3254 = vmax.f32 %v2742, %v280
  %v3255 = vmax.f32 %v2743, %v281
  %v3256 = vmax.f32 %v2744, %v282
  %v3257 = vmax.f32 %v2745, %v283
  %v3258 = vmax.f32 %v2746, %v284
  %v3259 = vmax.f32 %v2747, %v285
  %v3260 = vmax.f32 %v2748, %v286
  %v3261 = vmax.f32 %v2749, %v287
  %v3262 = vmax.f32 %v2750, %v290
  %v3263 = vmax.f32 %v2751, %v291
  %v3264 = vmax.f32 %v2752, %v292
  %v3265 = vmax.f32 %v2753, %v293
  %v3266 = vmax.f32 %v2754, %v294
  %v3267 = vmax.f32 %v2755, %v295
  %v3268 = vmax.f32 %v2756, %v296
  %v3269 = vmax.f32 %v2757, %v297
  %v3270 = vmax.f32 %v2758, %v298
  %v3271 = vmax.f32 %v2759, %v299
  %v3272 = vmax.f32 %v2760, %v300
  %v3273 = vmax.f32 %v2761, %v301
  %v3274 = vmax.f32 %v2762, %v302
  %v3275 = vmax.f32 %v2763, %v303
  %v3276 = vmax.f32 %v2764, %v304
  %v3277 = vmax.f32 %v2765, %v305
  %v3278 = vmax.f32 %v2766, %v308
  %v3279 = vmax.f32 %v2767, %v309
  %v3280 = vmax.f32 %v2768, %v310
  %v3281 = vmax.f32 %v2769, %v311
  %v3282 = vmax.f32 %v2770, %v312
  %v3283 = vmax.f32 %v2771, %v313
  %v3284 = vmax.f32 %v2772, %v314
  %v3285 = vmax.f32 %v2773, %v315
  %v3286 = vmax.f32 %v2774, %v316
  %v3287 = vmax.f32 %v2775, %v317
  %v3288 = vmax.f32 %v2776, %v318
  %v3289 = vmax.f32 %v2777, %v319
  %v3290 = vmax.f32 %v2778, %v320
  %v3291 = vmax.f32 %v2779, %v321
  %v3292 = vmax.f32 %v2780, %v322
  %v3293 = vmax.f32 %v2781, %v323
  %v3294 = vadd.f32 %v2782, %v686
  %v3295 = vadd.f32 %v2783, %v687
  %v3296 = vadd.f32 %v2784, %v688
  %v3297 = vadd.f32 %v2785, %v689
  %v3298 = vadd.f32 %v2786, %v690
  %v3299 = vadd.f32 %v2787, %v691
  %v3300 = vadd.f32 %v2788, %v692
  %v3301 = vadd.f32 %v2789, %v693
  %v3302 = vadd.f32 %v2790, %v694
  %v3303 = vadd.f32 %v2791, %v695
  %v3304 = vadd.f32 %v2792, %v696
  %v3305 = vadd.f32 %v2793, %v697
  %v3306 = vadd.f32 %v2794, %v698
  %v3307 = vadd.f32 %v2795, %v699
  %v3308 = vadd.f32 %v2796, %v700
  %v3309 = vadd.f32 %v2797, %v701
  %v3310 = vadd.f32 %v2798, %v704
  %v3311 = vadd.f32 %v2799, %v705
  %v3312 = vadd.f32 %v2800, %v706
  %v3313 = vadd.f32 %v2801, %v707
  %v3314 = vadd.f32 %v2802, %v708
  %v3315 = vadd.f32 %v2803, %v709
  %v3316 = vadd.f32 %v2804, %v710
  %v3317 = vadd.f32 %v2805, %v711
  %v3318 = vadd.f32 %v2806, %v712
  %v3319 = vadd.f32 %v2807, %v713
  %v3320 = vadd.f32 %v2808, %v714
  %v3321 = vadd.f32 %v2809, %v715
  %v3322 = vadd.f32 %v2810, %v716
  %v3323 = vadd.f32 %v2811, %v717
  %v3324 = vadd.f32 %v2812, %v718
  %v3325 = vadd.f32 %v2813, %v719
  %v3326 = vadd.f32 %v2814, %v722
  %v3327 = vadd.f32 %v2815, %v723
  %v3328 = vadd.f32 %v2816, %v724
  %v3329 = vadd.f32 %v2817, %v725
  %v3330 = vadd.f32 %v2818, %v726
  %v3331 = vadd.f32 %v2819, %v727
  %v3332 = vadd.f32 %v2820, %v728
  %v3333 = vadd.f32 %v2821, %v729
  %v3334 = vadd.f32 %v2822, %v730
  %v3335 = vadd.f32 %v2823, %v731
  %v3336 = vadd.f32 %v2824, %v732
  %v3337 = vadd.f32 %v2825, %v733
  %v3338 = vadd.f32 %v2826, %v734
  %v3339 = vadd.f32 %v2827, %v735
  %v3340 = vadd.f32 %v2828, %v736
  %v3341 = vadd.f32 %v2829, %v737
  %v3342 = vadd.f32 %v2830, %v740
  %v3343 = vadd.f32 %v2831, %v741
  %v3344 = vadd.f32 %v2832, %v742
  %v3345 = vadd.f32 %v2833, %v743
  %v3346 = vadd.f32 %v2834, %v744
  %v3347 = vadd.f32 %v2835, %v745
  %v3348 = vadd.f32 %v2836, %v746
  %v3349 = vadd.f32 %v2837, %v747
  %v3350 = vadd.f32 %v2838, %v748
  %v3351 = vadd.f32 %v2839, %v749
  %v3352 = vadd.f32 %v2840, %v750
  %v3353 = vadd.f32 %v2841, %v751
  %v3354 = vadd.f32 %v2842, %v752
  %v3355 = vadd.f32 %v2843, %v753
  %v3356 = vadd.f32 %v2844, %v754
  %v3357 = vadd.f32 %v2845, %v755
  %v3358 = vadd.f32 %v2846, %v758
  %v3359 = vadd.f32 %v2847, %v759
  %v3360 = vadd.f32 %v2848, %v760
  %v3361 = vadd.f32 %v2849, %v761
  %v3362 = vadd.f32 %v2850, %v762
  %v3363 = vadd.f32 %v2851, %v763
  %v3364 = vadd.f32 %v2852, %v764
  %v3365 = vadd.f32 %v2853, %v765
  %v3366 = vadd.f32 %v2854, %v766
  %v3367 = vadd.f32 %v2855, %v767
  %v3368 = vadd.f32 %v2856, %v768
  %v3369 = vadd.f32 %v2857, %v769
  %v3370 = vadd.f32 %v2858, %v770
  %v3371 = vadd.f32 %v2859, %v771
  %v3372 = vadd.f32 %v2860, %v772
  %v3373 = vadd.f32 %v2861, %v773
  %v3374 = vadd.f32 %v2862, %v776
  %v3375 = vadd.f32 %v2863, %v777
  %v3376 = vadd.f32 %v2864, %v778
  %v3377 = vadd.f32 %v2865, %v779
  %v3378 = vadd.f32 %v2866, %v780
  %v3379 = vadd.f32 %v2867, %v781
  %v3380 = vadd.f32 %v2868, %v782
  %v3381 = vadd.f32 %v2869, %v783
  %v3382 = vadd.f32 %v2870, %v784
  %v3383 = vadd.f32 %v2871, %v785
  %v3384 = vadd.f32 %v2872, %v786
  %v3385 = vadd.f32 %v2873, %v787
  %v3386 = vadd.f32 %v2874, %v788
  %v3387 = vadd.f32 %v2875, %v789
  %v3388 = vadd.f32 %v2876, %v790
  %v3389 = vadd.f32 %v2877, %v791
  %v3390 = vadd.f32 %v2878, %v794
  %v3391 = vadd.f32 %v2879, %v795
  %v3392 = vadd.f32 %v2880, %v796
  %v3393 = vadd.f32 %v2881, %v797
  %v3394 = vadd.f32 %v2882, %v798
  %v3395 = vadd.f32 %v2883, %v799
  %v3396 = vadd.f32 %v2884, %v800
  %v3397 = vadd.f32 %v2885, %v801
  %v3398 = vadd.f32 %v2886, %v802
  %v3399 = vadd.f32 %v2887, %v803
  %v3400 = vadd.f32 %v2888, %v804
  %v3401 = vadd.f32 %v2889, %v805
  %v3402 = vadd.f32 %v2890, %v806
  %v3403 = vadd.f32 %v2891, %v807
  %v3404 = vadd.f32 %v2892, %v808
  %v3405 = vadd.f32 %v2893, %v809
  %v3406 = vadd.f32 %v2894, %v812
  %v3407 = vadd.f32 %v2895, %v813
  %v3408 = vadd.f32 %v2896, %v814
  %v3409 = vadd.f32 %v2897, %v815
  %v3410 = vadd.f32 %v2898, %v816
  %v3411 = vadd.f32 %v2899, %v817
  %v3412 = vadd.f32 %v2900, %v818
  %v3413 = vadd.f32 %v2901, %v819
  %v3414 = vadd.f32 %v2902, %v820
  %v3415 = vadd.f32 %v2903, %v821
  %v3416 = vadd.f32 %v2904, %v822
  %v3417 = vadd.f32 %v2905, %v823
  %v3418 = vadd.f32 %v2906, %v824
  %v3419 = vadd.f32 %v2907, %v825
  %v3420 = vadd.f32 %v2908, %v826
  %v3421 = vadd.f32 %v2909, %v827
  %v3422 = vadd.f32 %v2910, %v830
  %v3423 = vadd.f32 %v2911, %v831
  %v3424 = vadd.f32 %v2912, %v832
  %v3425 = vadd.f32 %v2913, %v833
  %v3426 = vadd.f32 %v2914, %v834
  %v3427 = vadd.f32 %v2915, %v835
  %v3428 = vadd.f32 %v2916, %v836
  %v3429 = vadd.f32 %v2917, %v837
  %v3430 = vadd.f32 %v2918, %v838
  %v3431 = vadd.f32 %v2919, %v839
  %v3432 = vadd.f32 %v2920, %v840
  %v3433 = vadd.f32 %v2921, %v841
  %v3434 = vadd.f32 %v2922, %v842
  %v3435 = vadd.f32 %v2923, %v843
  %v3436 = vadd.f32 %v2924, %v844
  %v3437 = vadd.f32 %v2925, %v845
  %v3438 = vadd.f32 %v2926, %v848
  %v3439 = vadd.f32 %v2927, %v849
  %v3440 = vadd.f32 %v2928, %v850
  %v3441 = vadd.f32 %v2929, %v851
  %v3442 = vadd.f32 %v2930, %v852
  %v3443 = vadd.f32 %v2931, %v853
  %v3444 = vadd.f32 %v2932, %v854
  %v3445 = vadd.f32 %v2933, %v855
  %v3446 = vadd.f32 %v2934, %v856
  %v3447 = vadd.f32 %v2935, %v857
  %v3448 = vadd.f32 %v2936, %v858
  %v3449 = vadd.f32 %v2937, %v859
  %v3450 = vadd.f32 %v2938, %v860
  %v3451 = vadd.f32 %v2939, %v861
  %v3452 = vadd.f32 %v2940, %v862
  %v3453 = vadd.f32 %v2941, %v863
  %v3454 = vadd.f32 %v2942, %v866
  %v3455 = vadd.f32 %v2943, %v867
  %v3456 = vadd.f32 %v2944, %v868
  %v3457 = vadd.f32 %v2945, %v869
  %v3458 = vadd.f32 %v2946, %v870
  %v3459 = vadd.f32 %v2947, %v871
  %v3460 = vadd.f32 %v2948, %v872
  %v3461 = vadd.f32 %v2949, %v873
  %v3462 = vadd.f32 %v2950, %v874
  %v3463 = vadd.f32 %v2951, %v875
  %v3464 = vadd.f32 %v2952, %v876
  %v3465 = vadd.f32 %v2953, %v877
  %v3466 = vadd.f32 %v2954, %v878
  %v3467 = vadd.f32 %v2955, %v879
  %v3468 = vadd.f32 %v2956, %v880
  %v3469 = vadd.f32 %v2957, %v881
  %v3470 = vadd.f32 %v2958, %v884
  %v3471 = vadd.f32 %v2959, %v885
  %v3472 = vadd.f32 %v2960, %v886
  %v3473 = vadd.f32 %v2961, %v887
  %v3474 = vadd.f32 %v2962, %v888
  %v3475 = vadd.f32 %v2963, %v889
  %v3476 = vadd.f32 %v2964, %v890
  %v3477 = vadd.f32 %v2965, %v891
  %v3478 = vadd.f32 %v2966, %v892
  %v3479 = vadd.f32 %v2967, %v893
  %v3480 = vadd.f32 %v2968, %v894
  %v3481 = vadd.f32 %v2969, %v895
  %v3482 = vadd.f32 %v2970, %v896
  %v3483 = vadd.f32 %v2971, %v897
  %v3484 = vadd.f32 %v2972, %v898
  %v3485 = vadd.f32 %v2973, %v899
  %v3486 = vadd.f32 %v2974, %v902
  %v3487 = vadd.f32 %v2975, %v903
  %v3488 = vadd.f32 %v2976, %v904
  %v3489 = vadd.f32 %v2977, %v905
  %v3490 = vadd.f32 %v2978, %v906
  %v3491 = vadd.f32 %v2979, %v907
  %v3492 = vadd.f32 %v2980, %v908
  %v3493 = vadd.f32 %v2981, %v909
  %v3494 = vadd.f32 %v2982, %v910
  %v3495 = vadd.f32 %v2983, %v911
  %v3496 = vadd.f32 %v2984, %v912
  %v3497 = vadd.f32 %v2985, %v913
  %v3498 = vadd.f32 %v2986, %v914
  %v3499 = vadd.f32 %v2987, %v915
  %v3500 = vadd.f32 %v2988, %v916
  %v3501 = vadd.f32 %v2989, %v917
  %v3502 = vadd.f32 %v2990, %v920
  %v3503 = vadd.f32 %v2991, %v921
  %v3504 = vadd.f32 %v2992, %v922
  %v3505 = vadd.f32 %v2993, %v923
  %v3506 = vadd.f32 %v2994, %v924
  %v3507 = vadd.f32 %v2995, %v925
  %v3508 = vadd.f32 %v2996, %v926
  %v3509 = vadd.f32 %v2997, %v927
  %v3510 = vadd.f32 %v2998, %v928
  %v3511 = vadd.f32 %v2999, %v929
  %v3512 = vadd.f32 %v3000, %v930
  %v3513 = vadd.f32 %v3001, %v931
  %v3514 = vadd.f32 %v3002, %v932
  %v3515 = vadd.f32 %v3003, %v933
  %v3516 = vadd.f32 %v3004, %v934
  %v3517 = vadd.f32 %v3005, %v935
  %v3518 = vadd.f32 %v3006, %v938
  %v3519 = vadd.f32 %v3007, %v939
  %v3520 = vadd.f32 %v3008, %v940
  %v3521 = vadd.f32 %v3009, %v941
  %v3522 = vadd.f32 %v3010, %v942
  %v3523 = vadd.f32 %v3011, %v943
  %v3524 = vadd.f32 %v3012, %v944
  %v3525 = vadd.f32 %v3013, %v945
  %v3526 = vadd.f32 %v3014, %v946
  %v3527 = vadd.f32 %v3015, %v947
  %v3528 = vadd.f32 %v3016, %v948
  %v3529 = vadd.f32 %v3017, %v949
  %v3530 = vadd.f32 %v3018, %v950
  %v3531 = vadd.f32 %v3019, %v951
  %v3532 = vadd.f32 %v3020, %v952
  %v3533 = vadd.f32 %v3021, %v953
  %v3534 = vadd.f32 %v3022, %v956
  %v3535 = vadd.f32 %v3023, %v957
  %v3536 = vadd.f32 %v3024, %v958
  %v3537 = vadd.f32 %v3025, %v959
  %v3538 = vadd.f32 %v3026, %v960
  %v3539 = vadd.f32 %v3027, %v961
  %v3540 = vadd.f32 %v3028, %v962
  %v3541 = vadd.f32 %v3029, %v963
  %v3542 = vadd.f32 %v3030, %v964
  %v3543 = vadd.f32 %v3031, %v965
  %v3544 = vadd.f32 %v3032, %v966
  %v3545 = vadd.f32 %v3033, %v967
  %v3546 = vadd.f32 %v3034, %v968
  %v3547 = vadd.f32 %v3035, %v969
  %v3548 = vadd.f32 %v3036, %v970
  %v3549 = vadd.f32 %v3037, %v971
  %v3550 = vmax.f32 %v3038, %v54
  %v3551 = vmax.f32 %v3039, %v55
  %v3552 = vmax.f32 %v3040, %v56
  %v3553 = vmax.f32 %v3041, %v57
  %v3554 = vmax.f32 %v3042, %v58
  %v3555 = vmax.f32 %v3043, %v59
  %v3556 = vmax.f32 %v3044, %v60
  %v3557 = vmax.f32 %v3045, %v61
  %v3558 = vmax.f32 %v3046, %v62
  %v3559 = vmax.f32 %v3047, %v63
  %v3560 = vmax.f32 %v3048, %v64
  %v3561 = vmax.f32 %v3049, %v65
  %v3562 = vmax.f32 %v3050, %v66
  %v3563 = vmax.f32 %v3051, %v67
  %v3564 = vmax.f32 %v3052, %v68
  %v3565 = vmax.f32 %v3053, %v69
  %v3566 = vmax.f32 %v3054, %v72
  %v3567 = vmax.f32 %v3055, %v73
  %v3568 = vmax.f32 %v3056, %v74
  %v3569 = vmax.f32 %v3057, %v75
  %v3570 = vmax.f32 %v3058, %v76
  %v3571 = vmax.f32 %v3059, %v77
  %v3572 = vmax.f32 %v3060, %v78
  %v3573 = vmax.f32 %v3061, %v79
  %v3574 = vmax.f32 %v3062, %v80
  %v3575 = vmax.f32 %v3063, %v81
  %v3576 = vmax.f32 %v3064, %v82
  %v3577 = vmax.f32 %v3065, %v83
  %v3578 = vmax.f32 %v3066, %v84
  %v3579 = vmax.f32 %v3067, %v85
  %v3580 = vmax.f32 %v3068, %v86
  %v3581 = vmax.f32 %v3069, %v87
  %v3582 = vmax.f32 %v3070, %v90
  %v3583 = vmax.f32 %v3071, %v91
  %v3584 = vmax.f32 %v3072, %v92
  %v3585 = vmax.f32 %v3073, %v93
  %v3586 = vmax.f32 %v3074, %v94
  %v3587 = vmax.f32 %v3075, %v95
  %v3588 = vmax.f32 %v3076, %v96
  %v3589 = vmax.f32 %v3077, %v97
  %v3590 = vmax.f32 %v3078, %v98
  %v3591 = vmax.f32 %v3079, %v99
  %v3592 = vmax.f32 %v3080, %v100
  %v3593 = vmax.f32 %v3081, %v101
  %v3594 = vmax.f32 %v3082, %v102
  %v3595 = vmax.f32 %v3083, %v103
  %v3596 = vmax.f32 %v3084, %v104
  %v3597 = vmax.f32 %v3085, %v105
  %v3598 = vmax.f32 %v3086, %v108
  %v3599 = vmax.f32 %v3087, %v109
  %v3600 = vmax.f32 %v3088, %v110
  %v3601 = vmax.f32 %v3089, %v111
  %v3602 = vmax.f32 %v3090, %v112
  %v3603 = vmax.f32 %v3091, %v113
  %v3604 = vmax.f32 %v3092, %v114
  %v3605 = vmax.f32 %v3093, %v115
  %v3606 = vmax.f32 %v3094, %v116
  %v3607 = vmax.f32 %v3095, %v117
  %v3608 = vmax.f32 %v3096, %v118
  %v3609 = vmax.f32 %v3097, %v119
  %v3610 = vmax.f32 %v3098, %v120
  %v3611 = vmax.f32 %v3099, %v121
  %v3612 = vmax.f32 %v3100, %v122
  %v3613 = vmax.f32 %v3101, %v123
  %v3614 = vmax.f32 %v3102, %v126
  %v3615 = vmax.f32 %v3103, %v127
  %v3616 = vmax.f32 %v3104, %v128
  %v3617 = vmax.f32 %v3105, %v129
  %v3618 = vmax.f32 %v3106, %v130
  %v3619 = vmax.f32 %v3107, %v131
  %v3620 = vmax.f32 %v3108, %v132
  %v3621 = vmax.f32 %v3109, %v133
  %v3622 = vmax.f32 %v3110, %v134
  %v3623 = vmax.f32 %v3111, %v135
  %v3624 = vmax.f32 %v3112, %v136
  %v3625 = vmax.f32 %v3113, %v137
  %v3626 = vmax.f32 %v3114, %v138
  %v3627 = vmax.f32 %v3115, %v139
  %v3628 = vmax.f32 %v3116, %v140
  %v3629 = vmax.f32 %v3117, %v141
  %v3630 = vmax.f32 %v3118, %v144
  %v3631 = vmax.f32 %v3119, %v145
  %v3632 = vmax.f32 %v3120, %v146
  %v3633 = vmax.f32 %v3121, %v147
  %v3634 = vmax.f32 %v3122, %v148
  %v3635 = vmax.f32 %v3123, %v149
  %v3636 = vmax.f32 %v3124, %v150
  %v3637 = vmax.f32 %v3125, %v151
  %v3638 = vmax.f32 %v3126, %v152
  %v3639 = vmax.f32 %v3127, %v153
  %v3640 = vmax.f32 %v3128, %v154
  %v3641 = vmax.f32 %v3129, %v155
  %v3642 = vmax.f32 %v3130, %v156
  %v3643 = vmax.f32 %v3131, %v157
  %v3644 = vmax.f32 %v3132, %v158
  %v3645 = vmax.f32 %v3133, %v159
  %v3646 = vmax.f32 %v3134, %v162
  %v3647 = vmax.f32 %v3135, %v163
  %v3648 = vmax.f32 %v3136, %v164
  %v3649 = vmax.f32 %v3137, %v165
  %v3650 = vmax.f32 %v3138, %v166
  %v3651 = vmax.f32 %v3139, %v167
  %v3652 = vmax.f32 %v3140, %v168
  %v3653 = vmax.f32 %v3141, %v169
  %v3654 = vmax.f32 %v3142, %v170
  %v3655 = vmax.f32 %v3143, %v171
  %v3656 = vmax.f32 %v3144, %v172
  %v3657 = vmax.f32 %v3145, %v173
  %v3658 = vmax.f32 %v3146, %v174
  %v3659 = vmax.f32 %v3147, %v175
  %v3660 = vmax.f32 %v3148, %v176
  %v3661 = vmax.f32 %v3149, %v177
  %v3662 = vmax.f32 %v3150, %v180
  %v3663 = vmax.f32 %v3151, %v181
  %v3664 = vmax.f32 %v3152, %v182
  %v3665 = vmax.f32 %v3153, %v183
  %v3666 = vmax.f32 %v3154, %v184
  %v3667 = vmax.f32 %v3155, %v185
  %v3668 = vmax.f32 %v3156, %v186
  %v3669 = vmax.f32 %v3157, %v187
  %v3670 = vmax.f32 %v3158, %v188
  %v3671 = vmax.f32 %v3159, %v189
  %v3672 = vmax.f32 %v3160, %v190
  %v3673 = vmax.f32 %v3161, %v191
  %v3674 = vmax.f32 %v3162, %v192
  %v3675 = vmax.f32 %v3163, %v193
  %v3676 = vmax.f32 %v3164, %v194
  %v3677 = vmax.f32 %v3165, %v195
  %v3678 = vmax.f32 %v3166, %v198
  %v3679 = vmax.f32 %v3167, %v199
  %v3680 = vmax.f32 %v3168, %v200
  %v3681 = vmax.f32 %v3169, %v201
  %v3682 = vmax.f32 %v3170, %v202
  %v3683 = vmax.f32 %v3171, %v203
  %v3684 = vmax.f32 %v3172, %v204
  %v3685 = vmax.f32 %v3173, %v205
  %v3686 = vmax.f32 %v3174, %v206
  %v3687 = vmax.f32 %v3175, %v207
  %v3688 = vmax.f32 %v3176, %v208
  %v3689 = vmax.f32 %v3177, %v209
  %v3690 = vmax.f32 %v3178, %v210
  %v3691 = vmax.f32 %v3179, %v211
  %v3692 = vmax.f32 %v3180, %v212
  %v3693 = vmax.f32 %v3181, %v213
  %v3694 = vmax.f32 %v3182, %v216
  %v3695 = vmax.f32 %v3183, %v217
  %v3696 = vmax.f32 %v3184, %v218
  %v3697 = vmax.f32 %v3185, %v219
  %v3698 = vmax.f32 %v3186, %v220
  %v3699 = vmax.f32 %v3187, %v221
  %v3700 = vmax.f32 %v3188, %v222
  %v3701 = vmax.f32 %v3189, %v223
  %v3702 = vmax.f32 %v3190, %v224
  %v3703 = vmax.f32 %v3191, %v225
  %v3704 = vmax.f32 %v3192, %v226
  %v3705 = vmax.f32 %v3193, %v227
  %v3706 = vmax.f32 %v3194, %v228
  %v3707 = vmax.f32 %v3195, %v229
  %v3708 = vmax.f32 %v3196, %v230
  %v3709 = vmax.f32 %v3197, %v231
  %v3710 = vmax.f32 %v3198, %v234
  %v3711 = vmax.f32 %v3199, %v235
  %v3712 = vmax.f32 %v3200, %v236
  %v3713 = vmax.f32 %v3201, %v237
  %v3714 = vmax.f32 %v3202, %v238
  %v3715 = vmax.f32 %v3203, %v239
  %v3716 = vmax.f32 %v3204, %v240
  %v3717 = vmax.f32 %v3205, %v241
  %v3718 = vmax.f32 %v3206, %v242
  %v3719 = vmax.f32 %v3207, %v243
  %v3720 = vmax.f32 %v3208, %v244
  %v3721 = vmax.f32 %v3209, %v245
  %v3722 = vmax.f32 %v3210, %v246
  %v3723 = vmax.f32 %v3211, %v247
  %v3724 = vmax.f32 %v3212, %v248
  %v3725 = vmax.f32 %v3213, %v249
  %v3726 = vmax.f32 %v3214, %v252
  %v3727 = vmax.f32 %v3215, %v253
  %v3728 = vmax.f32 %v3216, %v254
  %v3729 = vmax.f32 %v3217, %v255
  %v3730 = vmax.f32 %v3218, %v256
  %v3731 = vmax.f32 %v3219, %v257
  %v3732 = vmax.f32 %v3220, %v258
  %v3733 = vmax.f32 %v3221, %v259
  %v3734 = vmax.f32 %v3222, %v260
  %v3735 = vmax.f32 %v3223, %v261
  %v3736 = vmax.f32 %v3224, %v262
  %v3737 = vmax.f32 %v3225, %v263
  %v3738 = vmax.f32 %v3226, %v264
  %v3739 = vmax.f32 %v3227, %v265
  %v3740 = vmax.f32 %v3228, %v266
  %v3741 = vmax.f32 %v3229, %v267
  %v3742 = vmax.f32 %v3230, %v270
  %v3743 = vmax.f32 %v3231, %v271
  %v3744 = vmax.f32 %v3232, %v272
  %v3745 = vmax.f32 %v3233, %v273
  %v3746 = vmax.f32 %v3234, %v274
  %v3747 = vmax.f32 %v3235, %v275
  %v3748 = vmax.f32 %v3236, %v276
  %v3749 = vmax.f32 %v3237, %v277
  %v3750 = vmax.f32 %v3238, %v278
  %v3751 = vmax.f32 %v3239, %v279
  %v3752 = vmax.f32 %v3240, %v280
  %v3753 = vmax.f32 %v3241, %v281
  %v3754 = vmax.f32 %v3242, %v282
  %v3755 = vmax.f32 %v3243, %v283
  %v3756 = vmax.f32 %v3244, %v284
  %v3757 = vmax.f32 %v3245, %v285
  %v3758 = vmax.f32 %v3246, %v288
  %v3759 = vmax.f32 %v3247, %v289
  %v3760 = vmax.f32 %v3248, %v290
  %v3761 = vmax.f32 %v3249, %v291
  %v3762 = vmax.f32 %v3250, %v292
  %v3763 = vmax.f32 %v3251, %v293
  %v3764 = vmax.f32 %v3252, %v294
  %v3765 = vmax.f32 %v3253, %v295
  %v3766 = vmax.f32 %v3254, %v296
  %v3767 = vmax.f32 %v3255, %v297
  %v3768 = vmax.f32 %v3256, %v298
  %v3769 = vmax.f32 %v3257, %v299
  %v3770 = vmax.f32 %v3258, %v300
  %v3771 = vmax.f32 %v3259, %v301
  %v3772 = vmax.f32 %v3260, %v302
  %v3773 = vmax.f32 %v3261, %v303
  %v3774 = vmax.f32 %v3262, %v306
  %v3775 = vmax.f32 %v3263, %v307
  %v3776 = vmax.f32 %v3264, %v308
  %v3777 = vmax.f32 %v3265, %v309
  %v3778 = vmax.f32 %v3266, %v310
  %v3779 = vmax.f32 %v3267, %v311
  %v3780 = vmax.f32 %v3268, %v312
  %v3781 = vmax.f32 %v3269, %v313
  %v3782 = vmax.f32 %v3270, %v314
  %v3783 = vmax.f32 %v3271, %v315
  %v3784 = vmax.f32 %v3272, %v316
  %v3785 = vmax.f32 %v3273, %v317
  %v3786 = vmax.f32 %v3274, %v318
  %v3787 = vmax.f32 %v3275, %v319
  %v3788 = vmax.f32 %v3276, %v320
  %v3789 = vmax.f32 %v3277, %v321
  %v3790 = vmax.f32 %v3278, %v324
  %v3791 = vmax.f32 %v3279, %v325
  %v3792 = vmax.f32 %v3280, %v326
  %v3793 = vmax.f32 %v3281, %v327
  %v3794 = vmax.f32 %v3282, %v328
  %v3795 = vmax.f32 %v3283, %v329
  %v3796 = vmax.f32 %v3284, %v330
  %v3797 = vmax.f32 %v3285, %v331
  %v3798 = vmax.f32 %v3286, %v332
  %v3799 = vmax.f32 %v3287, %v333
  %v3800 = vmax.f32 %v3288, %v334
  %v3801 = vmax.f32 %v3289, %v335
  %v3802 = vmax.f32 %v3290, %v336
  %v3803 = vmax.f32 %v3291, %v337
  %v3804 = vmax.f32 %v3292, %v338
  %v3805 = vmax.f32 %v3293, %v339
  %v3806 = vadd.f32 %v3294, %v702
  %v3807 = vadd.f32 %v3295, %v703
  %v3808 = vadd.f32 %v3296, %v704
  %v3809 = vadd.f32 %v3297, %v705
  %v3810 = vadd.f32 %v3298, %v706
  %v3811 = vadd.f32 %v3299, %v707
  %v3812 = vadd.f32 %v3300, %v708
  %v3813 = vadd.f32 %v3301, %v709
  %v3814 = vadd.f32 %v3302, %v710
  %v3815 = vadd.f32 %v3303, %v711
  %v3816 = vadd.f32 %v3304, %v712
  %v3817 = vadd.f32 %v3305, %v713
  %v3818 = vadd.f32 %v3306, %v714
  %v3819 = vadd.f32 %v3307, %v715
  %v3820 = vadd.f32 %v3308, %v716
  %v3821 = vadd.f32 %v3309, %v717
  %v3822 = vadd.f32 %v3310, %v720
  %v3823 = vadd.f32 %v3311, %v721
  %v3824 = vadd.f32 %v3312, %v722
  %v3825 = vadd.f32 %v3313, %v723
  %v3826 = vadd.f32 %v3314, %v724
  %v3827 = vadd.f32 %v3315, %v725
  %v3828 = vadd.f32 %v3316, %v726
  %v3829 = vadd.f32 %v3317, %v727
  %v3830 = vadd.f32 %v3318, %v728
  %v3831 = vadd.f32 %v3319, %v729
  %v3832 = vadd.f32 %v3320, %v730
  %v3833 = vadd.f32 %v3321, %v731
  %v3834 = vadd.f32 %v3322, %v732
  %v3835 = vadd.f32 %v3323, %v733
  %v3836 = vadd.f32 %v3324, %v734
  %v3837 = vadd.f32 %v3325, %v735
  %v3838 = vadd.f32 %v3326, %v738
  %v3839 = vadd.f32 %v3327, %v739
  %v3840 = vadd.f32 %v3328, %v740
  %v3841 = vadd.f32 %v3329, %v741
  %v3842 = vadd.f32 %v3330, %v742
  %v3843 = vadd.f32 %v3331, %v743
  %v3844 = vadd.f32 %v3332, %v744
  %v3845 = vadd.f32 %v3333, %v745
  %v3846 = vadd.f32 %v3334, %v746
  %v3847 = vadd.f32 %v3335, %v747
  %v3848 = vadd.f32 %v3336, %v748
  %v3849 = vadd.f32 %v3337, %v749
  %v3850 = vadd.f32 %v3338, %v750
  %v3851 = vadd.f32 %v3339, %v751
  %v3852 = vadd.f32 %v3340, %v752
  %v3853 = vadd.f32 %v3341, %v753
  %v3854 = vadd.f32 %v3342, %v756
  %v3855 = vadd.f32 %v3343, %v757
  %v3856 = vadd.f32 %v3344, %v758
  %v3857 = vadd.f32 %v3345, %v759
  %v3858 = vadd.f32 %v3346, %v760
  %v3859 = vadd.f32 %v3347, %v761
  %v3860 = vadd.f32 %v3348, %v762
  %v3861 = vadd.f32 %v3349, %v763
  %v3862 = vadd.f32 %v3350, %v764
  %v3863 = vadd.f32 %v3351, %v765
  %v3864 = vadd.f32 %v3352, %v766
  %v3865 = vadd.f32 %v3353, %v767
  %v3866 = vadd.f32 %v3354, %v768
  %v3867 = vadd.f32 %v3355, %v769
  %v3868 = vadd.f32 %v3356, %v770
  %v3869 = vadd.f32 %v3357, %v771
  %v3870 = vadd.f32 %v3358, %v774
  %v3871 = vadd.f32 %v3359, %v775
  %v3872 = vadd.f32 %v3360, %v776
  %v3873 = vadd.f32 %v3361, %v777
  %v3874 = vadd.f32 %v3362, %v778
  %v3875 = vadd.f32 %v3363, %v779
  %v3876 = vadd.f32 %v3364, %v780
  %v3877 = vadd.f32 %v3365, %v781
  %v3878 = vadd.f32 %v3366, %v782
  %v3879 = vadd.f32 %v3367, %v783
  %v3880 = vadd.f32 %v3368, %v784
  %v3881 = vadd.f32 %v3369, %v785
  %v3882 = vadd.f32 %v3370, %v786
  %v3883 = vadd.f32 %v3371, %v787
  %v3884 = vadd.f32 %v3372, %v788
  %v3885 = vadd.f32 %v3373, %v789
  %v3886 = vadd.f32 %v3374, %v792
  %v3887 = vadd.f32 %v3375, %v793
  %v3888 = vadd.f32 %v3376, %v794
  %v3889 = vadd.f32 %v3377, %v795
  %v3890 = vadd.f32 %v3378, %v796
  %v3891 = vadd.f32 %v3379, %v797
  %v3892 = vadd.f32 %v3380, %v798
  %v3893 = vadd.f32 %v3381, %v799
  %v3894 = vadd.f32 %v3382, %v800
  %v3895 = vadd.f32 %v3383, %v801
  %v3896 = vadd.f32 %v3384, %v802
  %v3897 = vadd.f32 %v3385, %v803
  %v3898 = vadd.f32 %v3386, %v804
  %v3899 = vadd.f32 %v3387, %v805
  %v3900 = vadd.f32 %v3388, %v806
  %v3901 = vadd.f32 %v3389, %v807
  %v3902 = vadd.f32 %v3390, %v810
  %v3903 = vadd.f32 %v3391, %v811
  %v3904 = vadd.f32 %v3392, %v812
  %v3905 = vadd.f32 %v3393, %v813
  %v3906 = vadd.f32 %v3394, %v814
  %v3907 = vadd.f32 %v3395, %v815
  %v3908 = vadd.f32 %v3396, %v816
  %v3909 = vadd.f32 %v3397, %v817
  %v3910 = vadd.f32 %v3398, %v818
  %v3911 = vadd.f32 %v3399, %v819
  %v3912 = vadd.f32 %v3400, %v820
  %v3913 = vadd.f32 %v3401, %v821
  %v3914 = vadd.f32 %v3402, %v822
  %v3915 = vadd.f32 %v3403, %v823
  %v3916 = vadd.f32 %v3404, %v824
  %v3917 = vadd.f32 %v3405, %v825
  %v3918 = vadd.f32 %v3406, %v828
  %v3919 = vadd.f32 %v3407, %v829
  %v3920 = vadd.f32 %v3408, %v830
  %v3921 = vadd.f32 %v3409, %v831
  %v3922 = vadd.f32 %v3410, %v832
  %v3923 = vadd.f32 %v3411, %v833
  %v3924 = vadd.f32 %v3412, %v834
  %v3925 = vadd.f32 %v3413, %v835
  %v3926 = vadd.f32 %v3414, %v836
  %v3927 = vadd.f32 %v3415, %v837
  %v3928 = vadd.f32 %v3416, %v838
  %v3929 = vadd.f32 %v3417, %v839
  %v3930 = vadd.f32 %v3418, %v840
  %v3931 = vadd.f32 %v3419, %v841
  %v3932 = vadd.f32 %v3420, %v842
  %v3933 = vadd.f32 %v3421, %v843
  %v3934 = vadd.f32 %v3422, %v846
  %v3935 = vadd.f32 %v3423, %v847
  %v3936 = vadd.f32 %v3424, %v848
  %v3937 = vadd.f32 %v3425, %v849
  %v3938 = vadd.f32 %v3426, %v850
  %v3939 = vadd.f32 %v3427, %v851
  %v3940 = vadd.f32 %v3428, %v852
  %v3941 = vadd.f32 %v3429, %v853
  %v3942 = vadd.f32 %v3430, %v854
  %v3943 = vadd.f32 %v3431, %v855
  %v3944 = vadd.f32 %v3432, %v856
  %v3945 = vadd.f32 %v3433, %v857
  %v3946 = vadd.f32 %v3434, %v858
  %v3947 = vadd.f32 %v3435, %v859
  %v3948 = vadd.f32 %v3436, %v860
  %v3949 = vadd.f32 %v3437, %v861
  %v3950 = vadd.f32 %v3438, %v864
  %v3951 = vadd.f32 %v3439, %v865
  %v3952 = vadd.f32 %v3440, %v866
  %v3953 = vadd.f32 %v3441, %v867
  %v3954 = vadd.f32 %v3442, %v868
  %v3955 = vadd.f32 %v3443, %v869
  %v3956 = vadd.f32 %v3444, %v870
  %v3957 = vadd.f32 %v3445, %v871
  %v3958 = vadd.f32 %v3446, %v872
  %v3959 = vadd.f32 %v3447, %v873
  %v3960 = vadd.f32 %v3448, %v874
  %v3961 = vadd.f32 %v3449, %v875
  %v3962 = vadd.f32 %v3450, %v876
  %v3963 = vadd.f32 %v3451, %v877
  %v3964 = vadd.f32 %v3452, %v878
  %v3965 = vadd.f32 %v3453, %v879
  %v3966 = vadd.f32 %v3454, %v882
  %v3967 = vadd.f32 %v3455, %v883
  %v3968 = vadd.f32 %v3456, %v884
  %v3969 = vadd.f32 %v3457, %v885
  %v3970 = vadd.f32 %v3458, %v886
  %v3971 = vadd.f32 %v3459, %v887
  %v3972 = vadd.f32 %v3460, %v888
  %v3973 = vadd.f32 %v3461, %v889
  %v3974 = vadd.f32 %v3462, %v890
  %v3975 = vadd.f32 %v3463, %v891
  %v3976 = vadd.f32 %v3464, %v892
  %v3977 = vadd.f32 %v3465, %v893
  %v3978 = vadd.f32 %v3466, %v894
  %v3979 = vadd.f32 %v3467, %v895
  %v3980 = vadd.f32 %v3468, %v896
  %v3981 = vadd.f32 %v3469, %v897
  %v3982 = vadd.f32 %v3470, %v900
  %v3983 = vadd.f32 %v3471, %v901
  %v3984 = vadd.f32 %v3472, %v902
  %v3985 = vadd.f32 %v3473, %v903
  %v3986 = vadd.f32 %v3474, %v904
  %v3987 = vadd.f32 %v3475, %v905
  %v3988 = vadd.f32 %v3476, %v906
  %v3989 = vadd.f32 %v3477, %v907
  %v3990 = vadd.f32 %v3478, %v908
  %v3991 = vadd.f32 %v3479, %v909
  %v3992 = vadd.f32 %v3480, %v910
  %v3993 = vadd.f32 %v3481, %v911
  %v3994 = vadd.f32 %v3482, %v912
  %v3995 = vadd.f32 %v3483, %v913
  %v3996 = vadd.f32 %v3484, %v914
  %v3997 = vadd.f32 %v3485, %v915
  %v3998 = vadd.f32 %v3486, %v918
  %v3999 = vadd.f32 %v3487, %v919
  %v4000 = vadd.f32 %v3488, %v920
  %v4001 = vadd.f32 %v3489, %v921
  %v4002 = vadd.f32 %v3490, %v922
  %v4003 = vadd.f32 %v3491, %v923
  %v4004 = vadd.f32 %v3492, %v924
  %v4005 = vadd.f32 %v3493, %v925
  %v4006 = vadd.f32 %v3494, %v926
  %v4007 = vadd.f32 %v3495, %v927
  %v4008 = vadd.f32 %v3496, %v928
  %v4009 = vadd.f32 %v3497, %v929
  %v4010 = vadd.f32 %v3498, %v930
  %v4011 = vadd.f32 %v3499, %v931
  %v4012 = vadd.f32 %v3500, %v932
  %v4013 = vadd.f32 %v3501, %v933
  %v4014 = vadd.f32 %v3502, %v936
  %v4015 = vadd.f32 %v3503, %v937
  %v4016 = vadd.f32 %v3504, %v938
  %v4017 = vadd.f32 %v3505, %v939
  %v4018 = vadd.f32 %v3506, %v940
  %v4019 = vadd.f32 %v3507, %v941
  %v4020 = vadd.f32 %v3508, %v942
  %v4021 = vadd.f32 %v3509, %v943
  %v4022 = vadd.f32 %v3510, %v944
  %v4023 = vadd.f32 %v3511, %v945
  %v4024 = vadd.f32 %v3512, %v946
  %v4025 = vadd.f32 %v3513, %v947
  %v4026 = vadd.f32 %v3514, %v948
  %v4027 = vadd.f32 %v3515, %v949
  %v4028 = vadd.f32 %v3516, %v950
  %v4029 = vadd.f32 %v3517, %v951
  %v4030 = vadd.f32 %v3518, %v954
  %v4031 = vadd.f32 %v3519, %v955
  %v4032 = vadd.f32 %v3520, %v956
  %v4033 = vadd.f32 %v3521, %v957
  %v4034 = vadd.f32 %v3522, %v958
  %v4035 = vadd.f32 %v3523, %v959
  %v4036 = vadd.f32 %v3524, %v960
  %v4037 = vadd.f32 %v3525, %v961
  %v4038 = vadd.f32 %v3526, %v962
  %v4039 = vadd.f32 %v3527, %v963
  %v4040 = vadd.f32 %v3528, %v964
  %v4041 = vadd.f32 %v3529, %v965
  %v4042 = vadd.f32 %v3530, %v966
  %v4043 = vadd.f32 %v3531, %v967
  %v4044 = vadd.f32 %v3532, %v968
  %v4045 = vadd.f32 %v3533, %v969
  %v4046 = vadd.f32 %v3534, %v972
  %v4047 = vadd.f32 %v3535, %v973
  %v4048 = vadd.f32 %v3536, %v974
  %v4049 = vadd.f32 %v3537, %v975
  %v4050 = vadd.f32 %v3538, %v976
  %v4051 = vadd.f32 %v3539, %v977
  %v4052 = vadd.f32 %v3540, %v978
  %v4053 = vadd.f32 %v3541, %v979
  %v4054 = vadd.f32 %v3542, %v980
  %v4055 = vadd.f32 %v3543, %v981
  %v4056 = vadd.f32 %v3544, %v982
  %v4057 = vadd.f32 %v3545, %v983
  %v4058 = vadd.f32 %v3546, %v984
  %v4059 = vadd.f32 %v3547, %v985
  %v4060 = vadd.f32 %v3548, %v986
  %v4061 = vadd.f32 %v3549, %v987
  %v4062 = vmax.f32 %v3550, %v55
  %v4063 = vmax.f32 %v3551, %v56
  %v4064 = vmax.f32 %v3552, %v57
  %v4065 = vmax.f32 %v3553, %v58
  %v4066 = vmax.f32 %v3554, %v59
  %v4067 = vmax.f32 %v3555, %v60
  %v4068 = vmax.f32 %v3556, %v61
  %v4069 = vmax.f32 %v3557, %v62
  %v4070 = vmax.f32 %v3558, %v63
  %v4071 = vmax.f32 %v3559, %v64
  %v4072 = vmax.f32 %v3560, %v65
  %v4073 = vmax.f32 %v3561, %v66
  %v4074 = vmax.f32 %v3562, %v67
  %v4075 = vmax.f32 %v3563, %v68
  %v4076 = vmax.f32 %v3564, %v69
  %v4077 = vmax.f32 %v3565, %v70
  %v4078 = vmax.f32 %v3566, %v73
  %v4079 = vmax.f32 %v3567, %v74
  %v4080 = vmax.f32 %v3568, %v75
  %v4081 = vmax.f32 %v3569, %v76
  %v4082 = vmax.f32 %v3570, %v77
  %v4083 = vmax.f32 %v3571, %v78
  %v4084 = vmax.f32 %v3572, %v79
  %v4085 = vmax.f32 %v3573, %v80
  %v4086 = vmax.f32 %v3574, %v81
  %v4087 = vmax.f32 %v3575, %v82
  %v4088 = vmax.f32 %v3576, %v83
  %v4089 = vmax.f32 %v3577, %v84
  %v4090 = vmax.f32 %v3578, %v85
  %v4091 = vmax.f32 %v3579, %v86
  %v4092 = vmax.f32 %v3580, %v87
  %v4093 = vmax.f32 %v3581, %v88
  %v4094 = vmax.f32 %v3582, %v91
  %v4095 = vmax.f32 %v3583, %v92
  %v4096 = vmax.f32 %v3584, %v93
  %v4097 = vmax.f32 %v3585, %v94
  %v4098 = vmax.f32 %v3586, %v95
  %v4099 = vmax.f32 %v3587, %v96
  %v4100 = vmax.f32 %v3588, %v97
  %v4101 = vmax.f32 %v3589, %v98
  %v4102 = vmax.f32 %v3590, %v99
  %v4103 = vmax.f32 %v3591, %v100
  %v4104 = vmax.f32 %v3592, %v101
  %v4105 = vmax.f32 %v3593, %v102
  %v4106 = vmax.f32 %v3594, %v103
  %v4107 = vmax.f32 %v3595, %v104
  %v4108 = vmax.f32 %v3596, %v105
  %v4109 = vmax.f32 %v3597, %v106
  %v4110 = vmax.f32 %v3598, %v109
  %v4111 = vmax.f32 %v3599, %v110
  %v4112 = vmax.f32 %v3600, %v111
  %v4113 = vmax.f32 %v3601, %v112
  %v4114 = vmax.f32 %v3602, %v113
  %v4115 = vmax.f32 %v3603, %v114
  %v4116 = vmax.f32 %v3604, %v115
  %v4117 = vmax.f32 %v3605, %v116
  %v4118 = vmax.f32 %v3606, %v117
  %v4119 = vmax.f32 %v3607, %v118
  %v4120 = vmax.f32 %v3608, %v119
  %v4121 = vmax.f32 %v3609, %v120
  %v4122 = vmax.f32 %v3610, %v121
  %v4123 = vmax.f32 %v3611, %v122
  %v4124 = vmax.f32 %v3612, %v123
  %v4125 = vmax.f32 %v3613, %v124
  %v4126 = vmax.f32 %v3614, %v127
  %v4127 = vmax.f32 %v3615, %v128
  %v4128 = vmax.f32 %v3616, %v129
  %v4129 = vmax.f32 %v3617, %v130
  %v4130 = vmax.f32 %v3618, %v131
  %v4131 = vmax.f32 %v3619, %v132
  %v4132 = vmax.f32 %v3620, %v133
  %v4133 = vmax.f32 %v3621, %v134
  %v4134 = vmax.f32 %v3622, %v135
  %v4135 = vmax.f32 %v3623, %v136
  %v4136 = vmax.f32 %v3624, %v137
  %v4137 = vmax.f32 %v3625, %v138
  %v4138 = vmax.f32 %v3626, %v139
  %v4139 = vmax.f32 %v3627, %v140
  %v4140 = vmax.f32 %v3628, %v141
  %v4141 = vmax.f32 %v3629, %v142
  %v4142 = vmax.f32 %v3630, %v145
  %v4143 = vmax.f32 %v3631, %v146
  %v4144 = vmax.f32 %v3632, %v147
  %v4145 = vmax.f32 %v3633, %v148
  %v4146 = vmax.f32 %v3634, %v149
  %v4147 = vmax.f32 %v3635, %v150
  %v4148 = vmax.f32 %v3636, %v151
  %v4149 = vmax.f32 %v3637, %v152
  %v4150 = vmax.f32 %v3638, %v153
  %v4151 = vmax.f32 %v3639, %v154
  %v4152 = vmax.f32 %v3640, %v155
  %v4153 = vmax.f32 %v3641, %v156
  %v4154 = vmax.f32 %v3642, %v157
  %v4155 = vmax.f32 %v3643, %v158
  %v4156 = vmax.f32 %v3644, %v159
  %v4157 = vmax.f32 %v3645, %v160
  %v4158 = vmax.f32 %v3646, %v163
  %v4159 = vmax.f32 %v3647, %v164
  %v4160 = vmax.f32 %v3648, %v165
  %v4161 = vmax.f32 %v3649, %v166
  %v4162 = vmax.f32 %v3650, %v167
  %v4163 = vmax.f32 %v3651, %v168
  %v4164 = vmax.f32 %v3652, %v169
  %v4165 = vmax.f32 %v3653, %v170
  %v4166 = vmax.f32 %v3654, %v171
  %v4167 = vmax.f32 %v3655, %v172
  %v4168 = vmax.f32 %v3656, %v173
  %v4169 = vmax.f32 %v3657, %v174
  %v4170 = vmax.f32 %v3658, %v175
  %v4171 = vmax.f32 %v3659, %v176
  %v4172 = vmax.f32 %v3660, %v177
  %v4173 = vmax.f32 %v3661, %v178
  %v4174 = vmax.f32 %v3662, %v181
  %v4175 = vmax.f32 %v3663, %v182
  %v4176 = vmax.f32 %v3664, %v183
  %v4177 = vmax.f32 %v3665, %v184
  %v4178 = vmax.f32 %v3666, %v185
  %v4179 = vmax.f32 %v3667, %v186
  %v4180 = vmax.f32 %v3668, %v187
  %v4181 = vmax.f32 %v3669, %v188
  %v4182 = vmax.f32 %v3670, %v189
  %v4183 = vmax.f32 %v3671, %v190
  %v4184 = vmax.f32 %v3672, %v191
  %v4185 = vmax.f32 %v3673, %v192
  %v4186 = vmax.f32 %v3674, %v193
  %v4187 = vmax.f32 %v3675, %v194
  %v4188 = vmax.f32 %v3676, %v195
  %v4189 = vmax.f32 %v3677, %v196
  %v4190 = vmax.f32 %v3678, %v199
  %v4191 = vmax.f32 %v3679, %v200
  %v4192 = vmax.f32 %v3680, %v201
  %v4193 = vmax.f32 %v3681, %v202
  %v4194 = vmax.f32 %v3682, %v203
  %v4195 = vmax.f32 %v3683, %v204
  %v4196 = vmax.f32 %v3684, %v205
  %v4197 = vmax.f32 %v3685, %v206
  %v4198 = vmax.f32 %v3686, %v207
  %v4199 = vmax.f32 %v3687, %v208
  %v4200 = vmax.f32 %v3688, %v209
  %v4201 = vmax.f32 %v3689, %v210
  %v4202 = vmax.f32 %v3690, %v211
  %v4203 = vmax.f32 %v3691, %v212
  %v4204 = vmax.f32 %v3692, %v213
  %v4205 = vmax.f32 %v3693, %v214
  %v4206 = vmax.f32 %v3694, %v217
  %v4207 = vmax.f32 %v3695, %v218
  %v4208 = vmax.f32 %v3696, %v219
  %v4209 = vmax.f32 %v3697, %v220
  %v4210 = vmax.f32 %v3698, %v221
  %v4211 = vmax.f32 %v3699, %v222
  %v4212 = vmax.f32 %v3700, %v223
  %v4213 = vmax.f32 %v3701, %v224
  %v4214 = vmax.f32 %v3702, %v225
  %v4215 = vmax.f32 %v3703, %v226
  %v4216 = vmax.f32 %v3704, %v227
  %v4217 = vmax.f32 %v3705, %v228
  %v4218 = vmax.f32 %v3706, %v229
  %v4219 = vmax.f32 %v3707, %v230
  %v4220 = vmax.f32 %v3708, %v231
  %v4221 = vmax.f32 %v3709, %v232
  %v4222 = vmax.f32 %v3710, %v235
  %v4223 = vmax.f32 %v3711, %v236
  %v4224 = vmax.f32 %v3712, %v237
  %v4225 = vmax.f32 %v3713, %v238
  %v4226 = vmax.f32 %v3714, %v239
  %v4227 = vmax.f32 %v3715, %v240
  %v4228 = vmax.f32 %v3716, %v241
  %v4229 = vmax.f32 %v3717, %v242
  %v4230 = vmax.f32 %v3718, %v243
  %v4231 = vmax.f32 %v3719, %v244
  %v4232 = vmax.f32 %v3720, %v245
  %v4233 = vmax.f32 %v3721, %v246
  %v4234 = vmax.f32 %v3722, %v247
  %v4235 = vmax.f32 %v3723, %v248
  %v4236 = vmax.f32 %v3724, %v249
  %v4237 = vmax.f32 %v3725, %v250
  %v4238 = vmax.f32 %v3726, %v253
  %v4239 = vmax.f32 %v3727, %v254
  %v4240 = vmax.f32 %v3728, %v255
  %v4241 = vmax.f32 %v3729, %v256
  %v4242 = vmax.f32 %v3730, %v257
  %v4243 = vmax.f32 %v3731, %v258
  %v4244 = vmax.f32 %v3732, %v259
  %v4245 = vmax.f32 %v3733, %v260
  %v4246 = vmax.f32 %v3734, %v261
  %v4247 = vmax.f32 %v3735, %v262
  %v4248 = vmax.f32 %v3736, %v263
  %v4249 = vmax.f32 %v3737, %v264
  %v4250 = vmax.f32 %v3738, %v265
  %v4251 = vmax.f32 %v3739, %v266
  %v4252 = vmax.f32 %v3740, %v267
  %v4253 = vmax.f32 %v3741, %v268
  %v4254 = vmax.f32 %v3742, %v271
  %v4255 = vmax.f32 %v3743, %v272
  %v4256 = vmax.f32 %v3744, %v273
  %v4257 = vmax.f32 %v3745, %v274
  %v4258 = vmax.f32 %v3746, %v275
  %v4259 = vmax.f32 %v3747, %v276
  %v4260 = vmax.f32 %v3748, %v277
  %v4261 = vmax.f32 %v3749, %v278
  %v4262 = vmax.f32 %v3750, %v279
  %v4263 = vmax.f32 %v3751, %v280
  %v4264 = vmax.f32 %v3752, %v281
  %v4265 = vmax.f32 %v3753, %v282
  %v4266 = vmax.f32 %v3754, %v283
  %v4267 = vmax.f32 %v3755, %v284
  %v4268 = vmax.f32 %v3756, %v285
  %v4269 = vmax.f32 %v3757, %v286
  %v4270 = vmax.f32 %v3758, %v289
  %v4271 = vmax.f32 %v3759, %v290
  %v4272 = vmax.f32 %v3760, %v291
  %v4273 = vmax.f32 %v3761, %v292
  %v4274 = vmax.f32 %v3762, %v293
  %v4275 = vmax.f32 %v3763, %v294
  %v4276 = vmax.f32 %v3764, %v295
  %v4277 = vmax.f32 %v3765, %v296
  %v4278 = vmax.f32 %v3766, %v297
  %v4279 = vmax.f32 %v3767, %v298
  %v4280 = vmax.f32 %v3768, %v299
  %v4281 = vmax.f32 %v3769, %v300
  %v4282 = vmax.f32 %v3770, %v301
  %v4283 = vmax.f32 %v3771, %v302
  %v4284 = vmax.f32 %v3772, %v303
  %v4285 = vmax.f32 %v3773, %v304
  %v4286 = vmax.f32 %v3774, %v307
  %v4287 = vmax.f32 %v3775, %v308
  %v4288 = vmax.f32 %v3776, %v309
  %v4289 = vmax.f32 %v3777, %v310
  %v4290 = vmax.f32 %v3778, %v311
  %v4291 = vmax.f32 %v3779, %v312
  %v4292 = vmax.f32 %v3780, %v313
  %v4293 = vmax.f32 %v3781, %v314
  %v4294 = vmax.f32 %v3782, %v315
  %v4295 = vmax.f32 %v3783, %v316
  %v4296 = vmax.f32 %v3784, %v317
  %v4297 = vmax.f32 %v3785, %v318
  %v4298 = vmax.f32 %v3786, %v319
  %v4299 = vmax.f32 %v3787, %v320
  %v4300 = vmax.f32 %v3788, %v321
  %v4301 = vmax.f32 %v3789, %v322
  %v4302 = vmax.f32 %v3790, %v325
  %v4303 = vmax.f32 %v3791, %v326
  %v4304 = vmax.f32 %v3792, %v327
  %v4305 = vmax.f32 %v3793, %v328
  %v4306 = vmax.f32 %v3794, %v329
  %v4307 = vmax.f32 %v3795, %v330
  %v4308 = vmax.f32 %v3796, %v331
  %v4309 = vmax.f32 %v3797, %v332
  %v4310 = vmax.f32 %v3798, %v333
  %v4311 = vmax.f32 %v3799, %v334
  %v4312 = vmax.f32 %v3800, %v335
  %v4313 = vmax.f32 %v3801, %v336
  %v4314 = vmax.f32 %v3802, %v337
  %v4315 = vmax.f32 %v3803, %v338
  %v4316 = vmax.f32 %v3804, %v339
  %v4317 = vmax.f32 %v3805, %v340
  %v4318 = vadd.f32 %v3806, %v703
  %v4319 = vadd.f32 %v3807, %v704
  %v4320 = vadd.f32 %v3808, %v705
  %v4321 = vadd.f32 %v3809, %v706
  %v4322 = vadd.f32 %v3810, %v707
  %v4323 = vadd.f32 %v3811, %v708
  %v4324 = vadd.f32 %v3812, %v709
  %v4325 = vadd.f32 %v3813, %v710
  %v4326 = vadd.f32 %v3814, %v711
  %v4327 = vadd.f32 %v3815, %v712
  %v4328 = vadd.f32 %v3816, %v713
  %v4329 = vadd.f32 %v3817, %v714
  %v4330 = vadd.f32 %v3818, %v715
  %v4331 = vadd.f32 %v3819, %v716
  %v4332 = vadd.f32 %v3820, %v717
  %v4333 = vadd.f32 %v3821, %v718
  %v4334 = vadd.f32 %v3822, %v721
  %v4335 = vadd.f32 %v3823, %v722
  %v4336 = vadd.f32 %v3824, %v723
  %v4337 = vadd.f32 %v3825, %v724
  %v4338 = vadd.f32 %v3826, %v725
  %v4339 = vadd.f32 %v3827, %v726
  %v4340 = vadd.f32 %v3828, %v727
  %v4341 = vadd.f32 %v3829, %v728
  %v4342 = vadd.f32 %v3830, %v729
  %v4343 = vadd.f32 %v3831, %v730
  %v4344 = vadd.f32 %v3832, %v731
  %v4345 = vadd.f32 %v3833, %v732
  %v4346 = vadd.f32 %v3834, %v733
  %v4347 = vadd.f32 %v3835, %v734
  %v4348 = vadd.f32 %v3836, %v735
  %v4349 = vadd.f32 %v3837, %v736
  %v4350 = vadd.f32 %v3838, %v739
  %v4351 = vadd.f32 %v3839, %v740
  %v4352 = vadd.f32 %v3840, %v741
  %v4353 = vadd.f32 %v3841, %v742
  %v4354 = vadd.f32 %v3842, %v743
  %v4355 = vadd.f32 %v3843, %v744
  %v4356 = vadd.f32 %v3844, %v745
  %v4357 = vadd.f32 %v3845, %v746
  %v4358 = vadd.f32 %v3846, %v747
  %v4359 = vadd.f32 %v3847, %v748
  %v4360 = vadd.f32 %v3848, %v749
  %v4361 = vadd.f32 %v3849, %v750
  %v4362 = vadd.f32 %v3850, %v751
  %v4363 = vadd.f32 %v3851, %v752
  %v4364 = vadd.f32 %v3852, %v753
  %v4365 = vadd.f32 %v3853, %v754
  %v4366 = vadd.f32 %v3854, %v757
  %v4367 = vadd.f32 %v3855, %v758
  %v4368 = vadd.f32 %v3856, %v759
  %v4369 = vadd.f32 %v3857, %v760
  %v4370 = vadd.f32 %v3858, %v761
  %v4371 = vadd.f32 %v3859, %v762
  %v4372 = vadd.f32 %v3860, %v763
  %v4373 = vadd.f32 %v3861, %v764
  %v4374 = vadd.f32 %v3862, %v765
  %v4375 = vadd.f32 %v3863, %v766
  %v4376 = vadd.f32 %v3864, %v767
  %v4377 = vadd.f32 %v3865, %v768
  %v4378 = vadd.f32 %v3866, %v769
  %v4379 = vadd.f32 %v3867, %v770
  %v4380 = vadd.f32 %v3868, %v771
  %v4381 = vadd.f32 %v3869, %v772
  %v4382 = vadd.f32 %v3870, %v775
  %v4383 = vadd.f32 %v3871, %v776
  %v4384 = vadd.f32 %v3872, %v777
  %v4385 = vadd.f32 %v3873, %v778
  %v4386 = vadd.f32 %v3874, %v779
  %v4387 = vadd.f32 %v3875, %v780
  %v4388 = vadd.f32 %v3876, %v781
  %v4389 = vadd.f32 %v3877, %v782
  %v4390 = vadd.f32 %v3878, %v783
  %v4391 = vadd.f32 %v3879, %v784
  %v4392 = vadd.f32 %v3880, %v785
  %v4393 = vadd.f32 %v3881, %v786
  %v4394 = vadd.f32 %v3882, %v787
  %v4395 = vadd.f32 %v3883, %v788
  %v4396 = vadd.f32 %v3884, %v789
  %v4397 = vadd.f32 %v3885, %v790
  %v4398 = vadd.f32 %v3886, %v793
  %v4399 = vadd.f32 %v3887, %v794
  %v4400 = vadd.f32 %v3888, %v795
  %v4401 = vadd.f32 %v3889, %v796
  %v4402 = vadd.f32 %v3890, %v797
  %v4403 = vadd.f32 %v3891, %v798
  %v4404 = vadd.f32 %v3892, %v799
  %v4405 = vadd.f32 %v3893, %v800
  %v4406 = vadd.f32 %v3894, %v801
  %v4407 = vadd.f32 %v3895, %v802
  %v4408 = vadd.f32 %v3896, %v803
  %v4409 = vadd.f32 %v3897, %v804
  %v4410 = vadd.f32 %v3898, %v805
  %v4411 = vadd.f32 %v3899, %v806
  %v4412 = vadd.f32 %v3900, %v807
  %v4413 = vadd.f32 %v3901, %v808
  %v4414 = vadd.f32 %v3902, %v811
  %v4415 = vadd.f32 %v3903, %v812
  %v4416 = vadd.f32 %v3904, %v813
  %v4417 = vadd.f32 %v3905, %v814
  %v4418 = vadd.f32 %v3906, %v815
  %v4419 = vadd.f32 %v3907, %v816
  %v4420 = vadd.f32 %v3908, %v817
  %v4421 = vadd.f32 %v3909, %v818
  %v4422 = vadd.f32 %v3910, %v819
  %v4423 = vadd.f32 %v3911, %v820
  %v4424 = vadd.f32 %v3912, %v821
  %v4425 = vadd.f32 %v3913, %v822
  %v4426 = vadd.f32 %v3914, %v823
  %v4427 = vadd.f32 %v3915, %v824
  %v4428 = vadd.f32 %v3916, %v825
  %v4429 = vadd.f32 %v3917, %v826
  %v4430 = vadd.f32 %v3918, %v829
  %v4431 = vadd.f32 %v3919, %v830
  %v4432 = vadd.f32 %v3920, %v831
  %v4433 = vadd.f32 %v3921, %v832
  %v4434 = vadd.f32 %v3922, %v833
  %v4435 = vadd.f32 %v3923, %v834
  %v4436 = vadd.f32 %v3924, %v835
  %v4437 = vadd.f32 %v3925, %v836
  %v4438 = vadd.f32 %v3926, %v837
  %v4439 = vadd.f32 %v3927, %v838
  %v4440 = vadd.f32 %v3928, %v839
  %v4441 = vadd.f32 %v3929, %v840
  %v4442 = vadd.f32 %v3930, %v841
  %v4443 = vadd.f32 %v3931, %v842
  %v4444 = vadd.f32 %v3932, %v843
  %v4445 = vadd.f32 %v3933, %v844
  %v4446 = vadd.f32 %v3934, %v847
  %v4447 = vadd.f32 %v3935, %v848
  %v4448 = vadd.f32 %v3936, %v849
  %v4449 = vadd.f32 %v3937, %v850
  %v4450 = vadd.f32 %v3938, %v851
  %v4451 = vadd.f32 %v3939, %v852
  %v4452 = vadd.f32 %v3940, %v853
  %v4453 = vadd.f32 %v3941, %v854
  %v4454 = vadd.f32 %v3942, %v855
  %v4455 = vadd.f32 %v3943, %v856
  %v4456 = vadd.f32 %v3944, %v857
  %v4457 = vadd.f32 %v3945, %v858
  %v4458 = vadd.f32 %v3946, %v859
  %v4459 = vadd.f32 %v3947, %v860
  %v4460 = vadd.f32 %v3948, %v861
  %v4461 = vadd.f32 %v3949, %v862
  %v4462 = vadd.f32 %v3950, %v865
  %v4463 = vadd.f32 %v3951, %v866
  %v4464 = vadd.f32 %v3952, %v867
  %v4465 = vadd.f32 %v3953, %v868
  %v4466 = vadd.f32 %v3954, %v869
  %v4467 = vadd.f32 %v3955, %v870
  %v4468 = vadd.f32 %v3956, %v871
  %v4469 = vadd.f32 %v3957, %v872
  %v4470 = vadd.f32 %v3958, %v873
  %v4471 = vadd.f32 %v3959, %v874
  %v4472 = vadd.f32 %v3960, %v875
  %v4473 = vadd.f32 %v3961, %v876
  %v4474 = vadd.f32 %v3962, %v877
  %v4475 = vadd.f32 %v3963, %v878
  %v4476 = vadd.f32 %v3964, %v879
  %v4477 = vadd.f32 %v3965, %v880
  %v4478 = vadd.f32 %v3966, %v883
  %v4479 = vadd.f32 %v3967, %v884
  %v4480 = vadd.f32 %v3968, %v885
  %v4481 = vadd.f32 %v3969, %v886
  %v4482 = vadd.f32 %v3970, %v887
  %v4483 = vadd.f32 %v3971, %v888
  %v4484 = vadd.f32 %v3972, %v889
  %v4485 = vadd.f32 %v3973, %v890
  %v4486 = vadd.f32 %v3974, %v891
  %v4487 = vadd.f32 %v3975, %v892
  %v4488 = vadd.f32 %v3976, %v893
  %v4489 = vadd.f32 %v3977, %v894
  %v4490 = vadd.f32 %v3978, %v895
  %v4491 = vadd.f32 %v3979, %v896
  %v4492 = vadd.f32 %v3980, %v897
  %v4493 = vadd.f32 %v3981, %v898
  %v4494 = vadd.f32 %v3982, %v901
  %v4495 = vadd.f32 %v3983, %v902
  %v4496 = vadd.f32 %v3984, %v903
  %v4497 = vadd.f32 %v3985, %v904
  %v4498 = vadd.f32 %v3986, %v905
  %v4499 = vadd.f32 %v3987, %v906
  %v4500 = vadd.f32 %v3988, %v907
  %v4501 = vadd.f32 %v3989, %v908
  %v4502 = vadd.f32 %v3990, %v909
  %v4503 = vadd.f32 %v3991, %v910
  %v4504 = vadd.f32 %v3992, %v911
  %v4505 = vadd.f32 %v3993, %v912
  %v4506 = vadd.f32 %v3994, %v913
  %v4507 = vadd.f32 %v3995, %v914
  %v4508 = vadd.f32 %v3996, %v915
  %v4509 = vadd.f32 %v3997, %v916
  %v4510 = vadd.f32 %v3998, %v919
  %v4511 = vadd.f32 %v3999, %v920
  %v4512 = vadd.f32 %v4000, %v921
  %v4513 = vadd.f32 %v4001, %v922
  %v4514 = vadd.f32 %v4002, %v923
  %v4515 = vadd.f32 %v4003, %v924
  %v4516 = vadd.f32 %v4004, %v925
  %v4517 = vadd.f32 %v4005, %v926
  %v4518 = vadd.f32 %v4006, %v927
  %v4519 = vadd.f32 %v4007, %v928
  %v4520 = vadd.f32 %v4008, %v929
  %v4521 = vadd.f32 %v4009, %v930
  %v4522 = vadd.f32 %v4010, %v931
  %v4523 = vadd.f32 %v4011, %v932
  %v4524 = vadd.f32 %v4012, %v933
  %v4525 = vadd.f32 %v4013, %v934
  %v4526 = vadd.f32 %v4014, %v937
  %v4527 = vadd.f32 %v4015, %v938
  %v4528 = vadd.f32 %v4016, %v939
  %v4529 = vadd.f32 %v4017, %v940
  %v4530 = vadd.f32 %v4018, %v941
  %v4531 = vadd.f32 %v4019, %v942
  %v4532 = vadd.f32 %v4020, %v943
  %v4533 = vadd.f32 %v4021, %v944
  %v4534 = vadd.f32 %v4022, %v945
  %v4535 = vadd.f32 %v4023, %v946
  %v4536 = vadd.f32 %v4024, %v947
  %v4537 = vadd.f32 %v4025, %v948
  %v4538 = vadd.f32 %v4026, %v949
  %v4539 = vadd.f32 %v4027, %v950
  %v4540 = vadd.f32 %v4028, %v951
  %v4541 = vadd.f32 %v4029, %v952
  %v4542 = vadd.f32 %v4030, %v955
  %v4543 = vadd.f32 %v4031, %v956
  %v4544 = vadd.f32 %v4032, %v957
  %v4545 = vadd.f32 %v4033, %v958
  %v4546 = vadd.f32 %v4034, %v959
  %v4547 = vadd.f32 %v4035, %v960
  %v4548 = vadd.f32 %v4036, %v961
  %v4549 = vadd.f32 %v4037, %v962
  %v4550 = vadd.f32 %v4038, %v963
  %v4551 = vadd.f32 %v4039, %v964
  %v4552 = vadd.f32 %v4040, %v965
  %v4553 = vadd.f32 %v4041, %v966
  %v4554 = vadd.f32 %v4042, %v967
  %v4555 = vadd.f32 %v4043, %v968
  %v4556 = vadd.f32 %v4044, %v969
  %v4557 = vadd.f32 %v4045, %v970
  %v4558 = vadd.f32 %v4046, %v973
  %v4559 = vadd.f32 %v4047, %v974
  %v4560 = vadd.f32 %v4048, %v975
  %v4561 = vadd.f32 %v4049, %v976
  %v4562 = vadd.f32 %v4050, %v977
  %v4563 = vadd.f32 %v4051, %v978
  %v4564 = vadd.f32 %v4052, %v979
  %v4565 = vadd.f32 %v4053, %v980
  %v4566 = vadd.f32 %v4054, %v981
  %v4567 = vadd.f32 %v4055, %v982
  %v4568 = vadd.f32 %v4056, %v983
  %v4569 = vadd.f32 %v4057, %v984
  %v4570 = vadd.f32 %v4058, %v985
  %v4571 = vadd.f32 %v4059, %v986
  %v4572 = vadd.f32 %v4060, %v987
  %v4573 = vadd.f32 %v4061, %v988
  %v4574 = vmax.f32 %v4062, %v56
  %v4575 = vmax.f32 %v4063, %v57
  %v4576 = vmax.f32 %v4064, %v58
  %v4577 = vmax.f32 %v4065, %v59
  %v4578 = vmax.f32 %v4066, %v60
  %v4579 = vmax.f32 %v4067, %v61
  %v4580 = vmax.f32 %v4068, %v62
  %v4581 = vmax.f32 %v4069, %v63
  %v4582 = vmax.f32 %v4070, %v64
  %v4583 = vmax.f32 %v4071, %v65
  %v4584 = vmax.f32 %v4072, %v66
  %v4585 = vmax.f32 %v4073, %v67
  %v4586 = vmax.f32 %v4074, %v68
  %v4587 = vmax.f32 %v4075, %v69
  %v4588 = vmax.f32 %v4076, %v70
  %v4589 = vmax.f32 %v4077, %v71
  %v4590 = vmax.f32 %v4078, %v74
  %v4591 = vmax.f32 %v4079, %v75
  %v4592 = vmax.f32 %v4080, %v76
  %v4593 = vmax.f32 %v4081, %v77
  %v4594 = vmax.f32 %v4082, %v78
  %v4595 = vmax.f32 %v4083, %v79
  %v4596 = vmax.f32 %v4084, %v80
  %v4597 = vmax.f32 %v4085, %v81
  %v4598 = vmax.f32 %v4086, %v82
  %v4599 = vmax.f32 %v4087, %v83
  %v4600 = vmax.f32 %v4088, %v84
  %v4601 = vmax.f32 %v4089, %v85
  %v4602 = vmax.f32 %v4090, %v86
  %v4603 = vmax.f32 %v4091, %v87
  %v4604 = vmax.f32 %v4092, %v88
  %v4605 = vmax.f32 %v4093, %v89
  %v4606 = vmax.f32 %v4094, %v92
  %v4607 = vmax.f32 %v4095, %v93
  %v4608 = vmax.f32 %v4096, %v94
  %v4609 = vmax.f32 %v4097, %v95
  %v4610 = vmax.f32 %v4098, %v96
  %v4611 = vmax.f32 %v4099, %v97
  %v4612 = vmax.f32 %v4100, %v98
  %v4613 = vmax.f32 %v4101, %v99
  %v4614 = vmax.f32 %v4102, %v100
  %v4615 = vmax.f32 %v4103, %v101
  %v4616 = vmax.f32 %v4104, %v102
  %v4617 = vmax.f32 %v4105, %v103
  %v4618 = vmax.f32 %v4106, %v104
  %v4619 = vmax.f32 %v4107, %v105
  %v4620 = vmax.f32 %v4108, %v106
  %v4621 = vmax.f32 %v4109, %v107
  %v4622 = vmax.f32 %v4110, %v110
  %v4623 = vmax.f32 %v4111, %v111
  %v4624 = vmax.f32 %v4112, %v112
  %v4625 = vmax.f32 %v4113, %v113
  %v4626 = vmax.f32 %v4114, %v114
  %v4627 = vmax.f32 %v4115, %v115
  %v4628 = vmax.f32 %v4116, %v116
  %v4629 = vmax.f32 %v4117, %v117
  %v4630 = vmax.f32 %v4118, %v118
  %v4631 = vmax.f32 %v4119, %v119
  %v4632 = vmax.f32 %v4120, %v120
  %v4633 = vmax.f32 %v4121, %v121
  %v4634 = vmax.f32 %v4122, %v122
  %v4635 = vmax.f32 %v4123, %v123
  %v4636 = vmax.f32 %v4124, %v124
  %v4637 = vmax.f32 %v4125, %v125
  %v4638 = vmax.f32 %v4126, %v128
  %v4639 = vmax.f32 %v4127, %v129
  %v4640 = vmax.f32 %v4128, %v130
  %v4641 = vmax.f32 %v4129, %v131
  %v4642 = vmax.f32 %v4130, %v132
  %v4643 = vmax.f32 %v4131, %v133
  %v4644 = vmax.f32 %v4132, %v134
  %v4645 = vmax.f32 %v4133, %v135
  %v4646 = vmax.f32 %v4134, %v136
  %v4647 = vmax.f32 %v4135, %v137
  %v4648 = vmax.f32 %v4136, %v138
  %v4649 = vmax.f32 %v4137, %v139
  %v4650 = vmax.f32 %v4138, %v140
  %v4651 = vmax.f32 %v4139, %v141
  %v4652 = vmax.f32 %v4140, %v142
  %v4653 = vmax.f32 %v4141, %v143
  %v4654 = vmax.f32 %v4142, %v146
  %v4655 = vmax.f32 %v4143, %v147
  %v4656 = vmax.f32 %v4144, %v148
  %v4657 = vmax.f32 %v4145, %v149
  %v4658 = vmax.f32 %v4146, %v150
  %v4659 = vmax.f32 %v4147, %v151
  %v4660 = vmax.f32 %v4148, %v152
  %v4661 = vmax.f32 %v4149, %v153
  %v4662 = vmax.f32 %v4150, %v154
  %v4663 = vmax.f32 %v4151, %v155
  %v4664 = vmax.f32 %v4152, %v156
  %v4665 = vmax.f32 %v4153, %v157
  %v4666 = vmax.f32 %v4154, %v158
  %v4667 = vmax.f32 %v4155, %v159
  %v4668 = vmax.f32 %v4156, %v160
  %v4669 = vmax.f32 %v4157, %v161
  %v4670 = vmax.f32 %v4158, %v164
  %v4671 = vmax.f32 %v4159, %v165
  %v4672 = vmax.f32 %v4160, %v166
  %v4673 = vmax.f32 %v4161, %v167
  %v4674 = vmax.f32 %v4162, %v168
  %v4675 = vmax.f32 %v4163, %v169
  %v4676 = vmax.f32 %v4164, %v170
  %v4677 = vmax.f32 %v4165, %v171
  %v4678 = vmax.f32 %v4166, %v172
  %v4679 = vmax.f32 %v4167, %v173
  %v4680 = vmax.f32 %v4168, %v174
  %v4681 = vmax.f32 %v4169, %v175
  %v4682 = vmax.f32 %v4170, %v176
  %v4683 = vmax.f32 %v4171, %v177
  %v4684 = vmax.f32 %v4172, %v178
  %v4685 = vmax.f32 %v4173, %v179
  %v4686 = vmax.f32 %v4174, %v182
  %v4687 = vmax.f32 %v4175, %v183
  %v4688 = vmax.f32 %v4176, %v184
  %v4689 = vmax.f32 %v4177, %v185
  %v4690 = vmax.f32 %v4178, %v186
  %v4691 = vmax.f32 %v4179, %v187
  %v4692 = vmax.f32 %v4180, %v188
  %v4693 = vmax.f32 %v4181, %v189
  %v4694 = vmax.f32 %v4182, %v190
  %v4695 = vmax.f32 %v4183, %v191
  %v4696 = vmax.f32 %v4184, %v192
  %v4697 = vmax.f32 %v4185, %v193
  %v4698 = vmax.f32 %v4186, %v194
  %v4699 = vmax.f32 %v4187, %v195
  %v4700 = vmax.f32 %v4188, %v196
  %v4701 = vmax.f32 %v4189, %v197
  %v4702 = vmax.f32 %v4190, %v200
  %v4703 = vmax.f32 %v4191, %v201
  %v4704 = vmax.f32 %v4192, %v202
  %v4705 = vmax.f32 %v4193, %v203
  %v4706 = vmax.f32 %v4194, %v204
  %v4707 = vmax.f32 %v4195, %v205
  %v4708 = vmax.f32 %v4196, %v206
  %v4709 = vmax.f32 %v4197, %v207
  %v4710 = vmax.f32 %v4198, %v208
  %v4711 = vmax.f32 %v4199, %v209
  %v4712 = vmax.f32 %v4200, %v210
  %v4713 = vmax.f32 %v4201, %v211
  %v4714 = vmax.f32 %v4202, %v212
  %v4715 = vmax.f32 %v4203, %v213
  %v4716 = vmax.f32 %v4204, %v214
  %v4717 = vmax.f32 %v4205, %v215
  %v4718 = vmax.f32 %v4206, %v218
  %v4719 = vmax.f32 %v4207, %v219
  %v4720 = vmax.f32 %v4208, %v220
  %v4721 = vmax.f32 %v4209, %v221
  %v4722 = vmax.f32 %v4210, %v222
  %v4723 = vmax.f32 %v4211, %v223
  %v4724 = vmax.f32 %v4212, %v224
  %v4725 = vmax.f32 %v4213, %v225
  %v4726 = vmax.f32 %v4214, %v226
  %v4727 = vmax.f32 %v4215, %v227
  %v4728 = vmax.f32 %v4216, %v228
  %v4729 = vmax.f32 %v4217, %v229
  %v4730 = vmax.f32 %v4218, %v230
  %v4731 = vmax.f32 %v4219, %v231
  %v4732 = vmax.f32 %v4220, %v232
  %v4733 = vmax.f32 %v4221, %v233
  %v4734 = vmax.f32 %v4222, %v236
  %v4735 = vmax.f32 %v4223, %v237
  %v4736 = vmax.f32 %v4224, %v238
  %v4737 = vmax.f32 %v4225, %v239
  %v4738 = vmax.f32 %v4226, %v240
  %v4739 = vmax.f32 %v4227, %v241
  %v4740 = vmax.f32 %v4228, %v242
  %v4741 = vmax.f32 %v4229, %v243
  %v4742 = vmax.f32 %v4230, %v244
  %v4743 = vmax.f32 %v4231, %v245
  %v4744 = vmax.f32 %v4232, %v246
  %v4745 = vmax.f32 %v4233, %v247
  %v4746 = vmax.f32 %v4234, %v248
  %v4747 = vmax.f32 %v4235, %v249
  %v4748 = vmax.f32 %v4236, %v250
  %v4749 = vmax.f32 %v4237, %v251
  %v4750 = vmax.f32 %v4238, %v254
  %v4751 = vmax.f32 %v4239, %v255
  %v4752 = vmax.f32 %v4240, %v256
  %v4753 = vmax.f32 %v4241, %v257
  %v4754 = vmax.f32 %v4242, %v258
  %v4755 = vmax.f32 %v4243, %v259
  %v4756 = vmax.f32 %v4244, %v260
  %v4757 = vmax.f32 %v4245, %v261
  %v4758 = vmax.f32 %v4246, %v262
  %v4759 = vmax.f32 %v4247, %v263
  %v4760 = vmax.f32 %v4248, %v264
  %v4761 = vmax.f32 %v4249, %v265
  %v4762 = vmax.f32 %v4250, %v266
  %v4763 = vmax.f32 %v4251, %v267
  %v4764 = vmax.f32 %v4252, %v268
  %v4765 = vmax.f32 %v4253, %v269
  %v4766 = vmax.f32 %v4254, %v272
  %v4767 = vmax.f32 %v4255, %v273
  %v4768 = vmax.f32 %v4256, %v274
  %v4769 = vmax.f32 %v4257, %v275
  %v4770 = vmax.f32 %v4258, %v276
  %v4771 = vmax.f32 %v4259, %v277
  %v4772 = vmax.f32 %v4260, %v278
  %v4773 = vmax.f32 %v4261, %v279
  %v4774 = vmax.f32 %v4262, %v280
  %v4775 = vmax.f32 %v4263, %v281
  %v4776 = vmax.f32 %v4264, %v282
  %v4777 = vmax.f32 %v4265, %v283
  %v4778 = vmax.f32 %v4266, %v284
  %v4779 = vmax.f32 %v4267, %v285
  %v4780 = vmax.f32 %v4268, %v286
  %v4781 = vmax.f32 %v4269, %v287
  %v4782 = vmax.f32 %v4270, %v290
  %v4783 = vmax.f32 %v4271, %v291
  %v4784 = vmax.f32 %v4272, %v292
  %v4785 = vmax.f32 %v4273, %v293
  %v4786 = vmax.f32 %v4274, %v294
  %v4787 = vmax.f32 %v4275, %v295
  %v4788 = vmax.f32 %v4276, %v296
  %v4789 = vmax.f32 %v4277, %v297
  %v4790 = vmax.f32 %v4278, %v298
  %v4791 = vmax.f32 %v4279, %v299
  %v4792 = vmax.f32 %v4280, %v300
  %v4793 = vmax.f32 %v4281, %v301
  %v4794 = vmax.f32 %v4282, %v302
  %v4795 = vmax.f32 %v4283, %v303
  %v4796 = vmax.f32 %v4284, %v304
  %v4797 = vmax.f32 %v4285, %v305
  %v4798 = vmax.f32 %v4286, %v308
  %v4799 = vmax.f32 %v4287, %v309
  %v4800 = vmax.f32 %v4288, %v310
  %v4801 = vmax.f32 %v4289, %v311
  %v4802 = vmax.f32 %v4290, %v312
  %v4803 = vmax.f32 %v4291, %v313
  %v4804 = vmax.f32 %v4292, %v314
  %v4805 = vmax.f32 %v4293, %v315
  %v4806 = vmax.f32 %v4294, %v316
  %v4807 = vmax.f32 %v4295, %v317
  %v4808 = vmax.f32 %v4296, %v318
  %v4809 = vmax.f32 %v4297, %v319
  %v4810 = vmax.f32 %v4298, %v320
  %v4811 = vmax.f32 %v4299, %v321
  %v4812 = vmax.f32 %v4300, %v322
  %v4813 = vmax.f32 %v4301, %v323
  %v4814 = vmax.f32 %v4302, %v326
  %v4815 = vmax.f32 %v4303, %v327
  %v4816 = vmax.f32 %v4304, %v328
  %v4817 = vmax.f32 %v4305, %v329
  %v4818 = vmax.f32 %v4306, %v330
  %v4819 = vmax.f32 %v4307, %v331
  %v4820 = vmax.f32 %v4308, %v332
  %v4821 = vmax.f32 %v4309, %v333
  %v4822 = vmax.f32 %v4310, %v334
  %v4823 = vmax.f32 %v4311, %v335
  %v4824 = vmax.f32 %v4312, %v336
  %v4825 = vmax.f32 %v4313, %v337
  %v4826 = vmax.f32 %v4314, %v338
  %v4827 = vmax.f32 %v4315, %v339
  %v4828 = vmax.f32 %v4316, %v340
  %v4829 = vmax.f32 %v4317, %v341
  %v4830 = vadd.f32 %v4318, %v704
  %v4831 = vadd.f32 %v4319, %v705
  %v4832 = vadd.f32 %v4320, %v706
  %v4833 = vadd.f32 %v4321, %v707
  %v4834 = vadd.f32 %v4322, %v708
  %v4835 = vadd.f32 %v4323, %v709
  %v4836 = vadd.f32 %v4324, %v710
  %v4837 = vadd.f32 %v4325, %v711
  %v4838 = vadd.f32 %v4326, %v712
  %v4839 = vadd.f32 %v4327, %v713
  %v4840 = vadd.f32 %v4328, %v714
  %v4841 = vadd.f32 %v4329, %v715
  %v4842 = vadd.f32 %v4330, %v716
  %v4843 = vadd.f32 %v4331, %v717
  %v4844 = vadd.f32 %v4332, %v718
  %v4845 = vadd.f32 %v4333, %v719
  %v4846 = vadd.f32 %v4334, %v722
  %v4847 = vadd.f32 %v4335, %v723
  %v4848 = vadd.f32 %v4336, %v724
  %v4849 = vadd.f32 %v4337, %v725
  %v4850 = vadd.f32 %v4338, %v726
  %v4851 = vadd.f32 %v4339, %v727
  %v4852 = vadd.f32 %v4340, %v728
  %v4853 = vadd.f32 %v4341, %v729
  %v4854 = vadd.f32 %v4342, %v730
  %v4855 = vadd.f32 %v4343, %v731
  %v4856 = vadd.f32 %v4344, %v732
  %v4857 = vadd.f32 %v4345, %v733
  %v4858 = vadd.f32 %v4346, %v734
  %v4859 = vadd.f32 %v4347, %v735
  %v4860 = vadd.f32 %v4348, %v736
  %v4861 = vadd.f32 %v4349, %v737
  %v4862 = vadd.f32 %v4350, %v740
  %v4863 = vadd.f32 %v4351, %v741
  %v4864 = vadd.f32 %v4352, %v742
  %v4865 = vadd.f32 %v4353, %v743
  %v4866 = vadd.f32 %v4354, %v744
  %v4867 = vadd.f32 %v4355, %v745
  %v4868 = vadd.f32 %v4356, %v746
  %v4869 = vadd.f32 %v4357, %v747
  %v4870 = vadd.f32 %v4358, %v748
  %v4871 = vadd.f32 %v4359, %v749
  %v4872 = vadd.f32 %v4360, %v750
  %v4873 = vadd.f32 %v4361, %v751
  %v4874 = vadd.f32 %v4362, %v752
  %v4875 = vadd.f32 %v4363, %v753
  %v4876 = vadd.f32 %v4364, %v754
  %v4877 = vadd.f32 %v4365, %v755
  %v4878 = vadd.f32 %v4366, %v758
  %v4879 = vadd.f32 %v4367, %v759
  %v4880 = vadd.f32 %v4368, %v760
  %v4881 = vadd.f32 %v4369, %v761
  %v4882 = vadd.f32 %v4370, %v762
  %v4883 = vadd.f32 %v4371, %v763
  %v4884 = vadd.f32 %v4372, %v764
  %v4885 = vadd.f32 %v4373, %v765
  %v4886 = vadd.f32 %v4374, %v766
  %v4887 = vadd.f32 %v4375, %v767
  %v4888 = vadd.f32 %v4376, %v768
  %v4889 = vadd.f32 %v4377, %v769
  %v4890 = vadd.f32 %v4378, %v770
  %v4891 = vadd.f32 %v4379, %v771
  %v4892 = vadd.f32 %v4380, %v772
  %v4893 = vadd.f32 %v4381, %v773
  %v4894 = vadd.f32 %v4382, %v776
  %v4895 = vadd.f32 %v4383, %v777
  %v4896 = vadd.f32 %v4384, %v778
  %v4897 = vadd.f32 %v4385, %v779
  %v4898 = vadd.f32 %v4386, %v780
  %v4899 = vadd.f32 %v4387, %v781
  %v4900 = vadd.f32 %v4388, %v782
  %v4901 = vadd.f32 %v4389, %v783
  %v4902 = vadd.f32 %v4390, %v784
  %v4903 = vadd.f32 %v4391, %v785
  %v4904 = vadd.f32 %v4392, %v786
  %v4905 = vadd.f32 %v4393, %v787
  %v4906 = vadd.f32 %v4394, %v788
  %v4907 = vadd.f32 %v4395, %v789
  %v4908 = vadd.f32 %v4396, %v790
  %v4909 = vadd.f32 %v4397, %v791
  %v4910 = vadd.f32 %v4398, %v794
  %v4911 = vadd.f32 %v4399, %v795
  %v4912 = vadd.f32 %v4400, %v796
  %v4913 = vadd.f32 %v4401, %v797
  %v4914 = vadd.f32 %v4402, %v798
  %v4915 = vadd.f32 %v4403, %v799
  %v4916 = vadd.f32 %v4404, %v800
  %v4917 = vadd.f32 %v4405, %v801
  %v4918 = vadd.f32 %v4406, %v802
  %v4919 = vadd.f32 %v4407, %v803
  %v4920 = vadd.f32 %v4408, %v804
  %v4921 = vadd.f32 %v4409, %v805
  %v4922 = vadd.f32 %v4410, %v806
  %v4923 = vadd.f32 %v4411, %v807
  %v4924 = vadd.f32 %v4412, %v808
  %v4925 = vadd.f32 %v4413, %v809
  %v4926 = vadd.f32 %v4414, %v812
  %v4927 = vadd.f32 %v4415, %v813
  %v4928 = vadd.f32 %v4416, %v814
  %v4929 = vadd.f32 %v4417, %v815
  %v4930 = vadd.f32 %v4418, %v816
  %v4931 = vadd.f32 %v4419, %v817
  %v4932 = vadd.f32 %v4420, %v818
  %v4933 = vadd.f32 %v4421, %v819
  %v4934 = vadd.f32 %v4422, %v820
  %v4935 = vadd.f32 %v4423, %v821
  %v4936 = vadd.f32 %v4424, %v822
  %v4937 = vadd.f32 %v4425, %v823
  %v4938 = vadd.f32 %v4426, %v824
  %v4939 = vadd.f32 %v4427, %v825
  %v4940 = vadd.f32 %v4428, %v826
  %v4941 = vadd.f32 %v4429, %v827
  %v4942 = vadd.f32 %v4430, %v830
  %v4943 = vadd.f32 %v4431, %v831
  %v4944 = vadd.f32 %v4432, %v832
  %v4945 = vadd.f32 %v4433, %v833
  %v4946 = vadd.f32 %v4434, %v834
  %v4947 = vadd.f32 %v4435, %v835
  %v4948 = vadd.f32 %v4436, %v836
  %v4949 = vadd.f32 %v4437, %v837
  %v4950 = vadd.f32 %v4438, %v838
  %v4951 = vadd.f32 %v4439, %v839
  %v4952 = vadd.f32 %v4440, %v840
  %v4953 = vadd.f32 %v4441, %v841
  %v4954 = vadd.f32 %v4442, %v842
  %v4955 = vadd.f32 %v4443, %v843
  %v4956 = vadd.f32 %v4444, %v844
  %v4957 = vadd.f32 %v4445, %v845
  %v4958 = vadd.f32 %v4446, %v848
  %v4959 = vadd.f32 %v4447, %v849
  %v4960 = vadd.f32 %v4448, %v850
  %v4961 = vadd.f32 %v4449, %v851
  %v4962 = vadd.f32 %v4450, %v852
  %v4963 = vadd.f32 %v4451, %v853
  %v4964 = vadd.f32 %v4452, %v854
  %v4965 = vadd.f32 %v4453, %v855
  %v4966 = vadd.f32 %v4454, %v856
  %v4967 = vadd.f32 %v4455, %v857
  %v4968 = vadd.f32 %v4456, %v858
  %v4969 = vadd.f32 %v4457, %v859
  %v4970 = vadd.f32 %v4458, %v860
  %v4971 = vadd.f32 %v4459, %v861
  %v4972 = vadd.f32 %v4460, %v862
  %v4973 = vadd.f32 %v4461, %v863
  %v4974 = vadd.f32 %v4462, %v866
  %v4975 = vadd.f32 %v4463, %v867
  %v4976 = vadd.f32 %v4464, %v868
  %v4977 = vadd.f32 %v4465, %v869
  %v4978 = vadd.f32 %v4466, %v870
  %v4979 = vadd.f32 %v4467, %v871
  %v4980 = vadd.f32 %v4468, %v872
  %v4981 = vadd.f32 %v4469, %v873
  %v4982 = vadd.f32 %v4470, %v874
  %v4983 = vadd.f32 %v4471, %v875
  %v4984 = vadd.f32 %v4472, %v876
  %v4985 = vadd.f32 %v4473, %v877
  %v4986 = vadd.f32 %v4474, %v878
  %v4987 = vadd.f32 %v4475, %v879
  %v4988 = vadd.f32 %v4476, %v880
  %v4989 = vadd.f32 %v4477, %v881
  %v4990 = vadd.f32 %v4478, %v884
  %v4991 = vadd.f32 %v4479, %v885
  %v4992 = vadd.f32 %v4480, %v886
  %v4993 = vadd.f32 %v4481, %v887
  %v4994 = vadd.f32 %v4482, %v888
  %v4995 = vadd.f32 %v4483, %v889
  %v4996 = vadd.f32 %v4484, %v890
  %v4997 = vadd.f32 %v4485, %v891
  %v4998 = vadd.f32 %v4486, %v892
  %v4999 = vadd.f32 %v4487, %v893
  %v5000 = vadd.f32 %v4488, %v894
  %v5001 = vadd.f32 %v4489, %v895
  %v5002 = vadd.f32 %v4490, %v896
  %v5003 = vadd.f32 %v4491, %v897
  %v5004 = vadd.f32 %v4492, %v898
  %v5005 = vadd.f32 %v4493, %v899
  %v5006 = vadd.f32 %v4494, %v902
  %v5007 = vadd.f32 %v4495, %v903
  %v5008 = vadd.f32 %v4496, %v904
  %v5009 = vadd.f32 %v4497, %v905
  %v5010 = vadd.f32 %v4498, %v906
  %v5011 = vadd.f32 %v4499, %v907
  %v5012 = vadd.f32 %v4500, %v908
  %v5013 = vadd.f32 %v4501, %v909
  %v5014 = vadd.f32 %v4502, %v910
  %v5015 = vadd.f32 %v4503, %v911
  %v5016 = vadd.f32 %v4504, %v912
  %v5017 = vadd.f32 %v4505, %v913
  %v5018 = vadd.f32 %v4506, %v914
  %v5019 = vadd.f32 %v4507, %v915
  %v5020 = vadd.f32 %v4508, %v916
  %v5021 = vadd.f32 %v4509, %v917
  %v5022 = vadd.f32 %v4510, %v920
  %v5023 = vadd.f32 %v4511, %v921
  %v5024 = vadd.f32 %v4512, %v922
  %v5025 = vadd.f32 %v4513, %v923
  %v5026 = vadd.f32 %v4514, %v924
  %v5027 = vadd.f32 %v4515, %v925
  %v5028 = vadd.f32 %v4516, %v926
  %v5029 = vadd.f32 %v4517, %v927
  %v5030 = vadd.f32 %v4518, %v928
  %v5031 = vadd.f32 %v4519, %v929
  %v5032 = vadd.f32 %v4520, %v930
  %v5033 = vadd.f32 %v4521, %v931
  %v5034 = vadd.f32 %v4522, %v932
  %v5035 = vadd.f32 %v4523, %v933
  %v5036 = vadd.f32 %v4524, %v934
  %v5037 = vadd.f32 %v4525, %v935
  %v5038 = vadd.f32 %v4526, %v938
  %v5039 = vadd.f32 %v4527, %v939
  %v5040 = vadd.f32 %v4528, %v940
  %v5041 = vadd.f32 %v4529, %v941
  %v5042 = vadd.f32 %v4530, %v942
  %v5043 = vadd.f32 %v4531, %v943
  %v5044 = vadd.f32 %v4532, %v944
  %v5045 = vadd.f32 %v4533, %v945
  %v5046 = vadd.f32 %v4534, %v946
  %v5047 = vadd.f32 %v4535, %v947
  %v5048 = vadd.f32 %v4536, %v948
  %v5049 = vadd.f32 %v4537, %v949
  %v5050 = vadd.f32 %v4538, %v950
  %v5051 = vadd.f32 %v4539, %v951
  %v5052 = vadd.f32 %v4540, %v952
  %v5053 = vadd.f32 %v4541, %v953
  %v5054 = vadd.f32 %v4542, %v956
  %v5055 = vadd.f32 %v4543, %v957
  %v5056 = vadd.f32 %v4544, %v958
  %v5057 = vadd.f32 %v4545, %v959
  %v5058 = vadd.f32 %v4546, %v960
  %v5059 = vadd.f32 %v4547, %v961
  %v5060 = vadd.f32 %v4548, %v962
  %v5061 = vadd.f32 %v4549, %v963
  %v5062 = vadd.f32 %v4550, %v964
  %v5063 = vadd.f32 %v4551, %v965
  %v5064 = vadd.f32 %v4552, %v966
  %v5065 = vadd.f32 %v4553, %v967
  %v5066 = vadd.f32 %v4554, %v968
  %v5067 = vadd.f32 %v4555, %v969
  %v5068 = vadd.f32 %v4556, %v970
  %v5069 = vadd.f32 %v4557, %v971
  %v5070 = vadd.f32 %v4558, %v974
  %v5071 = vadd.f32 %v4559, %v975
  %v5072 = vadd.f32 %v4560, %v976
  %v5073 = vadd.f32 %v4561, %v977
  %v5074 = vadd.f32 %v4562, %v978
  %v5075 = vadd.f32 %v4563, %v979
  %v5076 = vadd.f32 %v4564, %v980
  %v5077 = vadd.f32 %v4565, %v981
  %v5078 = vadd.f32 %v4566, %v982
  %v5079 = vadd.f32 %v4567, %v983
  %v5080 = vadd.f32 %v4568, %v984
  %v5081 = vadd.f32 %v4569, %v985
  %v5082 = vadd.f32 %v4570, %v986
  %v5083 = vadd.f32 %v4571, %v987
  %v5084 = vadd.f32 %v4572, %v988
  %v5085 = vadd.f32 %v4573, %v989
  %s5086 = sld [smem:[#allocation2]]
  %v5087 = vstv %s5086
  %v5088 = vmul.f32 %v5087, %v4574
  %v5089 = vmul.f32 %v5087, %v4575
  %v5090 = vmul.f32 %v5087, %v4576
  %v5091 = vmul.f32 %v5087, %v4577
  %v5092 = vmul.f32 %v5087, %v4578
  %v5093 = vmul.f32 %v5087, %v4579
  %v5094 = vmul.f32 %v5087, %v4580
  %v5095 = vmul.f32 %v5087, %v4581
  %v5096 = vmul.f32 %v5087, %v4582
  %v5097 = vmul.f32 %v5087, %v4583
  %v5098 = vmul.f32 %v5087, %v4584
  %v5099 = vmul.f32 %v5087, %v4585
  %v5100 = vmul.f32 %v5087, %v4586
  %v5101 = vmul.f32 %v5087, %v4587
  %v5102 = vmul.f32 %v5087, %v4588
  %v5103 = vmul.f32 %v5087, %v4589
  %v5104 = vmul.f32 %v5087, %v4590
  %v5105 = vmul.f32 %v5087, %v4591
  %v5106 = vmul.f32 %v5087, %v4592
  %v5107 = vmul.f32 %v5087, %v4593
  %v5108 = vmul.f32 %v5087, %v4594
  %v5109 = vmul.f32 %v5087, %v4595
  %v5110 = vmul.f32 %v5087, %v4596
  %v5111 = vmul.f32 %v5087, %v4597
  %v5112 = vmul.f32 %v5087, %v4598
  %v5113 = vmul.f32 %v5087, %v4599
  %v5114 = vmul.f32 %v5087, %v4600
  %v5115 = vmul.f32 %v5087, %v4601
  %v5116 = vmul.f32 %v5087, %v4602
  %v5117 = vmul.f32 %v5087, %v4603
  %v5118 = vmul.f32 %v5087, %v4604
  %v5119 = vmul.f32 %v5087, %v4605
  %v5120 = vmul.f32 %v5087, %v4606
  %v5121 = vmul.f32 %v5087, %v4607
  %v5122 = vmul.f32 %v5087, %v4608
  %v5123 = vmul.f32 %v5087, %v4609
  %v5124 = vmul.f32 %v5087, %v4610
  %v5125 = vmul.f32 %v5087, %v4611
  %v5126 = vmul.f32 %v5087, %v4612
  %v5127 = vmul.f32 %v5087, %v4613
  %v5128 = vmul.f32 %v5087, %v4614
  %v5129 = vmul.f32 %v5087, %v4615
  %v5130 = vmul.f32 %v5087, %v4616
  %v5131 = vmul.f32 %v5087, %v4617
  %v5132 = vmul.f32 %v5087, %v4618
  %v5133 = vmul.f32 %v5087, %v4619
  %v5134 = vmul.f32 %v5087, %v4620
  %v5135 = vmul.f32 %v5087, %v4621
  %v5136 = vmul.f32 %v5087, %v4622
  %v5137 = vmul.f32 %v5087, %v4623
  %v5138 = vmul.f32 %v5087, %v4624
  %v5139 = vmul.f32 %v5087, %v4625
  %v5140 = vmul.f32 %v5087, %v4626
  %v5141 = vmul.f32 %v5087, %v4627
  %v5142 = vmul.f32 %v5087, %v4628
  %v5143 = vmul.f32 %v5087, %v4629
  %v5144 = vmul.f32 %v5087, %v4630
  %v5145 = vmul.f32 %v5087, %v4631
  %v5146 = vmul.f32 %v5087, %v4632
  %v5147 = vmul.f32 %v5087, %v4633
  %v5148 = vmul.f32 %v5087, %v4634
  %v5149 = vmul.f32 %v5087, %v4635
  %v5150 = vmul.f32 %v5087, %v4636
  %v5151 = vmul.f32 %v5087, %v4637
  %v5152 = vmul.f32 %v5087, %v4638
  %v5153 = vmul.f32 %v5087, %v4639
  %v5154 = vmul.f32 %v5087, %v4640
  %v5155 = vmul.f32 %v5087, %v4641
  %v5156 = vmul.f32 %v5087, %v4642
  %v5157 = vmul.f32 %v5087, %v4643
  %v5158 = vmul.f32 %v5087, %v4644
  %v5159 = vmul.f32 %v5087, %v4645
  %v5160 = vmul.f32 %v5087, %v4646
  %v5161 = vmul.f32 %v5087, %v4647
  %v5162 = vmul.f32 %v5087, %v4648
  %v5163 = vmul.f32 %v5087, %v4649
  %v5164 = vmul.f32 %v5087, %v4650
  %v5165 = vmul.f32 %v5087, %v4651
  %v5166 = vmul.f32 %v5087, %v4652
  %v5167 = vmul.f32 %v5087, %v4653
  %v5168 = vmul.f32 %v5087, %v4654
  %v5169 = vmul.f32 %v5087, %v4655
  %v5170 = vmul.f32 %v5087, %v4656
  %v5171 = vmul.f32 %v5087, %v4657
  %v5172 = vmul.f32 %v5087, %v4658
  %v5173 = vmul.f32 %v5087, %v4659
  %v5174 = vmul.f32 %v5087, %v4660
  %v5175 = vmul.f32 %v5087, %v4661
  %v5176 = vmul.f32 %v5087, %v4662
  %v5177 = vmul.f32 %v5087, %v4663
  %v5178 = vmul.f32 %v5087, %v4664
  %v5179 = vmul.f32 %v5087, %v4665
  %v5180 = vmul.f32 %v5087, %v4666
  %v5181 = vmul.f32 %v5087, %v4667
  %v5182 = vmul.f32 %v5087, %v4668
  %v5183 = vmul.f32 %v5087, %v4669
  %v5184 = vmul.f32 %v5087, %v4670
  %v5185 = vmul.f32 %v5087, %v4671
  %v5186 = vmul.f32 %v5087, %v4672
  %v5187 = vmul.f32 %v5087, %v4673
  %v5188 = vmul.f32 %v5087, %v4674
  %v5189 = vmul.f32 %v5087, %v4675
  %v5190 = vmul.f32 %v5087, %v4676
  %v5191 = vmul.f32 %v5087, %v4677
  %v5192 = vmul.f32 %v5087, %v4678
  %v5193 = vmul.f32 %v5087, %v4679
  %v5194 = vmul.f32 %v5087, %v4680
  %v5195 = vmul.f32 %v5087, %v4681
  %v5196 = vmul.f32 %v5087, %v4682
  %v5197 = vmul.f32 %v5087, %v4683
  %v5198 = vmul.f32 %v5087, %v4684
  %v5199 = vmul.f32 %v5087, %v4685
  %v5200 = vmul.f32 %v5087, %v4686
  %v5201 = vmul.f32 %v5087, %v4687
  %v5202 = vmul.f32 %v5087, %v4688
  %v5203 = vmul.f32 %v5087, %v4689
  %v5204 = vmul.f32 %v5087, %v4690
  %v5205 = vmul.f32 %v5087, %v4691
  %v5206 = vmul.f32 %v5087, %v4692
  %v5207 = vmul.f32 %v5087, %v4693
  %v5208 = vmul.f32 %v5087, %v4694
  %v5209 = vmul.f32 %v5087, %v4695
  %v5210 = vmul.f32 %v5087, %v4696
  %v5211 = vmul.f32 %v5087, %v4697
  %v5212 = vmul.f32 %v5087, %v4698
  %v5213 = vmul.f32 %v5087, %v4699
  %v5214 = vmul.f32 %v5087, %v4700
  %v5215 = vmul.f32 %v5087, %v4701
  %v5216 = vmul.f32 %v5087, %v4702
  %v5217 = vmul.f32 %v5087, %v4703
  %v5218 = vmul.f32 %v5087, %v4704
  %v5219 = vmul.f32 %v5087, %v4705
  %v5220 = vmul.f32 %v5087, %v4706
  %v5221 = vmul.f32 %v5087, %v4707
  %v5222 = vmul.f32 %v5087, %v4708
  %v5223 = vmul.f32 %v5087, %v4709
  %v5224 = vmul.f32 %v5087, %v4710
  %v5225 = vmul.f32 %v5087, %v4711
  %v5226 = vmul.f32 %v5087, %v4712
  %v5227 = vmul.f32 %v5087, %v4713
  %v5228 = vmul.f32 %v5087, %v4714
  %v5229 = vmul.f32 %v5087, %v4715
  %v5230 = vmul.f32 %v5087, %v4716
  %v5231 = vmul.f32 %v5087, %v4717
  %v5232 = vmul.f32 %v5087, %v4718
  %v5233 = vmul.f32 %v5087, %v4719
  %v5234 = vmul.f32 %v5087, %v4720
  %v5235 = vmul.f32 %v5087, %v4721
  %v5236 = vmul.f32 %v5087, %v4722
  %v5237 = vmul.f32 %v5087, %v4723
  %v5238 = vmul.f32 %v5087, %v4724
  %v5239 = vmul.f32 %v5087, %v4725
  %v5240 = vmul.f32 %v5087, %v4726
  %v5241 = vmul.f32 %v5087, %v4727
  %v5242 = vmul.f32 %v5087, %v4728
  %v5243 = vmul.f32 %v5087, %v4729
  %v5244 = vmul.f32 %v5087, %v4730
  %v5245 = vmul.f32 %v5087, %v4731
  %v5246 = vmul.f32 %v5087, %v4732
  %v5247 = vmul.f32 %v5087, %v4733
  %v5248 = vmul.f32 %v5087, %v4734
  %v5249 = vmul.f32 %v5087, %v4735
  %v5250 = vmul.f32 %v5087, %v4736
  %v5251 = vmul.f32 %v5087, %v4737
  %v5252 = vmul.f32 %v5087, %v4738
  %v5253 = vmul.f32 %v5087, %v4739
  %v5254 = vmul.f32 %v5087, %v4740
  %v5255 = vmul.f32 %v5087, %v4741
  %v5256 = vmul.f32 %v5087, %v4742
  %v5257 = vmul.f32 %v5087, %v4743
  %v5258 = vmul.f32 %v5087, %v4744
  %v5259 = vmul.f32 %v5087, %v4745
  %v5260 = vmul.f32 %v5087, %v4746
  %v5261 = vmul.f32 %v5087, %v4747
  %v5262 = vmul.f32 %v5087, %v4748
  %v5263 = vmul.f32 %v5087, %v4749
  %v5264 = vmul.f32 %v5087, %v4750
  %v5265 = vmul.f32 %v5087, %v4751
  %v5266 = vmul.f32 %v5087, %v4752
  %v5267 = vmul.f32 %v5087, %v4753
  %v5268 = vmul.f32 %v5087, %v4754
  %v5269 = vmul.f32 %v5087, %v4755
  %v5270 = vmul.f32 %v5087, %v4756
  %v5271 = vmul.f32 %v5087, %v4757
  %v5272 = vmul.f32 %v5087, %v4758
  %v5273 = vmul.f32 %v5087, %v4759
  %v5274 = vmul.f32 %v5087, %v4760
  %v5275 = vmul.f32 %v5087, %v4761
  %v5276 = vmul.f32 %v5087, %v4762
  %v5277 = vmul.f32 %v5087, %v4763
  %v5278 = vmul.f32 %v5087, %v4764
  %v5279 = vmul.f32 %v5087, %v4765
  %v5280 = vmul.f32 %v5087, %v4766
  %v5281 = vmul.f32 %v5087, %v4767
  %v5282 = vmul.f32 %v5087, %v4768
  %v5283 = vmul.f32 %v5087, %v4769
  %v5284 = vmul.f32 %v5087, %v4770
  %v5285 = vmul.f32 %v5087, %v4771
  %v5286 = vmul.f32 %v5087, %v4772
  %v5287 = vmul.f32 %v5087, %v4773
  %v5288 = vmul.f32 %v5087, %v4774
  %v5289 = vmul.f32 %v5087, %v4775
  %v5290 = vmul.f32 %v5087, %v4776
  %v5291 = vmul.f32 %v5087, %v4777
  %v5292 = vmul.f32 %v5087, %v4778
  %v5293 = vmul.f32 %v5087, %v4779
  %v5294 = vmul.f32 %v5087, %v4780
  %v5295 = vmul.f32 %v5087, %v4781
  %v5296 = vmul.f32 %v5087, %v4782
  %v5297 = vmul.f32 %v5087, %v4783
  %v5298 = vmul.f32 %v5087, %v4784
  %v5299 = vmul.f32 %v5087, %v4785
  %v5300 = vmul.f32 %v5087, %v4786
  %v5301 = vmul.f32 %v5087, %v4787
  %v5302 = vmul.f32 %v5087, %v4788
  %v5303 = vmul.f32 %v5087, %v4789
  %v5304 = vmul.f32 %v5087, %v4790
  %v5305 = vmul.f32 %v5087, %v4791
  %v5306 = vmul.f32 %v5087, %v4792
  %v5307 = vmul.f32 %v5087, %v4793
  %v5308 = vmul.f32 %v5087, %v4794
  %v5309 = vmul.f32 %v5087, %v4795
  %v5310 = vmul.f32 %v5087, %v4796
  %v5311 = vmul.f32 %v5087, %v4797
  %v5312 = vmul.f32 %v5087, %v4798
  %v5313 = vmul.f32 %v5087, %v4799
  %v5314 = vmul.f32 %v5087, %v4800
  %v5315 = vmul.f32 %v5087, %v4801
  %v5316 = vmul.f32 %v5087, %v4802
  %v5317 = vmul.f32 %v5087, %v4803
  %v5318 = vmul.f32 %v5087, %v4804
  %v5319 = vmul.f32 %v5087, %v4805
  %v5320 = vmul.f32 %v5087, %v4806
  %v5321 = vmul.f32 %v5087, %v4807
  %v5322 = vmul.f32 %v5087, %v4808
  %v5323 = vmul.f32 %v5087, %v4809
  %v5324 = vmul.f32 %v5087, %v4810
  %v5325 = vmul.f32 %v5087, %v4811
  %v5326 = vmul.f32 %v5087, %v4812
  %v5327 = vmul.f32 %v5087, %v4813
  %v5328 = vmul.f32 %v5087, %v4814
  %v5329 = vmul.f32 %v5087, %v4815
  %v5330 = vmul.f32 %v5087, %v4816
  %v5331 = vmul.f32 %v5087, %v4817
  %v5332 = vmul.f32 %v5087, %v4818
  %v5333 = vmul.f32 %v5087, %v4819
  %v5334 = vmul.f32 %v5087, %v4820
  %v5335 = vmul.f32 %v5087, %v4821
  %v5336 = vmul.f32 %v5087, %v4822
  %v5337 = vmul.f32 %v5087, %v4823
  %v5338 = vmul.f32 %v5087, %v4824
  %v5339 = vmul.f32 %v5087, %v4825
  %v5340 = vmul.f32 %v5087, %v4826
  %v5341 = vmul.f32 %v5087, %v4827
  %v5342 = vmul.f32 %v5087, %v4828
  %v5343 = vmul.f32 %v5087, %v4829
  %v5344 = vld [vmem:[%s3] sm:$0x1]
  %v5345 = vld [vmem:[%s3 + $0x1] sm:$0x1]
  %v5346 = vld [vmem:[%s3 + $0x2] sm:$0x1]
  %v5347 = vld [vmem:[%s3 + $0x3] sm:$0x1]
  %v5348 = vld [vmem:[%s3 + $0x4] sm:$0x1]
  %v5349 = vld [vmem:[%s3 + $0x5] sm:$0x1]
  %v5350 = vld [vmem:[%s3 + $0x6] sm:$0x1]
  %v5351 = vld [vmem:[%s3 + $0x7] sm:$0x1]
  %v5352 = vld [vmem:[%s3 + $0x8] sm:$0x1]
  %v5353 = vld [vmem:[%s3 + $0x9] sm:$0x1]
  %v5354 = vld [vmem:[%s3 + $0xa] sm:$0x1]
  %v5355 = vld [vmem:[%s3 + $0xb] sm:$0x1]
  %v5356 = vld [vmem:[%s3 + $0xc] sm:$0x1]
  %v5357 = vld [vmem:[%s3 + $0xd] sm:$0x1]
  %v5358 = vld [vmem:[%s3 + $0xe] sm:$0x1]
  %v5359 = vld [vmem:[%s3 + $0xf] sm:$0x1]
  %v5360 = vld [vmem:[%s3 + $0x10] sm:$0x1]
  %v5361 = vld [vmem:[%s3 + $0x11] sm:$0x1]
  %v5362 = vld [vmem:[%s3 + $0x12] sm:$0x1]
  %v5363 = vld [vmem:[%s3 + $0x13] sm:$0x1]
  %v5364 = vld [vmem:[%s3 + $0x14] sm:$0x1]
  %v5365 = vld [vmem:[%s3 + $0x15] sm:$0x1]
  %v5366 = vld [vmem:[%s3 + $0x16] sm:$0x1]
  %v5367 = vld [vmem:[%s3 + $0x17] sm:$0x1]
  %v5368 = vld [vmem:[%s3 + $0x18] sm:$0x1]
  %v5369 = vld [vmem:[%s3 + $0x19] sm:$0x1]
  %v5370 = vld [vmem:[%s3 + $0x1a] sm:$0x1]
  %v5371 = vld [vmem:[%s3 + $0x1b] sm:$0x1]
  %v5372 = vld [vmem:[%s3 + $0x1c] sm:$0x1]
  %v5373 = vld [vmem:[%s3 + $0x1d] sm:$0x1]
  %v5374 = vld [vmem:[%s3 + $0x1e] sm:$0x1]
  %v5375 = vld [vmem:[%s3 + $0x1f] sm:$0x1]
  %v5376 = vld [vmem:[%s3 + $0x20] sm:$0x1]
  %v5377 = vld [vmem:[%s3 + $0x21] sm:$0x1]
  %v5378 = vld [vmem:[%s3 + $0x22] sm:$0x1]
  %v5379 = vld [vmem:[%s3 + $0x23] sm:$0x1]
  %v5380 = vld [vmem:[%s3 + $0x24] sm:$0x1]
  %v5381 = vld [vmem:[%s3 + $0x25] sm:$0x1]
  %v5382 = vld [vmem:[%s3 + $0x26] sm:$0x1]
  %v5383 = vld [vmem:[%s3 + $0x27] sm:$0x1]
  %v5384 = vld [vmem:[%s3 + $0x28] sm:$0x1]
  %v5385 = vld [vmem:[%s3 + $0x29] sm:$0x1]
  %v5386 = vld [vmem:[%s3 + $0x2a] sm:$0x1]
  %v5387 = vld [vmem:[%s3 + $0x2b] sm:$0x1]
  %v5388 = vld [vmem:[%s3 + $0x2c] sm:$0x1]
  %v5389 = vld [vmem:[%s3 + $0x2d] sm:$0x1]
  %v5390 = vld [vmem:[%s3 + $0x2e] sm:$0x1]
  %v5391 = vld [vmem:[%s3 + $0x2f] sm:$0x1]
  %v5392 = vld [vmem:[%s3 + $0x30] sm:$0x1]
  %v5393 = vld [vmem:[%s3 + $0x31] sm:$0x1]
  %v5394 = vld [vmem:[%s3 + $0x32] sm:$0x1]
  %v5395 = vld [vmem:[%s3 + $0x33] sm:$0x1]
  %v5396 = vld [vmem:[%s3 + $0x34] sm:$0x1]
  %v5397 = vld [vmem:[%s3 + $0x35] sm:$0x1]
  %v5398 = vld [vmem:[%s3 + $0x36] sm:$0x1]
  %v5399 = vld [vmem:[%s3 + $0x37] sm:$0x1]
  %v5400 = vld [vmem:[%s3 + $0x38] sm:$0x1]
  %v5401 = vld [vmem:[%s3 + $0x39] sm:$0x1]
  %v5402 = vld [vmem:[%s3 + $0x3a] sm:$0x1]
  %v5403 = vld [vmem:[%s3 + $0x3b] sm:$0x1]
  %v5404 = vld [vmem:[%s3 + $0x3c] sm:$0x1]
  %v5405 = vld [vmem:[%s3 + $0x3d] sm:$0x1]
  %v5406 = vld [vmem:[%s3 + $0x3e] sm:$0x1]
  %v5407 = vld [vmem:[%s3 + $0x3f] sm:$0x1]
  %v5408 = vld [vmem:[%s3 + $0x40] sm:$0x1]
  %v5409 = vld [vmem:[%s3 + $0x41] sm:$0x1]
  %v5410 = vld [vmem:[%s3 + $0x42] sm:$0x1]
  %v5411 = vld [vmem:[%s3 + $0x43] sm:$0x1]
  %v5412 = vld [vmem:[%s3 + $0x44] sm:$0x1]
  %v5413 = vld [vmem:[%s3 + $0x45] sm:$0x1]
  %v5414 = vld [vmem:[%s3 + $0x46] sm:$0x1]
  %v5415 = vld [vmem:[%s3 + $0x47] sm:$0x1]
  %v5416 = vld [vmem:[%s3 + $0x48] sm:$0x1]
  %v5417 = vld [vmem:[%s3 + $0x49] sm:$0x1]
  %v5418 = vld [vmem:[%s3 + $0x4a] sm:$0x1]
  %v5419 = vld [vmem:[%s3 + $0x4b] sm:$0x1]
  %v5420 = vld [vmem:[%s3 + $0x4c] sm:$0x1]
  %v5421 = vld [vmem:[%s3 + $0x4d] sm:$0x1]
  %v5422 = vld [vmem:[%s3 + $0x4e] sm:$0x1]
  %v5423 = vld [vmem:[%s3 + $0x4f] sm:$0x1]
  %v5424 = vld [vmem:[%s3 + $0x50] sm:$0x1]
  %v5425 = vld [vmem:[%s3 + $0x51] sm:$0x1]
  %v5426 = vld [vmem:[%s3 + $0x52] sm:$0x1]
  %v5427 = vld [vmem:[%s3 + $0x53] sm:$0x1]
  %v5428 = vld [vmem:[%s3 + $0x54] sm:$0x1]
  %v5429 = vld [vmem:[%s3 + $0x55] sm:$0x1]
  %v5430 = vld [vmem:[%s3 + $0x56] sm:$0x1]
  %v5431 = vld [vmem:[%s3 + $0x57] sm:$0x1]
  %v5432 = vld [vmem:[%s3 + $0x58] sm:$0x1]
  %v5433 = vld [vmem:[%s3 + $0x59] sm:$0x1]
  %v5434 = vld [vmem:[%s3 + $0x5a] sm:$0x1]
  %v5435 = vld [vmem:[%s3 + $0x5b] sm:$0x1]
  %v5436 = vld [vmem:[%s3 + $0x5c] sm:$0x1]
  %v5437 = vld [vmem:[%s3 + $0x5d] sm:$0x1]
  %v5438 = vld [vmem:[%s3 + $0x5e] sm:$0x1]
  %v5439 = vld [vmem:[%s3 + $0x5f] sm:$0x1]
  %v5440 = vld [vmem:[%s3 + $0x60] sm:$0x1]
  %v5441 = vld [vmem:[%s3 + $0x61] sm:$0x1]
  %v5442 = vld [vmem:[%s3 + $0x62] sm:$0x1]
  %v5443 = vld [vmem:[%s3 + $0x63] sm:$0x1]
  %v5444 = vld [vmem:[%s3 + $0x64] sm:$0x1]
  %v5445 = vld [vmem:[%s3 + $0x65] sm:$0x1]
  %v5446 = vld [vmem:[%s3 + $0x66] sm:$0x1]
  %v5447 = vld [vmem:[%s3 + $0x67] sm:$0x1]
  %v5448 = vld [vmem:[%s3 + $0x68] sm:$0x1]
  %v5449 = vld [vmem:[%s3 + $0x69] sm:$0x1]
  %v5450 = vld [vmem:[%s3 + $0x6a] sm:$0x1]
  %v5451 = vld [vmem:[%s3 + $0x6b] sm:$0x1]
  %v5452 = vld [vmem:[%s3 + $0x6c] sm:$0x1]
  %v5453 = vld [vmem:[%s3 + $0x6d] sm:$0x1]
  %v5454 = vld [vmem:[%s3 + $0x6e] sm:$0x1]
  %v5455 = vld [vmem:[%s3 + $0x6f] sm:$0x1]
  %v5456 = vld [vmem:[%s3 + $0x70] sm:$0x1]
  %v5457 = vld [vmem:[%s3 + $0x71] sm:$0x1]
  %v5458 = vld [vmem:[%s3 + $0x72] sm:$0x1]
  %v5459 = vld [vmem:[%s3 + $0x73] sm:$0x1]
  %v5460 = vld [vmem:[%s3 + $0x74] sm:$0x1]
  %v5461 = vld [vmem:[%s3 + $0x75] sm:$0x1]
  %v5462 = vld [vmem:[%s3 + $0x76] sm:$0x1]
  %v5463 = vld [vmem:[%s3 + $0x77] sm:$0x1]
  %v5464 = vld [vmem:[%s3 + $0x78] sm:$0x1]
  %v5465 = vld [vmem:[%s3 + $0x79] sm:$0x1]
  %v5466 = vld [vmem:[%s3 + $0x7a] sm:$0x1]
  %v5467 = vld [vmem:[%s3 + $0x7b] sm:$0x1]
  %v5468 = vld [vmem:[%s3 + $0x7c] sm:$0x1]
  %v5469 = vld [vmem:[%s3 + $0x7d] sm:$0x1]
  %v5470 = vld [vmem:[%s3 + $0x7e] sm:$0x1]
  %v5471 = vld [vmem:[%s3 + $0x7f] sm:$0x1]
  %v5472 = vld [vmem:[%s3 + $0x80] sm:$0x1]
  %v5473 = vld [vmem:[%s3 + $0x81] sm:$0x1]
  %v5474 = vld [vmem:[%s3 + $0x82] sm:$0x1]
  %v5475 = vld [vmem:[%s3 + $0x83] sm:$0x1]
  %v5476 = vld [vmem:[%s3 + $0x84] sm:$0x1]
  %v5477 = vld [vmem:[%s3 + $0x85] sm:$0x1]
  %v5478 = vld [vmem:[%s3 + $0x86] sm:$0x1]
  %v5479 = vld [vmem:[%s3 + $0x87] sm:$0x1]
  %v5480 = vld [vmem:[%s3 + $0x88] sm:$0x1]
  %v5481 = vld [vmem:[%s3 + $0x89] sm:$0x1]
  %v5482 = vld [vmem:[%s3 + $0x8a] sm:$0x1]
  %v5483 = vld [vmem:[%s3 + $0x8b] sm:$0x1]
  %v5484 = vld [vmem:[%s3 + $0x8c] sm:$0x1]
  %v5485 = vld [vmem:[%s3 + $0x8d] sm:$0x1]
  %v5486 = vld [vmem:[%s3 + $0x8e] sm:$0x1]
  %v5487 = vld [vmem:[%s3 + $0x8f] sm:$0x1]
  %v5488 = vld [vmem:[%s3 + $0x90] sm:$0x1]
  %v5489 = vld [vmem:[%s3 + $0x91] sm:$0x1]
  %v5490 = vld [vmem:[%s3 + $0x92] sm:$0x1]
  %v5491 = vld [vmem:[%s3 + $0x93] sm:$0x1]
  %v5492 = vld [vmem:[%s3 + $0x94] sm:$0x1]
  %v5493 = vld [vmem:[%s3 + $0x95] sm:$0x1]
  %v5494 = vld [vmem:[%s3 + $0x96] sm:$0x1]
  %v5495 = vld [vmem:[%s3 + $0x97] sm:$0x1]
  %v5496 = vld [vmem:[%s3 + $0x98] sm:$0x1]
  %v5497 = vld [vmem:[%s3 + $0x99] sm:$0x1]
  %v5498 = vld [vmem:[%s3 + $0x9a] sm:$0x1]
  %v5499 = vld [vmem:[%s3 + $0x9b] sm:$0x1]
  %v5500 = vld [vmem:[%s3 + $0x9c] sm:$0x1]
  %v5501 = vld [vmem:[%s3 + $0x9d] sm:$0x1]
  %v5502 = vld [vmem:[%s3 + $0x9e] sm:$0x1]
  %v5503 = vld [vmem:[%s3 + $0x9f] sm:$0x1]
  %v5504 = vld [vmem:[%s3 + $0xa0] sm:$0x1]
  %v5505 = vld [vmem:[%s3 + $0xa1] sm:$0x1]
  %v5506 = vld [vmem:[%s3 + $0xa2] sm:$0x1]
  %v5507 = vld [vmem:[%s3 + $0xa3] sm:$0x1]
  %v5508 = vld [vmem:[%s3 + $0xa4] sm:$0x1]
  %v5509 = vld [vmem:[%s3 + $0xa5] sm:$0x1]
  %v5510 = vld [vmem:[%s3 + $0xa6] sm:$0x1]
  %v5511 = vld [vmem:[%s3 + $0xa7] sm:$0x1]
  %v5512 = vld [vmem:[%s3 + $0xa8] sm:$0x1]
  %v5513 = vld [vmem:[%s3 + $0xa9] sm:$0x1]
  %v5514 = vld [vmem:[%s3 + $0xaa] sm:$0x1]
  %v5515 = vld [vmem:[%s3 + $0xab] sm:$0x1]
  %v5516 = vld [vmem:[%s3 + $0xac] sm:$0x1]
  %v5517 = vld [vmem:[%s3 + $0xad] sm:$0x1]
  %v5518 = vld [vmem:[%s3 + $0xae] sm:$0x1]
  %v5519 = vld [vmem:[%s3 + $0xaf] sm:$0x1]
  %v5520 = vld [vmem:[%s3 + $0xb0] sm:$0x1]
  %v5521 = vld [vmem:[%s3 + $0xb1] sm:$0x1]
  %v5522 = vld [vmem:[%s3 + $0xb2] sm:$0x1]
  %v5523 = vld [vmem:[%s3 + $0xb3] sm:$0x1]
  %v5524 = vld [vmem:[%s3 + $0xb4] sm:$0x1]
  %v5525 = vld [vmem:[%s3 + $0xb5] sm:$0x1]
  %v5526 = vld [vmem:[%s3 + $0xb6] sm:$0x1]
  %v5527 = vld [vmem:[%s3 + $0xb7] sm:$0x1]
  %v5528 = vld [vmem:[%s3 + $0xb8] sm:$0x1]
  %v5529 = vld [vmem:[%s3 + $0xb9] sm:$0x1]
  %v5530 = vld [vmem:[%s3 + $0xba] sm:$0x1]
  %v5531 = vld [vmem:[%s3 + $0xbb] sm:$0x1]
  %v5532 = vld [vmem:[%s3 + $0xbc] sm:$0x1]
  %v5533 = vld [vmem:[%s3 + $0xbd] sm:$0x1]
  %v5534 = vld [vmem:[%s3 + $0xbe] sm:$0x1]
  %v5535 = vld [vmem:[%s3 + $0xbf] sm:$0x1]
  %v5536 = vld [vmem:[%s3 + $0xc0] sm:$0x1]
  %v5537 = vld [vmem:[%s3 + $0xc1] sm:$0x1]
  %v5538 = vld [vmem:[%s3 + $0xc2] sm:$0x1]
  %v5539 = vld [vmem:[%s3 + $0xc3] sm:$0x1]
  %v5540 = vld [vmem:[%s3 + $0xc4] sm:$0x1]
  %v5541 = vld [vmem:[%s3 + $0xc5] sm:$0x1]
  %v5542 = vld [vmem:[%s3 + $0xc6] sm:$0x1]
  %v5543 = vld [vmem:[%s3 + $0xc7] sm:$0x1]
  %v5544 = vld [vmem:[%s3 + $0xc8] sm:$0x1]
  %v5545 = vld [vmem:[%s3 + $0xc9] sm:$0x1]
  %v5546 = vld [vmem:[%s3 + $0xca] sm:$0x1]
  %v5547 = vld [vmem:[%s3 + $0xcb] sm:$0x1]
  %v5548 = vld [vmem:[%s3 + $0xcc] sm:$0x1]
  %v5549 = vld [vmem:[%s3 + $0xcd] sm:$0x1]
  %v5550 = vld [vmem:[%s3 + $0xce] sm:$0x1]
  %v5551 = vld [vmem:[%s3 + $0xcf] sm:$0x1]
  %v5552 = vld [vmem:[%s3 + $0xd0] sm:$0x1]
  %v5553 = vld [vmem:[%s3 + $0xd1] sm:$0x1]
  %v5554 = vld [vmem:[%s3 + $0xd2] sm:$0x1]
  %v5555 = vld [vmem:[%s3 + $0xd3] sm:$0x1]
  %v5556 = vld [vmem:[%s3 + $0xd4] sm:$0x1]
  %v5557 = vld [vmem:[%s3 + $0xd5] sm:$0x1]
  %v5558 = vld [vmem:[%s3 + $0xd6] sm:$0x1]
  %v5559 = vld [vmem:[%s3 + $0xd7] sm:$0x1]
  %v5560 = vld [vmem:[%s3 + $0xd8] sm:$0x1]
  %v5561 = vld [vmem:[%s3 + $0xd9] sm:$0x1]
  %v5562 = vld [vmem:[%s3 + $0xda] sm:$0x1]
  %v5563 = vld [vmem:[%s3 + $0xdb] sm:$0x1]
  %v5564 = vld [vmem:[%s3 + $0xdc] sm:$0x1]
  %v5565 = vld [vmem:[%s3 + $0xdd] sm:$0x1]
  %v5566 = vld [vmem:[%s3 + $0xde] sm:$0x1]
  %v5567 = vld [vmem:[%s3 + $0xdf] sm:$0x1]
  %v5568 = vld [vmem:[%s3 + $0xe0] sm:$0x1]
  %v5569 = vld [vmem:[%s3 + $0xe1] sm:$0x1]
  %v5570 = vld [vmem:[%s3 + $0xe2] sm:$0x1]
  %v5571 = vld [vmem:[%s3 + $0xe3] sm:$0x1]
  %v5572 = vld [vmem:[%s3 + $0xe4] sm:$0x1]
  %v5573 = vld [vmem:[%s3 + $0xe5] sm:$0x1]
  %v5574 = vld [vmem:[%s3 + $0xe6] sm:$0x1]
  %v5575 = vld [vmem:[%s3 + $0xe7] sm:$0x1]
  %v5576 = vld [vmem:[%s3 + $0xe8] sm:$0x1]
  %v5577 = vld [vmem:[%s3 + $0xe9] sm:$0x1]
  %v5578 = vld [vmem:[%s3 + $0xea] sm:$0x1]
  %v5579 = vld [vmem:[%s3 + $0xeb] sm:$0x1]
  %v5580 = vld [vmem:[%s3 + $0xec] sm:$0x1]
  %v5581 = vld [vmem:[%s3 + $0xed] sm:$0x1]
  %v5582 = vld [vmem:[%s3 + $0xee] sm:$0x1]
  %v5583 = vld [vmem:[%s3 + $0xef] sm:$0x1]
  %v5584 = vld [vmem:[%s3 + $0xf0] sm:$0x1]
  %v5585 = vld [vmem:[%s3 + $0xf1] sm:$0x1]
  %v5586 = vld [vmem:[%s3 + $0xf2] sm:$0x1]
  %v5587 = vld [vmem:[%s3 + $0xf3] sm:$0x1]
  %v5588 = vld [vmem:[%s3 + $0xf4] sm:$0x1]
  %v5589 = vld [vmem:[%s3 + $0xf5] sm:$0x1]
  %v5590 = vld [vmem:[%s3 + $0xf6] sm:$0x1]
  %v5591 = vld [vmem:[%s3 + $0xf7] sm:$0x1]
  %v5592 = vld [vmem:[%s3 + $0xf8] sm:$0x1]
  %v5593 = vld [vmem:[%s3 + $0xf9] sm:$0x1]
  %v5594 = vld [vmem:[%s3 + $0xfa] sm:$0x1]
  %v5595 = vld [vmem:[%s3 + $0xfb] sm:$0x1]
  %v5596 = vld [vmem:[%s3 + $0xfc] sm:$0x1]
  %v5597 = vld [vmem:[%s3 + $0xfd] sm:$0x1]
  %v5598 = vld [vmem:[%s3 + $0xfe] sm:$0x1]
  %v5599 = vld [vmem:[%s3 + $0xff] sm:$0x1]
  %v5600 = vmul.f32 %v4830, %v5344
  %v5601 = vmul.f32 %v4831, %v5345
  %v5602 = vmul.f32 %v4832, %v5346
  %v5603 = vmul.f32 %v4833, %v5347
  %v5604 = vmul.f32 %v4834, %v5348
  %v5605 = vmul.f32 %v4835, %v5349
  %v5606 = vmul.f32 %v4836, %v5350
  %v5607 = vmul.f32 %v4837, %v5351
  %v5608 = vmul.f32 %v4838, %v5352
  %v5609 = vmul.f32 %v4839, %v5353
  %v5610 = vmul.f32 %v4840, %v5354
  %v5611 = vmul.f32 %v4841, %v5355
  %v5612 = vmul.f32 %v4842, %v5356
  %v5613 = vmul.f32 %v4843, %v5357
  %v5614 = vmul.f32 %v4844, %v5358
  %v5615 = vmul.f32 %v4845, %v5359
  %v5616 = vmul.f32 %v4846, %v5360
  %v5617 = vmul.f32 %v4847, %v5361
  %v5618 = vmul.f32 %v4848, %v5362
  %v5619 = vmul.f32 %v4849, %v5363
  %v5620 = vmul.f32 %v4850, %v5364
  %v5621 = vmul.f32 %v4851, %v5365
  %v5622 = vmul.f32 %v4852, %v5366
  %v5623 = vmul.f32 %v4853, %v5367
  %v5624 = vmul.f32 %v4854, %v5368
  %v5625 = vmul.f32 %v4855, %v5369
  %v5626 = vmul.f32 %v4856, %v5370
  %v5627 = vmul.f32 %v4857, %v5371
  %v5628 = vmul.f32 %v4858, %v5372
  %v5629 = vmul.f32 %v4859, %v5373
  %v5630 = vmul.f32 %v4860, %v5374
  %v5631 = vmul.f32 %v4861, %v5375
  %v5632 = vmul.f32 %v4862, %v5376
  %v5633 = vmul.f32 %v4863, %v5377
  %v5634 = vmul.f32 %v4864, %v5378
  %v5635 = vmul.f32 %v4865, %v5379
  %v5636 = vmul.f32 %v4866, %v5380
  %v5637 = vmul.f32 %v4867, %v5381
  %v5638 = vmul.f32 %v4868, %v5382
  %v5639 = vmul.f32 %v4869, %v5383
  %v5640 = vmul.f32 %v4870, %v5384
  %v5641 = vmul.f32 %v4871, %v5385
  %v5642 = vmul.f32 %v4872, %v5386
  %v5643 = vmul.f32 %v4873, %v5387
  %v5644 = vmul.f32 %v4874, %v5388
  %v5645 = vmul.f32 %v4875, %v5389
  %v5646 = vmul.f32 %v4876, %v5390
  %v5647 = vmul.f32 %v4877, %v5391
  %v5648 = vmul.f32 %v4878, %v5392
  %v5649 = vmul.f32 %v4879, %v5393
  %v5650 = vmul.f32 %v4880, %v5394
  %v5651 = vmul.f32 %v4881, %v5395
  %v5652 = vmul.f32 %v4882, %v5396
  %v5653 = vmul.f32 %v4883, %v5397
  %v5654 = vmul.f32 %v4884, %v5398
  %v5655 = vmul.f32 %v4885, %v5399
  %v5656 = vmul.f32 %v4886, %v5400
  %v5657 = vmul.f32 %v4887, %v5401
  %v5658 = vmul.f32 %v4888, %v5402
  %v5659 = vmul.f32 %v4889, %v5403
  %v5660 = vmul.f32 %v4890, %v5404
  %v5661 = vmul.f32 %v4891, %v5405
  %v5662 = vmul.f32 %v4892, %v5406
  %v5663 = vmul.f32 %v4893, %v5407
  %v5664 = vmul.f32 %v4894, %v5408
  %v5665 = vmul.f32 %v4895, %v5409
  %v5666 = vmul.f32 %v4896, %v5410
  %v5667 = vmul.f32 %v4897, %v5411
  %v5668 = vmul.f32 %v4898, %v5412
  %v5669 = vmul.f32 %v4899, %v5413
  %v5670 = vmul.f32 %v4900, %v5414
  %v5671 = vmul.f32 %v4901, %v5415
  %v5672 = vmul.f32 %v4902, %v5416
  %v5673 = vmul.f32 %v4903, %v5417
  %v5674 = vmul.f32 %v4904, %v5418
  %v5675 = vmul.f32 %v4905, %v5419
  %v5676 = vmul.f32 %v4906, %v5420
  %v5677 = vmul.f32 %v4907, %v5421
  %v5678 = vmul.f32 %v4908, %v5422
  %v5679 = vmul.f32 %v4909, %v5423
  %v5680 = vmul.f32 %v4910, %v5424
  %v5681 = vmul.f32 %v4911, %v5425
  %v5682 = vmul.f32 %v4912, %v5426
  %v5683 = vmul.f32 %v4913, %v5427
  %v5684 = vmul.f32 %v4914, %v5428
  %v5685 = vmul.f32 %v4915, %v5429
  %v5686 = vmul.f32 %v4916, %v5430
  %v5687 = vmul.f32 %v4917, %v5431
  %v5688 = vmul.f32 %v4918, %v5432
  %v5689 = vmul.f32 %v4919, %v5433
  %v5690 = vmul.f32 %v4920, %v5434
  %v5691 = vmul.f32 %v4921, %v5435
  %v5692 = vmul.f32 %v4922, %v5436
  %v5693 = vmul.f32 %v4923, %v5437
  %v5694 = vmul.f32 %v4924, %v5438
  %v5695 = vmul.f32 %v4925, %v5439
  %v5696 = vmul.f32 %v4926, %v5440
  %v5697 = vmul.f32 %v4927, %v5441
  %v5698 = vmul.f32 %v4928, %v5442
  %v5699 = vmul.f32 %v4929, %v5443
  %v5700 = vmul.f32 %v4930, %v5444
  %v5701 = vmul.f32 %v4931, %v5445
  %v5702 = vmul.f32 %v4932, %v5446
  %v5703 = vmul.f32 %v4933, %v5447
  %v5704 = vmul.f32 %v4934, %v5448
  %v5705 = vmul.f32 %v4935, %v5449
  %v5706 = vmul.f32 %v4936, %v5450
  %v5707 = vmul.f32 %v4937, %v5451
  %v5708 = vmul.f32 %v4938, %v5452
  %v5709 = vmul.f32 %v4939, %v5453
  %v5710 = vmul.f32 %v4940, %v5454
  %v5711 = vmul.f32 %v4941, %v5455
  %v5712 = vmul.f32 %v4942, %v5456
  %v5713 = vmul.f32 %v4943, %v5457
  %v5714 = vmul.f32 %v4944, %v5458
  %v5715 = vmul.f32 %v4945, %v5459
  %v5716 = vmul.f32 %v4946, %v5460
  %v5717 = vmul.f32 %v4947, %v5461
  %v5718 = vmul.f32 %v4948, %v5462
  %v5719 = vmul.f32 %v4949, %v5463
  %v5720 = vmul.f32 %v4950, %v5464
  %v5721 = vmul.f32 %v4951, %v5465
  %v5722 = vmul.f32 %v4952, %v5466
  %v5723 = vmul.f32 %v4953, %v5467
  %v5724 = vmul.f32 %v4954, %v5468
  %v5725 = vmul.f32 %v4955, %v5469
  %v5726 = vmul.f32 %v4956, %v5470
  %v5727 = vmul.f32 %v4957, %v5471
  %v5728 = vmul.f32 %v4958, %v5472
  %v5729 = vmul.f32 %v4959, %v5473
  %v5730 = vmul.f32 %v4960, %v5474
  %v5731 = vmul.f32 %v4961, %v5475
  %v5732 = vmul.f32 %v4962, %v5476
  %v5733 = vmul.f32 %v4963, %v5477
  %v5734 = vmul.f32 %v4964, %v5478
  %v5735 = vmul.f32 %v4965, %v5479
  %v5736 = vmul.f32 %v4966, %v5480
  %v5737 = vmul.f32 %v4967, %v5481
  %v5738 = vmul.f32 %v4968, %v5482
  %v5739 = vmul.f32 %v4969, %v5483
  %v5740 = vmul.f32 %v4970, %v5484
  %v5741 = vmul.f32 %v4971, %v5485
  %v5742 = vmul.f32 %v4972, %v5486
  %v5743 = vmul.f32 %v4973, %v5487
  %v5744 = vmul.f32 %v4974, %v5488
  %v5745 = vmul.f32 %v4975, %v5489
  %v5746 = vmul.f32 %v4976, %v5490
  %v5747 = vmul.f32 %v4977, %v5491
  %v5748 = vmul.f32 %v4978, %v5492
  %v5749 = vmul.f32 %v4979, %v5493
  %v5750 = vmul.f32 %v4980, %v5494
  %v5751 = vmul.f32 %v4981, %v5495
  %v5752 = vmul.f32 %v4982, %v5496
  %v5753 = vmul.f32 %v4983, %v5497
  %v5754 = vmul.f32 %v4984, %v5498
  %v5755 = vmul.f32 %v4985, %v5499
  %v5756 = vmul.f32 %v4986, %v5500
  %v5757 = vmul.f32 %v4987, %v5501
  %v5758 = vmul.f32 %v4988, %v5502
  %v5759 = vmul.f32 %v4989, %v5503
  %v5760 = vmul.f32 %v4990, %v5504
  %v5761 = vmul.f32 %v4991, %v5505
  %v5762 = vmul.f32 %v4992, %v5506
  %v5763 = vmul.f32 %v4993, %v5507
  %v5764 = vmul.f32 %v4994, %v5508
  %v5765 = vmul.f32 %v4995, %v5509
  %v5766 = vmul.f32 %v4996, %v5510
  %v5767 = vmul.f32 %v4997, %v5511
  %v5768 = vmul.f32 %v4998, %v5512
  %v5769 = vmul.f32 %v4999, %v5513
  %v5770 = vmul.f32 %v5000, %v5514
  %v5771 = vmul.f32 %v5001, %v5515
  %v5772 = vmul.f32 %v5002, %v5516
  %v5773 = vmul.f32 %v5003, %v5517
  %v5774 = vmul.f32 %v5004, %v5518
  %v5775 = vmul.f32 %v5005, %v5519
  %v5776 = vmul.f32 %v5006, %v5520
  %v5777 = vmul.f32 %v5007, %v5521
  %v5778 = vmul.f32 %v5008, %v5522
  %v5779 = vmul.f32 %v5009, %v5523
  %v5780 = vmul.f32 %v5010, %v5524
  %v5781 = vmul.f32 %v5011, %v5525
  %v5782 = vmul.f32 %v5012, %v5526
  %v5783 = vmul.f32 %v5013, %v5527
  %v5784 = vmul.f32 %v5014, %v5528
  %v5785 = vmul.f32 %v5015, %v5529
  %v5786 = vmul.f32 %v5016, %v5530
  %v5787 = vmul.f32 %v5017, %v5531
  %v5788 = vmul.f32 %v5018, %v5532
  %v5789 = vmul.f32 %v5019, %v5533
  %v5790 = vmul.f32 %v5020, %v5534
  %v5791 = vmul.f32 %v5021, %v5535
  %v5792 = vmul.f32 %v5022, %v5536
  %v5793 = vmul.f32 %v5023, %v5537
  %v5794 = vmul.f32 %v5024, %v5538
  %v5795 = vmul.f32 %v5025, %v5539
  %v5796 = vmul.f32 %v5026, %v5540
  %v5797 = vmul.f32 %v5027, %v5541
  %v5798 = vmul.f32 %v5028, %v5542
  %v5799 = vmul.f32 %v5029, %v5543
  %v5800 = vmul.f32 %v5030, %v5544
  %v5801 = vmul.f32 %v5031, %v5545
  %v5802 = vmul.f32 %v5032, %v5546
  %v5803 = vmul.f32 %v5033, %v5547
  %v5804 = vmul.f32 %v5034, %v5548
  %v5805 = vmul.f32 %v5035, %v5549
  %v5806 = vmul.f32 %v5036, %v5550
  %v5807 = vmul.f32 %v5037, %v5551
  %v5808 = vmul.f32 %v5038, %v5552
  %v5809 = vmul.f32 %v5039, %v5553
  %v5810 = vmul.f32 %v5040, %v5554
  %v5811 = vmul.f32 %v5041, %v5555
  %v5812 = vmul.f32 %v5042, %v5556
  %v5813 = vmul.f32 %v5043, %v5557
  %v5814 = vmul.f32 %v5044, %v5558
  %v5815 = vmul.f32 %v5045, %v5559
  %v5816 = vmul.f32 %v5046, %v5560
  %v5817 = vmul.f32 %v5047, %v5561
  %v5818 = vmul.f32 %v5048, %v5562
  %v5819 = vmul.f32 %v5049, %v5563
  %v5820 = vmul.f32 %v5050, %v5564
  %v5821 = vmul.f32 %v5051, %v5565
  %v5822 = vmul.f32 %v5052, %v5566
  %v5823 = vmul.f32 %v5053, %v5567
  %v5824 = vmul.f32 %v5054, %v5568
  %v5825 = vmul.f32 %v5055, %v5569
  %v5826 = vmul.f32 %v5056, %v5570
  %v5827 = vmul.f32 %v5057, %v5571
  %v5828 = vmul.f32 %v5058, %v5572
  %v5829 = vmul.f32 %v5059, %v5573
  %v5830 = vmul.f32 %v5060, %v5574
  %v5831 = vmul.f32 %v5061, %v5575
  %v5832 = vmul.f32 %v5062, %v5576
  %v5833 = vmul.f32 %v5063, %v5577
  %v5834 = vmul.f32 %v5064, %v5578
  %v5835 = vmul.f32 %v5065, %v5579
  %v5836 = vmul.f32 %v5066, %v5580
  %v5837 = vmul.f32 %v5067, %v5581
  %v5838 = vmul.f32 %v5068, %v5582
  %v5839 = vmul.f32 %v5069, %v5583
  %v5840 = vmul.f32 %v5070, %v5584
  %v5841 = vmul.f32 %v5071, %v5585
  %v5842 = vmul.f32 %v5072, %v5586
  %v5843 = vmul.f32 %v5073, %v5587
  %v5844 = vmul.f32 %v5074, %v5588
  %v5845 = vmul.f32 %v5075, %v5589
  %v5846 = vmul.f32 %v5076, %v5590
  %v5847 = vmul.f32 %v5077, %v5591
  %v5848 = vmul.f32 %v5078, %v5592
  %v5849 = vmul.f32 %v5079, %v5593
  %v5850 = vmul.f32 %v5080, %v5594
  %v5851 = vmul.f32 %v5081, %v5595
  %v5852 = vmul.f32 %v5082, %v5596
  %v5853 = vmul.f32 %v5083, %v5597
  %v5854 = vmul.f32 %v5084, %v5598
  %v5855 = vmul.f32 %v5085, %v5599
  %v5856 = vadd.f32 %v5088, %v5600
  %v5857 = vadd.f32 %v5089, %v5601
  %v5858 = vadd.f32 %v5090, %v5602
  %v5859 = vadd.f32 %v5091, %v5603
  %v5860 = vadd.f32 %v5092, %v5604
  %v5861 = vadd.f32 %v5093, %v5605
  %v5862 = vadd.f32 %v5094, %v5606
  %v5863 = vadd.f32 %v5095, %v5607
  %v5864 = vadd.f32 %v5096, %v5608
  %v5865 = vadd.f32 %v5097, %v5609
  %v5866 = vadd.f32 %v5098, %v5610
  %v5867 = vadd.f32 %v5099, %v5611
  %v5868 = vadd.f32 %v5100, %v5612
  %v5869 = vadd.f32 %v5101, %v5613
  %v5870 = vadd.f32 %v5102, %v5614
  %v5871 = vadd.f32 %v5103, %v5615
  %v5872 = vadd.f32 %v5104, %v5616
  %v5873 = vadd.f32 %v5105, %v5617
  %v5874 = vadd.f32 %v5106, %v5618
  %v5875 = vadd.f32 %v5107, %v5619
  %v5876 = vadd.f32 %v5108, %v5620
  %v5877 = vadd.f32 %v5109, %v5621
  %v5878 = vadd.f32 %v5110, %v5622
  %v5879 = vadd.f32 %v5111, %v5623
  %v5880 = vadd.f32 %v5112, %v5624
  %v5881 = vadd.f32 %v5113, %v5625
  %v5882 = vadd.f32 %v5114, %v5626
  %v5883 = vadd.f32 %v5115, %v5627
  %v5884 = vadd.f32 %v5116, %v5628
  %v5885 = vadd.f32 %v5117, %v5629
  %v5886 = vadd.f32 %v5118, %v5630
  %v5887 = vadd.f32 %v5119, %v5631
  %v5888 = vadd.f32 %v5120, %v5632
  %v5889 = vadd.f32 %v5121, %v5633
  %v5890 = vadd.f32 %v5122, %v5634
  %v5891 = vadd.f32 %v5123, %v5635
  %v5892 = vadd.f32 %v5124, %v5636
  %v5893 = vadd.f32 %v5125, %v5637
  %v5894 = vadd.f32 %v5126, %v5638
  %v5895 = vadd.f32 %v5127, %v5639
  %v5896 = vadd.f32 %v5128, %v5640
  %v5897 = vadd.f32 %v5129, %v5641
  %v5898 = vadd.f32 %v5130, %v5642
  %v5899 = vadd.f32 %v5131, %v5643
  %v5900 = vadd.f32 %v5132, %v5644
  %v5901 = vadd.f32 %v5133, %v5645
  %v5902 = vadd.f32 %v5134, %v5646
  %v5903 = vadd.f32 %v5135, %v5647
  %v5904 = vadd.f32 %v5136, %v5648
  %v5905 = vadd.f32 %v5137, %v5649
  %v5906 = vadd.f32 %v5138, %v5650
  %v5907 = vadd.f32 %v5139, %v5651
  %v5908 = vadd.f32 %v5140, %v5652
  %v5909 = vadd.f32 %v5141, %v5653
  %v5910 = vadd.f32 %v5142, %v5654
  %v5911 = vadd.f32 %v5143, %v5655
  %v5912 = vadd.f32 %v5144, %v5656
  %v5913 = vadd.f32 %v5145, %v5657
  %v5914 = vadd.f32 %v5146, %v5658
  %v5915 = vadd.f32 %v5147, %v5659
  %v5916 = vadd.f32 %v5148, %v5660
  %v5917 = vadd.f32 %v5149, %v5661
  %v5918 = vadd.f32 %v5150, %v5662
  %v5919 = vadd.f32 %v5151, %v5663
  %v5920 = vadd.f32 %v5152, %v5664
  %v5921 = vadd.f32 %v5153, %v5665
  %v5922 = vadd.f32 %v5154, %v5666
  %v5923 = vadd.f32 %v5155, %v5667
  %v5924 = vadd.f32 %v5156, %v5668
  %v5925 = vadd.f32 %v5157, %v5669
  %v5926 = vadd.f32 %v5158, %v5670
  %v5927 = vadd.f32 %v5159, %v5671
  %v5928 = vadd.f32 %v5160, %v5672
  %v5929 = vadd.f32 %v5161, %v5673
  %v5930 = vadd.f32 %v5162, %v5674
  %v5931 = vadd.f32 %v5163, %v5675
  %v5932 = vadd.f32 %v5164, %v5676
  %v5933 = vadd.f32 %v5165, %v5677
  %v5934 = vadd.f32 %v5166, %v5678
  %v5935 = vadd.f32 %v5167, %v5679
  %v5936 = vadd.f32 %v5168, %v5680
  %v5937 = vadd.f32 %v5169, %v5681
  %v5938 = vadd.f32 %v5170, %v5682
  %v5939 = vadd.f32 %v5171, %v5683
  %v5940 = vadd.f32 %v5172, %v5684
  %v5941 = vadd.f32 %v5173, %v5685
  %v5942 = vadd.f32 %v5174, %v5686
  %v5943 = vadd.f32 %v5175, %v5687
  %v5944 = vadd.f32 %v5176, %v5688
  %v5945 = vadd.f32 %v5177, %v5689
  %v5946 = vadd.f32 %v5178, %v5690
  %v5947 = vadd.f32 %v5179, %v5691
  %v5948 = vadd.f32 %v5180, %v5692
  %v5949 = vadd.f32 %v5181, %v5693
  %v5950 = vadd.f32 %v5182, %v5694
  %v5951 = vadd.f32 %v5183, %v5695
  %v5952 = vadd.f32 %v5184, %v5696
  %v5953 = vadd.f32 %v5185, %v5697
  %v5954 = vadd.f32 %v5186, %v5698
  %v5955 = vadd.f32 %v5187, %v5699
  %v5956 = vadd.f32 %v5188, %v5700
  %v5957 = vadd.f32 %v5189, %v5701
  %v5958 = vadd.f32 %v5190, %v5702
  %v5959 = vadd.f32 %v5191, %v5703
  %v5960 = vadd.f32 %v5192, %v5704
  %v5961 = vadd.f32 %v5193, %v5705
  %v5962 = vadd.f32 %v5194, %v5706
  %v5963 = vadd.f32 %v5195, %v5707
  %v5964 = vadd.f32 %v5196, %v5708
  %v5965 = vadd.f32 %v5197, %v5709
  %v5966 = vadd.f32 %v5198, %v5710
  %v5967 = vadd.f32 %v5199, %v5711
  %v5968 = vadd.f32 %v5200, %v5712
  %v5969 = vadd.f32 %v5201, %v5713
  %v5970 = vadd.f32 %v5202, %v5714
  %v5971 = vadd.f32 %v5203, %v5715
  %v5972 = vadd.f32 %v5204, %v5716
  %v5973 = vadd.f32 %v5205, %v5717
  %v5974 = vadd.f32 %v5206, %v5718
  %v5975 = vadd.f32 %v5207, %v5719
  %v5976 = vadd.f32 %v5208, %v5720
  %v5977 = vadd.f32 %v5209, %v5721
  %v5978 = vadd.f32 %v5210, %v5722
  %v5979 = vadd.f32 %v5211, %v5723
  %v5980 = vadd.f32 %v5212, %v5724
  %v5981 = vadd.f32 %v5213, %v5725
  %v5982 = vadd.f32 %v5214, %v5726
  %v5983 = vadd.f32 %v5215, %v5727
  %v5984 = vadd.f32 %v5216, %v5728
  %v5985 = vadd.f32 %v5217, %v5729
  %v5986 = vadd.f32 %v5218, %v5730
  %v5987 = vadd.f32 %v5219, %v5731
  %v5988 = vadd.f32 %v5220, %v5732
  %v5989 = vadd.f32 %v5221, %v5733
  %v5990 = vadd.f32 %v5222, %v5734
  %v5991 = vadd.f32 %v5223, %v5735
  %v5992 = vadd.f32 %v5224, %v5736
  %v5993 = vadd.f32 %v5225, %v5737
  %v5994 = vadd.f32 %v5226, %v5738
  %v5995 = vadd.f32 %v5227, %v5739
  %v5996 = vadd.f32 %v5228, %v5740
  %v5997 = vadd.f32 %v5229, %v5741
  %v5998 = vadd.f32 %v5230, %v5742
  %v5999 = vadd.f32 %v5231, %v5743
  %v6000 = vadd.f32 %v5232, %v5744
  %v6001 = vadd.f32 %v5233, %v5745
  %v6002 = vadd.f32 %v5234, %v5746
  %v6003 = vadd.f32 %v5235, %v5747
  %v6004 = vadd.f32 %v5236, %v5748
  %v6005 = vadd.f32 %v5237, %v5749
  %v6006 = vadd.f32 %v5238, %v5750
  %v6007 = vadd.f32 %v5239, %v5751
  %v6008 = vadd.f32 %v5240, %v5752
  %v6009 = vadd.f32 %v5241, %v5753
  %v6010 = vadd.f32 %v5242, %v5754
  %v6011 = vadd.f32 %v5243, %v5755
  %v6012 = vadd.f32 %v5244, %v5756
  %v6013 = vadd.f32 %v5245, %v5757
  %v6014 = vadd.f32 %v5246, %v5758
  %v6015 = vadd.f32 %v5247, %v5759
  %v6016 = vadd.f32 %v5248, %v5760
  %v6017 = vadd.f32 %v5249, %v5761
  %v6018 = vadd.f32 %v5250, %v5762
  %v6019 = vadd.f32 %v5251, %v5763
  %v6020 = vadd.f32 %v5252, %v5764
  %v6021 = vadd.f32 %v5253, %v5765
  %v6022 = vadd.f32 %v5254, %v5766
  %v6023 = vadd.f32 %v5255, %v5767
  %v6024 = vadd.f32 %v5256, %v5768
  %v6025 = vadd.f32 %v5257, %v5769
  %v6026 = vadd.f32 %v5258, %v5770
  %v6027 = vadd.f32 %v5259, %v5771
  %v6028 = vadd.f32 %v5260, %v5772
  %v6029 = vadd.f32 %v5261, %v5773
  %v6030 = vadd.f32 %v5262, %v5774
  %v6031 = vadd.f32 %v5263, %v5775
  %v6032 = vadd.f32 %v5264, %v5776
  %v6033 = vadd.f32 %v5265, %v5777
  %v6034 = vadd.f32 %v5266, %v5778
  %v6035 = vadd.f32 %v5267, %v5779
  %v6036 = vadd.f32 %v5268, %v5780
  %v6037 = vadd.f32 %v5269, %v5781
  %v6038 = vadd.f32 %v5270, %v5782
  %v6039 = vadd.f32 %v5271, %v5783
  %v6040 = vadd.f32 %v5272, %v5784
  %v6041 = vadd.f32 %v5273, %v5785
  %v6042 = vadd.f32 %v5274, %v5786
  %v6043 = vadd.f32 %v5275, %v5787
  %v6044 = vadd.f32 %v5276, %v5788
  %v6045 = vadd.f32 %v5277, %v5789
  %v6046 = vadd.f32 %v5278, %v5790
  %v6047 = vadd.f32 %v5279, %v5791
  %v6048 = vadd.f32 %v5280, %v5792
  %v6049 = vadd.f32 %v5281, %v5793
  %v6050 = vadd.f32 %v5282, %v5794
  %v6051 = vadd.f32 %v5283, %v5795
  %v6052 = vadd.f32 %v5284, %v5796
  %v6053 = vadd.f32 %v5285, %v5797
  %v6054 = vadd.f32 %v5286, %v5798
  %v6055 = vadd.f32 %v5287, %v5799
  %v6056 = vadd.f32 %v5288, %v5800
  %v6057 = vadd.f32 %v5289, %v5801
  %v6058 = vadd.f32 %v5290, %v5802
  %v6059 = vadd.f32 %v5291, %v5803
  %v6060 = vadd.f32 %v5292, %v5804
  %v6061 = vadd.f32 %v5293, %v5805
  %v6062 = vadd.f32 %v5294, %v5806
  %v6063 = vadd.f32 %v5295, %v5807
  %v6064 = vadd.f32 %v5296, %v5808
  %v6065 = vadd.f32 %v5297, %v5809
  %v6066 = vadd.f32 %v5298, %v5810
  %v6067 = vadd.f32 %v5299, %v5811
  %v6068 = vadd.f32 %v5300, %v5812
  %v6069 = vadd.f32 %v5301, %v5813
  %v6070 = vadd.f32 %v5302, %v5814
  %v6071 = vadd.f32 %v5303, %v5815
  %v6072 = vadd.f32 %v5304, %v5816
  %v6073 = vadd.f32 %v5305, %v5817
  %v6074 = vadd.f32 %v5306, %v5818
  %v6075 = vadd.f32 %v5307, %v5819
  %v6076 = vadd.f32 %v5308, %v5820
  %v6077 = vadd.f32 %v5309, %v5821
  %v6078 = vadd.f32 %v5310, %v5822
  %v6079 = vadd.f32 %v5311, %v5823
  %v6080 = vadd.f32 %v5312, %v5824
  %v6081 = vadd.f32 %v5313, %v5825
  %v6082 = vadd.f32 %v5314, %v5826
  %v6083 = vadd.f32 %v5315, %v5827
  %v6084 = vadd.f32 %v5316, %v5828
  %v6085 = vadd.f32 %v5317, %v5829
  %v6086 = vadd.f32 %v5318, %v5830
  %v6087 = vadd.f32 %v5319, %v5831
  %v6088 = vadd.f32 %v5320, %v5832
  %v6089 = vadd.f32 %v5321, %v5833
  %v6090 = vadd.f32 %v5322, %v5834
  %v6091 = vadd.f32 %v5323, %v5835
  %v6092 = vadd.f32 %v5324, %v5836
  %v6093 = vadd.f32 %v5325, %v5837
  %v6094 = vadd.f32 %v5326, %v5838
  %v6095 = vadd.f32 %v5327, %v5839
  %v6096 = vadd.f32 %v5328, %v5840
  %v6097 = vadd.f32 %v5329, %v5841
  %v6098 = vadd.f32 %v5330, %v5842
  %v6099 = vadd.f32 %v5331, %v5843
  %v6100 = vadd.f32 %v5332, %v5844
  %v6101 = vadd.f32 %v5333, %v5845
  %v6102 = vadd.f32 %v5334, %v5846
  %v6103 = vadd.f32 %v5335, %v5847
  %v6104 = vadd.f32 %v5336, %v5848
  %v6105 = vadd.f32 %v5337, %v5849
  %v6106 = vadd.f32 %v5338, %v5850
  %v6107 = vadd.f32 %v5339, %v5851
  %v6108 = vadd.f32 %v5340, %v5852
  %v6109 = vadd.f32 %v5341, %v5853
  %v6110 = vadd.f32 %v5342, %v5854
  %v6111 = vadd.f32 %v5343, %v5855
  %6112 = vst [vmem:[%s4] sm:$0x1] %v5856
  %6113 = vst [vmem:[%s4 + $0x1] sm:$0x1] %v5857
  %6114 = vst [vmem:[%s4 + $0x2] sm:$0x1] %v5858
  %6115 = vst [vmem:[%s4 + $0x3] sm:$0x1] %v5859
  %6116 = vst [vmem:[%s4 + $0x4] sm:$0x1] %v5860
  %6117 = vst [vmem:[%s4 + $0x5] sm:$0x1] %v5861
  %6118 = vst [vmem:[%s4 + $0x6] sm:$0x1] %v5862
  %6119 = vst [vmem:[%s4 + $0x7] sm:$0x1] %v5863
  %6120 = vst [vmem:[%s4 + $0x8] sm:$0x1] %v5864
  %6121 = vst [vmem:[%s4 + $0x9] sm:$0x1] %v5865
  %6122 = vst [vmem:[%s4 + $0xa] sm:$0x1] %v5866
  %6123 = vst [vmem:[%s4 + $0xb] sm:$0x1] %v5867
  %6124 = vst [vmem:[%s4 + $0xc] sm:$0x1] %v5868
  %6125 = vst [vmem:[%s4 + $0xd] sm:$0x1] %v5869
  %6126 = vst [vmem:[%s4 + $0xe] sm:$0x1] %v5870
  %6127 = vst [vmem:[%s4 + $0xf] sm:$0x1] %v5871
  %6128 = vst [vmem:[%s4 + $0x10] sm:$0x1] %v5872
  %6129 = vst [vmem:[%s4 + $0x11] sm:$0x1] %v5873
  %6130 = vst [vmem:[%s4 + $0x12] sm:$0x1] %v5874
  %6131 = vst [vmem:[%s4 + $0x13] sm:$0x1] %v5875
  %6132 = vst [vmem:[%s4 + $0x14] sm:$0x1] %v5876
  %6133 = vst [vmem:[%s4 + $0x15] sm:$0x1] %v5877
  %6134 = vst [vmem:[%s4 + $0x16] sm:$0x1] %v5878
  %6135 = vst [vmem:[%s4 + $0x17] sm:$0x1] %v5879
  %6136 = vst [vmem:[%s4 + $0x18] sm:$0x1] %v5880
  %6137 = vst [vmem:[%s4 + $0x19] sm:$0x1] %v5881
  %6138 = vst [vmem:[%s4 + $0x1a] sm:$0x1] %v5882
  %6139 = vst [vmem:[%s4 + $0x1b] sm:$0x1] %v5883
  %6140 = vst [vmem:[%s4 + $0x1c] sm:$0x1] %v5884
  %6141 = vst [vmem:[%s4 + $0x1d] sm:$0x1] %v5885
  %6142 = vst [vmem:[%s4 + $0x1e] sm:$0x1] %v5886
  %6143 = vst [vmem:[%s4 + $0x1f] sm:$0x1] %v5887
  %6144 = vst [vmem:[%s4 + $0x20] sm:$0x1] %v5888
  %6145 = vst [vmem:[%s4 + $0x21] sm:$0x1] %v5889
  %6146 = vst [vmem:[%s4 + $0x22] sm:$0x1] %v5890
  %6147 = vst [vmem:[%s4 + $0x23] sm:$0x1] %v5891
  %6148 = vst [vmem:[%s4 + $0x24] sm:$0x1] %v5892
  %6149 = vst [vmem:[%s4 + $0x25] sm:$0x1] %v5893
  %6150 = vst [vmem:[%s4 + $0x26] sm:$0x1] %v5894
  %6151 = vst [vmem:[%s4 + $0x27] sm:$0x1] %v5895
  %6152 = vst [vmem:[%s4 + $0x28] sm:$0x1] %v5896
  %6153 = vst [vmem:[%s4 + $0x29] sm:$0x1] %v5897
  %6154 = vst [vmem:[%s4 + $0x2a] sm:$0x1] %v5898
  %6155 = vst [vmem:[%s4 + $0x2b] sm:$0x1] %v5899
  %6156 = vst [vmem:[%s4 + $0x2c] sm:$0x1] %v5900
  %6157 = vst [vmem:[%s4 + $0x2d] sm:$0x1] %v5901
  %6158 = vst [vmem:[%s4 + $0x2e] sm:$0x1] %v5902
  %6159 = vst [vmem:[%s4 + $0x2f] sm:$0x1] %v5903
  %6160 = vst [vmem:[%s4 + $0x30] sm:$0x1] %v5904
  %6161 = vst [vmem:[%s4 + $0x31] sm:$0x1] %v5905
  %6162 = vst [vmem:[%s4 + $0x32] sm:$0x1] %v5906
  %6163 = vst [vmem:[%s4 + $0x33] sm:$0x1] %v5907
  %6164 = vst [vmem:[%s4 + $0x34] sm:$0x1] %v5908
  %6165 = vst [vmem:[%s4 + $0x35] sm:$0x1] %v5909
  %6166 = vst [vmem:[%s4 + $0x36] sm:$0x1] %v5910
  %6167 = vst [vmem:[%s4 + $0x37] sm:$0x1] %v5911
  %6168 = vst [vmem:[%s4 + $0x38] sm:$0x1] %v5912
  %6169 = vst [vmem:[%s4 + $0x39] sm:$0x1] %v5913
  %6170 = vst [vmem:[%s4 + $0x3a] sm:$0x1] %v5914
  %6171 = vst [vmem:[%s4 + $0x3b] sm:$0x1] %v5915
  %6172 = vst [vmem:[%s4 + $0x3c] sm:$0x1] %v5916
  %6173 = vst [vmem:[%s4 + $0x3d] sm:$0x1] %v5917
  %6174 = vst [vmem:[%s4 + $0x3e] sm:$0x1] %v5918
  %6175 = vst [vmem:[%s4 + $0x3f] sm:$0x1] %v5919
  %6176 = vst [vmem:[%s4 + $0x40] sm:$0x1] %v5920
  %6177 = vst [vmem:[%s4 + $0x41] sm:$0x1] %v5921
  %6178 = vst [vmem:[%s4 + $0x42] sm:$0x1] %v5922
  %6179 = vst [vmem:[%s4 + $0x43] sm:$0x1] %v5923
  %6180 = vst [vmem:[%s4 + $0x44] sm:$0x1] %v5924
  %6181 = vst [vmem:[%s4 + $0x45] sm:$0x1] %v5925
  %6182 = vst [vmem:[%s4 + $0x46] sm:$0x1] %v5926
  %6183 = vst [vmem:[%s4 + $0x47] sm:$0x1] %v5927
  %6184 = vst [vmem:[%s4 + $0x48] sm:$0x1] %v5928
  %6185 = vst [vmem:[%s4 + $0x49] sm:$0x1] %v5929
  %6186 = vst [vmem:[%s4 + $0x4a] sm:$0x1] %v5930
  %6187 = vst [vmem:[%s4 + $0x4b] sm:$0x1] %v5931
  %6188 = vst [vmem:[%s4 + $0x4c] sm:$0x1] %v5932
  %6189 = vst [vmem:[%s4 + $0x4d] sm:$0x1] %v5933
  %6190 = vst [vmem:[%s4 + $0x4e] sm:$0x1] %v5934
  %6191 = vst [vmem:[%s4 + $0x4f] sm:$0x1] %v5935
  %6192 = vst [vmem:[%s4 + $0x50] sm:$0x1] %v5936
  %6193 = vst [vmem:[%s4 + $0x51] sm:$0x1] %v5937
  %6194 = vst [vmem:[%s4 + $0x52] sm:$0x1] %v5938
  %6195 = vst [vmem:[%s4 + $0x53] sm:$0x1] %v5939
  %6196 = vst [vmem:[%s4 + $0x54] sm:$0x1] %v5940
  %6197 = vst [vmem:[%s4 + $0x55] sm:$0x1] %v5941
  %6198 = vst [vmem:[%s4 + $0x56] sm:$0x1] %v5942
  %6199 = vst [vmem:[%s4 + $0x57] sm:$0x1] %v5943
  %6200 = vst [vmem:[%s4 + $0x58] sm:$0x1] %v5944
  %6201 = vst [vmem:[%s4 + $0x59] sm:$0x1] %v5945
  %6202 = vst [vmem:[%s4 + $0x5a] sm:$0x1] %v5946
  %6203 = vst [vmem:[%s4 + $0x5b] sm:$0x1] %v5947
  %6204 = vst [vmem:[%s4 + $0x5c] sm:$0x1] %v5948
  %6205 = vst [vmem:[%s4 + $0x5d] sm:$0x1] %v5949
  %6206 = vst [vmem:[%s4 + $0x5e] sm:$0x1] %v5950
  %6207 = vst [vmem:[%s4 + $0x5f] sm:$0x1] %v5951
  %6208 = vst [vmem:[%s4 + $0x60] sm:$0x1] %v5952
  %6209 = vst [vmem:[%s4 + $0x61] sm:$0x1] %v5953
  %6210 = vst [vmem:[%s4 + $0x62] sm:$0x1] %v5954
  %6211 = vst [vmem:[%s4 + $0x63] sm:$0x1] %v5955
  %6212 = vst [vmem:[%s4 + $0x64] sm:$0x1] %v5956
  %6213 = vst [vmem:[%s4 + $0x65] sm:$0x1] %v5957
  %6214 = vst [vmem:[%s4 + $0x66] sm:$0x1] %v5958
  %6215 = vst [vmem:[%s4 + $0x67] sm:$0x1] %v5959
  %6216 = vst [vmem:[%s4 + $0x68] sm:$0x1] %v5960
  %6217 = vst [vmem:[%s4 + $0x69] sm:$0x1] %v5961
  %6218 = vst [vmem:[%s4 + $0x6a] sm:$0x1] %v5962
  %6219 = vst [vmem:[%s4 + $0x6b] sm:$0x1] %v5963
  %6220 = vst [vmem:[%s4 + $0x6c] sm:$0x1] %v5964
  %6221 = vst [vmem:[%s4 + $0x6d] sm:$0x1] %v5965
  %6222 = vst [vmem:[%s4 + $0x6e] sm:$0x1] %v5966
  %6223 = vst [vmem:[%s4 + $0x6f] sm:$0x1] %v5967
  %6224 = vst [vmem:[%s4 + $0x70] sm:$0x1] %v5968
  %6225 = vst [vmem:[%s4 + $0x71] sm:$0x1] %v5969
  %6226 = vst [vmem:[%s4 + $0x72] sm:$0x1] %v5970
  %6227 = vst [vmem:[%s4 + $0x73] sm:$0x1] %v5971
  %6228 = vst [vmem:[%s4 + $0x74] sm:$0x1] %v5972
  %6229 = vst [vmem:[%s4 + $0x75] sm:$0x1] %v5973
  %6230 = vst [vmem:[%s4 + $0x76] sm:$0x1] %v5974
  %6231 = vst [vmem:[%s4 + $0x77] sm:$0x1] %v5975
  %6232 = vst [vmem:[%s4 + $0x78] sm:$0x1] %v5976
  %6233 = vst [vmem:[%s4 + $0x79] sm:$0x1] %v5977
  %6234 = vst [vmem:[%s4 + $0x7a] sm:$0x1] %v5978
  %6235 = vst [vmem:[%s4 + $0x7b] sm:$0x1] %v5979
  %6236 = vst [vmem:[%s4 + $0x7c] sm:$0x1] %v5980
  %6237 = vst [vmem:[%s4 + $0x7d] sm:$0x1] %v5981
  %6238 = vst [vmem:[%s4 + $0x7e] sm:$0x1] %v5982
  %6239 = vst [vmem:[%s4 + $0x7f] sm:$0x1] %v5983
  %6240 = vst [vmem:[%s4 + $0x80] sm:$0x1] %v5984
  %6241 = vst [vmem:[%s4 + $0x81] sm:$0x1] %v5985
  %6242 = vst [vmem:[%s4 + $0x82] sm:$0x1] %v5986
  %6243 = vst [vmem:[%s4 + $0x83] sm:$0x1] %v5987
  %6244 = vst [vmem:[%s4 + $0x84] sm:$0x1] %v5988
  %6245 = vst [vmem:[%s4 + $0x85] sm:$0x1] %v5989
  %6246 = vst [vmem:[%s4 + $0x86] sm:$0x1] %v5990
  %6247 = vst [vmem:[%s4 + $0x87] sm:$0x1] %v5991
  %6248 = vst [vmem:[%s4 + $0x88] sm:$0x1] %v5992
  %6249 = vst [vmem:[%s4 + $0x89] sm:$0x1] %v5993
  %6250 = vst [vmem:[%s4 + $0x8a] sm:$0x1] %v5994
  %6251 = vst [vmem:[%s4 + $0x8b] sm:$0x1] %v5995
  %6252 = vst [vmem:[%s4 + $0x8c] sm:$0x1] %v5996
  %6253 = vst [vmem:[%s4 + $0x8d] sm:$0x1] %v5997
  %6254 = vst [vmem:[%s4 + $0x8e] sm:$0x1] %v5998
  %6255 = vst [vmem:[%s4 + $0x8f] sm:$0x1] %v5999
  %6256 = vst [vmem:[%s4 + $0x90] sm:$0x1] %v6000
  %6257 = vst [vmem:[%s4 + $0x91] sm:$0x1] %v6001
  %6258 = vst [vmem:[%s4 + $0x92] sm:$0x1] %v6002
  %6259 = vst [vmem:[%s4 + $0x93] sm:$0x1] %v6003
  %6260 = vst [vmem:[%s4 + $0x94] sm:$0x1] %v6004
  %6261 = vst [vmem:[%s4 + $0x95] sm:$0x1] %v6005
  %6262 = vst [vmem:[%s4 + $0x96] sm:$0x1] %v6006
  %6263 = vst [vmem:[%s4 + $0x97] sm:$0x1] %v6007
  %6264 = vst [vmem:[%s4 + $0x98] sm:$0x1] %v6008
  %6265 = vst [vmem:[%s4 + $0x99] sm:$0x1] %v6009
  %6266 = vst [vmem:[%s4 + $0x9a] sm:$0x1] %v6010
  %6267 = vst [vmem:[%s4 + $0x9b] sm:$0x1] %v6011
  %6268 = vst [vmem:[%s4 + $0x9c] sm:$0x1] %v6012
  %6269 = vst [vmem:[%s4 + $0x9d] sm:$0x1] %v6013
  %6270 = vst [vmem:[%s4 + $0x9e] sm:$0x1] %v6014
  %6271 = vst [vmem:[%s4 + $0x9f] sm:$0x1] %v6015
  %6272 = vst [vmem:[%s4 + $0xa0] sm:$0x1] %v6016
  %6273 = vst [vmem:[%s4 + $0xa1] sm:$0x1] %v6017
  %6274 = vst [vmem:[%s4 + $0xa2] sm:$0x1] %v6018
  %6275 = vst [vmem:[%s4 + $0xa3] sm:$0x1] %v6019
  %6276 = vst [vmem:[%s4 + $0xa4] sm:$0x1] %v6020
  %6277 = vst [vmem:[%s4 + $0xa5] sm:$0x1] %v6021
  %6278 = vst [vmem:[%s4 + $0xa6] sm:$0x1] %v6022
  %6279 = vst [vmem:[%s4 + $0xa7] sm:$0x1] %v6023
  %6280 = vst [vmem:[%s4 + $0xa8] sm:$0x1] %v6024
  %6281 = vst [vmem:[%s4 + $0xa9] sm:$0x1] %v6025
  %6282 = vst [vmem:[%s4 + $0xaa] sm:$0x1] %v6026
  %6283 = vst [vmem:[%s4 + $0xab] sm:$0x1] %v6027
  %6284 = vst [vmem:[%s4 + $0xac] sm:$0x1] %v6028
  %6285 = vst [vmem:[%s4 + $0xad] sm:$0x1] %v6029
  %6286 = vst [vmem:[%s4 + $0xae] sm:$0x1] %v6030
  %6287 = vst [vmem:[%s4 + $0xaf] sm:$0x1] %v6031
  %6288 = vst [vmem:[%s4 + $0xb0] sm:$0x1] %v6032
  %6289 = vst [vmem:[%s4 + $0xb1] sm:$0x1] %v6033
  %6290 = vst [vmem:[%s4 + $0xb2] sm:$0x1] %v6034
  %6291 = vst [vmem:[%s4 + $0xb3] sm:$0x1] %v6035
  %6292 = vst [vmem:[%s4 + $0xb4] sm:$0x1] %v6036
  %6293 = vst [vmem:[%s4 + $0xb5] sm:$0x1] %v6037
  %6294 = vst [vmem:[%s4 + $0xb6] sm:$0x1] %v6038
  %6295 = vst [vmem:[%s4 + $0xb7] sm:$0x1] %v6039
  %6296 = vst [vmem:[%s4 + $0xb8] sm:$0x1] %v6040
  %6297 = vst [vmem:[%s4 + $0xb9] sm:$0x1] %v6041
  %6298 = vst [vmem:[%s4 + $0xba] sm:$0x1] %v6042
  %6299 = vst [vmem:[%s4 + $0xbb] sm:$0x1] %v6043
  %6300 = vst [vmem:[%s4 + $0xbc] sm:$0x1] %v6044
  %6301 = vst [vmem:[%s4 + $0xbd] sm:$0x1] %v6045
  %6302 = vst [vmem:[%s4 + $0xbe] sm:$0x1] %v6046
  %6303 = vst [vmem:[%s4 + $0xbf] sm:$0x1] %v6047
  %6304 = vst [vmem:[%s4 + $0xc0] sm:$0x1] %v6048
  %6305 = vst [vmem:[%s4 + $0xc1] sm:$0x1] %v6049
  %6306 = vst [vmem:[%s4 + $0xc2] sm:$0x1] %v6050
  %6307 = vst [vmem:[%s4 + $0xc3] sm:$0x1] %v6051
  %6308 = vst [vmem:[%s4 + $0xc4] sm:$0x1] %v6052
  %6309 = vst [vmem:[%s4 + $0xc5] sm:$0x1] %v6053
  %6310 = vst [vmem:[%s4 + $0xc6] sm:$0x1] %v6054
  %6311 = vst [vmem:[%s4 + $0xc7] sm:$0x1] %v6055
  %6312 = vst [vmem:[%s4 + $0xc8] sm:$0x1] %v6056
  %6313 = vst [vmem:[%s4 + $0xc9] sm:$0x1] %v6057
  %6314 = vst [vmem:[%s4 + $0xca] sm:$0x1] %v6058
  %6315 = vst [vmem:[%s4 + $0xcb] sm:$0x1] %v6059
  %6316 = vst [vmem:[%s4 + $0xcc] sm:$0x1] %v6060
  %6317 = vst [vmem:[%s4 + $0xcd] sm:$0x1] %v6061
  %6318 = vst [vmem:[%s4 + $0xce] sm:$0x1] %v6062
  %6319 = vst [vmem:[%s4 + $0xcf] sm:$0x1] %v6063
  %6320 = vst [vmem:[%s4 + $0xd0] sm:$0x1] %v6064
  %6321 = vst [vmem:[%s4 + $0xd1] sm:$0x1] %v6065
  %6322 = vst [vmem:[%s4 + $0xd2] sm:$0x1] %v6066
  %6323 = vst [vmem:[%s4 + $0xd3] sm:$0x1] %v6067
  %6324 = vst [vmem:[%s4 + $0xd4] sm:$0x1] %v6068
  %6325 = vst [vmem:[%s4 + $0xd5] sm:$0x1] %v6069
  %6326 = vst [vmem:[%s4 + $0xd6] sm:$0x1] %v6070
  %6327 = vst [vmem:[%s4 + $0xd7] sm:$0x1] %v6071
  %6328 = vst [vmem:[%s4 + $0xd8] sm:$0x1] %v6072
  %6329 = vst [vmem:[%s4 + $0xd9] sm:$0x1] %v6073
  %6330 = vst [vmem:[%s4 + $0xda] sm:$0x1] %v6074
  %6331 = vst [vmem:[%s4 + $0xdb] sm:$0x1] %v6075
  %6332 = vst [vmem:[%s4 + $0xdc] sm:$0x1] %v6076
  %6333 = vst [vmem:[%s4 + $0xdd] sm:$0x1] %v6077
  %6334 = vst [vmem:[%s4 + $0xde] sm:$0x1] %v6078
  %6335 = vst [vmem:[%s4 + $0xdf] sm:$0x1] %v6079
  %6336 = vst [vmem:[%s4 + $0xe0] sm:$0x1] %v6080
  %6337 = vst [vmem:[%s4 + $0xe1] sm:$0x1] %v6081
  %6338 = vst [vmem:[%s4 + $0xe2] sm:$0x1] %v6082
  %6339 = vst [vmem:[%s4 + $0xe3] sm:$0x1] %v6083
  %6340 = vst [vmem:[%s4 + $0xe4] sm:$0x1] %v6084
  %6341 = vst [vmem:[%s4 + $0xe5] sm:$0x1] %v6085
  %6342 = vst [vmem:[%s4 + $0xe6] sm:$0x1] %v6086
  %6343 = vst [vmem:[%s4 + $0xe7] sm:$0x1] %v6087
  %6344 = vst [vmem:[%s4 + $0xe8] sm:$0x1] %v6088
  %6345 = vst [vmem:[%s4 + $0xe9] sm:$0x1] %v6089
  %6346 = vst [vmem:[%s4 + $0xea] sm:$0x1] %v6090
  %6347 = vst [vmem:[%s4 + $0xeb] sm:$0x1] %v6091
  %6348 = vst [vmem:[%s4 + $0xec] sm:$0x1] %v6092
  %6349 = vst [vmem:[%s4 + $0xed] sm:$0x1] %v6093
  %6350 = vst [vmem:[%s4 + $0xee] sm:$0x1] %v6094
  %6351 = vst [vmem:[%s4 + $0xef] sm:$0x1] %v6095
  %6352 = vst [vmem:[%s4 + $0xf0] sm:$0x1] %v6096
  %6353 = vst [vmem:[%s4 + $0xf1] sm:$0x1] %v6097
  %6354 = vst [vmem:[%s4 + $0xf2] sm:$0x1] %v6098
  %6355 = vst [vmem:[%s4 + $0xf3] sm:$0x1] %v6099
  %6356 = vst [vmem:[%s4 + $0xf4] sm:$0x1] %v6100
  %6357 = vst [vmem:[%s4 + $0xf5] sm:$0x1] %v6101
  %6358 = vst [vmem:[%s4 + $0xf6] sm:$0x1] %v6102
  %6359 = vst [vmem:[%s4 + $0xf7] sm:$0x1] %v6103
  %6360 = vst [vmem:[%s4 + $0xf8] sm:$0x1] %v6104
  %6361 = vst [vmem:[%s4 + $0xf9] sm:$0x1] %v6105
  %6362 = vst [vmem:[%s4 + $0xfa] sm:$0x1] %v6106
  %6363 = vst [vmem:[%s4 + $0xfb] sm:$0x1] %v6107
  %6364 = vst [vmem:[%s4 + $0xfc] sm:$0x1] %v6108
  %6365 = vst [vmem:[%s4 + $0xfd] sm:$0x1] %v6109
  %6366 = vst [vmem:[%s4 + $0xfe] sm:$0x1] %v6110
  %6367 = vst [vmem:[%s4 + $0xff] sm:$0x1] %v6111
  // Predicated region
  $region18: #{choose_pool.1} parent=0 // pred_check
    _
  $region19: #{choose_pool.1} parent=0 // pred_check_branch
    %6369 = sbr.rel (0) target = $region21
  $region20: #{choose_pool.1} parent=0 // pred_region
    _
  $region21: #{choose_pool.1} parent=0 // pred_fallthru
    _
  // Predicated region
  $region22: #{choose_pool.1} parent=0 // pred_check
    _
  $region23: #{choose_pool.1} parent=0 // pred_check_branch
    %6371 = sbr.rel (0) target = $region25
  $region24: #{choose_pool.1} parent=0 // pred_region
    _
  $region25: #{choose_pool.1} parent=0 // pred_fallthru
    _

</llo_original>
